<compile_context>
chip_gen: v5e
topology: v5e:2x2
jax: 0.10.0
libtpu: 0.0.40
codegen_flags: <defaults>
</compile_context>

<pallas_src>
import json
import hashlib

import jax
import jax.numpy as jnp
from jax import lax
from jax.experimental import pallas as pl
from jax.experimental.pallas import tpu as pltpu


# ---------------------------------------------------------------------------
# Faithful reproduction of the expression-building glue (no network access).
# ---------------------------------------------------------------------------
def generate_antares_expression(antares_ir, feed_dict, extra_outputs):
    input_dict = {}
    for k in feed_dict:
        v = feed_dict[k]
        input_dict[k] = {'dtype': str(v.dtype), 'shape': list(v.shape)}
    input_dict = json.dumps(input_dict)
    return '- einstein_v2("%s", input_dict=%s, extra_outputs=%s)' % (
        antares_ir.replace('"', '`'), input_dict, extra_outputs)


# ---------------------------------------------------------------------------
# Hardware queries / tiling heuristics
# ---------------------------------------------------------------------------
def _round_up(x, m):
    return (x + m - 1) // m * m


def _hw_info():
    """(vmem_capacity_bytes, is_multi_tensorcore_chip) with safe fallbacks."""
    vmem_cap = 64 << 20                      # v7x lower bound -> safe anywhere
    try:
        info = pltpu.get_tpu_info()
        vmem_cap = int(getattr(info, "vmem_capacity_bytes", vmem_cap))
    except Exception:
        pass
    kind = ""
    try:
        kind = jax.devices()[0].device_kind.lower()
    except Exception:
        pass
    # 2 TensorCores per chip: v7x (and megacore v4 / v5p); v5e / v6e are 1 TC.
    multi_tc = any(t in kind for t in ("v7", "v4", "v5p"))
    return vmem_cap, multi_tc


def _block_vmem_bytes(tm, tn, tk, in_itemsize, out_itemsize, split_f32,
                      use_scratch):
    ws = 2 * (tm * tk + tk * tn) * in_itemsize    # double-buffered A/B tiles
    ws += 2 * tm * tn * out_itemsize              # double-buffered output tile
    if use_scratch:
        ws += tm * tn * 4                         # f32 accumulator scratch
    if split_f32:
        ws += (tm * tk + tk * tn) * 4             # in-kernel bf16 hi/lo temps
    return ws


def _choose_tiles(n, k, m, in_itemsize, out_itemsize, vmem_cap, multi_tc,
                  split_f32, use_scratch):
    """MXU-aligned (128-multiple) tiles sized against this chip's VMEM."""
    big_vmem = vmem_cap >= (96 << 20)            # v5e / v6e: 128 MiB physical
    tm = min(512, _round_up(n, 128))
    tn = min(1024 if big_vmem else 512, _round_up(m, 128))
    tk = min(2048, _round_up(k, 128))            # big K tile: fewer grid steps
                                                 # and fewer acc RMW sweeps

    budget = int(vmem_cap * 0.35)                # leave room for Mosaic scratch
    while _block_vmem_bytes(tm, tn, tk, in_itemsize, out_itemsize,
                            split_f32, use_scratch) > budget:
        if tk > 128:
            tk = _round_up(tk // 2, 128)
        elif tn > 128:
            tn = _round_up(tn // 2, 128)
        elif tm > 128:
            tm = _round_up(tm // 2, 128)
        else:
            break

    # 2-TC parts only: guarantee >= 2 parallel output blocks so both
    # TensorCores get work; keep tiles 128-multiples (no 192-row tiles).
    if multi_tc and pl.cdiv(n, tm) * pl.cdiv(m, tn) < 2:
        if tm > 128:
            tm = max(128, _round_up(tm // 2, 128))
        elif tn > 128:
            tn = max(128, _round_up(tn // 2, 128))
    return tm, tn, tk


# ---------------------------------------------------------------------------
# Pallas kernel for: output0[N, M] +=! input0[N, K] * input1[K, M]
# ---------------------------------------------------------------------------
def _make_matmul_kernel(tk, k_rem, split_f32, use_scratch):
    """One (i, j, k) grid step.

    * reduction axis (k) last; the f32 accumulator is the resident output
      block (f32 outputs) or a VMEM scratch (narrow output dtypes).
    * split_f32: f32 operands split into bf16 hi/lo in-kernel and fed to the
      MXU as 3 bf16 passes with f32 accumulation (near-f32 accuracy; the
      dropped lo*lo term is ~2^-16 relative).
    * k_rem (static K % tk): the partially out-of-bounds last K block is
      masked in BOTH operands so undefined block padding never reaches the
      accumulator (N/M edge padding only touches discarded output rows/cols).
    """
    def body(a_ref, b_ref, o_ref, acc_ref):
        @pl.when(pl.program_id(2) == 0)
        def _init():
            acc_ref[...] = jnp.zeros_like(acc_ref)

        a = a_ref[...]
        b = b_ref[...]

        if k_rem:   # static: emitted only when K % tk != 0
            kk = pl.program_id(2)
            valid = jnp.where(kk == pl.num_programs(2) - 1, k_rem, tk)
            col = lax.broadcasted_iota(jnp.int32, (1, tk), 1)
            row = lax.broadcasted_iota(jnp.int32, (tk, 1), 0)
            a = jnp.where(col < valid, a, jnp.zeros_like(a))
            b = jnp.where(row < valid, b, jnp.zeros_like(b))

        if split_f32:
            a_hi = a.astype(jnp.bfloat16)
            a_lo = (a - a_hi.astype(jnp.float32)).astype(jnp.bfloat16)
            b_hi = b.astype(jnp.bfloat16)
            b_lo = (b - b_hi.astype(jnp.float32)).astype(jnp.bfloat16)
            update = (jnp.dot(a_hi, b_hi, preferred_element_type=jnp.float32)
                      + jnp.dot(a_lo, b_hi, preferred_element_type=jnp.float32)
                      + jnp.dot(a_hi, b_lo, preferred_element_type=jnp.float32))
        else:
            update = jnp.dot(a, b, preferred_element_type=jnp.float32)

        acc_ref[...] += update

        if use_scratch:
            @pl.when(pl.program_id(2) == pl.num_programs(2) - 1)
            def _finalize():
                o_ref[...] = acc_ref[...].astype(o_ref.dtype)

    if use_scratch:
        return body
    return lambda a_ref, b_ref, o_ref: body(a_ref, b_ref, o_ref, o_ref)


def antares_matmul(input0, input1, *, force_pallas=False, precision="auto"):
    """output0[N, M] +=! input0[N, K] * input1[K, M]  (einstein_v2).

    precision:
      "auto": f32 operands use an in-kernel bf16 hi/lo split (3 bf16 MXU
              passes, f32 accumulation) -> near-f32 numerics at bf16 speed.
      "bf16": cast f32 operands to bf16 (single MXU pass, fastest, lossy).
      "f32":  feed f32 straight to the MXU (Mosaic multi-pass emulation).
    """
    N, K = input0.shape
    K2, M = input1.shape
    assert K == K2, (input0.shape, input1.shape)
    out_dtype = jnp.result_type(input0.dtype, input1.dtype)

    # Tiny problems: launch + pipeline prologue dominates; XLA's fused matmul
    # wins.  Accumulate in f32 regardless of input dtype, then cast.
    if not force_pallas and (N * M * K) < (1 << 24):
        return jnp.dot(input0, input1, preferred_element_type=jnp.float32,
                       precision=lax.Precision.HIGHEST).astype(out_dtype)

    a, b = input0, input1
    split_f32 = False
    if a.dtype == jnp.float32 and b.dtype == jnp.float32:
        if precision == "bf16":
            a = a.astype(jnp.bfloat16)
            b = b.astype(jnp.bfloat16)
        elif precision != "f32":          # "auto"
            split_f32 = True

    in_itemsize = jnp.dtype(a.dtype).itemsize
    out_itemsize = jnp.dtype(out_dtype).itemsize
    use_scratch = (out_dtype != jnp.float32)

    vmem_cap, multi_tc = _hw_info()
    tm, tn, tk = _choose_tiles(N, K, M, in_itemsize, out_itemsize,
                               vmem_cap, multi_tc, split_f32, use_scratch)

    # cdiv grids, no jnp.pad / crop copies: ragged N/M edges write only the
    # valid output region; the ragged K edge is masked inside the kernel.
    grid = (pl.cdiv(N, tm), pl.cdiv(M, tn), pl.cdiv(K, tk))
    k_rem = K % tk

    kernel = _make_matmul_kernel(tk, k_rem, split_f32, use_scratch)
    scratch_shapes = [pltpu.VMEM((tm, tn), jnp.float32)] if use_scratch else []

    ws = _block_vmem_bytes(tm, tn, tk, in_itemsize, out_itemsize,
                           split_f32, use_scratch)
    # ~96 MiB on 128-MiB parts (v5e/v6e), <= ~50 MiB on 64-MiB v7x.
    vmem_limit = int(min(max(2 * ws + (16 << 20), 32 << 20),
                         int(vmem_cap * 0.78)))

    cost = pl.CostEstimate(
        flops=2 * N * M * K * (3 if split_f32 else 1),
        transcendentals=0,
        # A is re-read once per output-column block, B once per output-row block.
        bytes_accessed=(N * K * in_itemsize) * grid[1]
                       + (K * M * in_itemsize) * grid[0]
                       + N * M * out_itemsize)

    return pl.pallas_call(
        kernel,
        out_shape=jax.ShapeDtypeStruct((N, M), out_dtype),
        grid_spec=pltpu.PrefetchScalarGridSpec(
            num_scalar_prefetch=0,
            grid=grid,
            in_specs=[
                pl.BlockSpec((tm, tk), lambda i, j, k: (i, k)),
                pl.BlockSpec((tk, tn), lambda i, j, k: (k, j)),
            ],
            out_specs=pl.BlockSpec((tm, tn), lambda i, j, k: (i, j)),
            scratch_shapes=scratch_shapes,
        ),
        compiler_params=pltpu.CompilerParams(
            dimension_semantics=("parallel", "parallel", "arbitrary"),
            vmem_limit_bytes=vmem_limit),
        cost_estimate=cost,
    )(a, b)


# ---------------------------------------------------------------------------
# JAX/Pallas analogue of the PyTorch CustomOp module.
# ---------------------------------------------------------------------------
class CustomOp:
    """Mirrors frameworks/antares/pytorch/custom_op.py::CustomOp.

    Instead of asking the Antares server to compile the IR, the known IR
    pattern is dispatched to a hand-written Pallas kernel.
    """

    _SUPPORTED_IR = "output0[N, M] +=! input0[N, K] * input1[K, M]"

    def __init__(self, ir, feed_dict, extra_outputs=[]):
        self.expr = generate_antares_expression(ir, feed_dict, extra_outputs)
        self.expr_hash = hashlib.sha256(self.expr.encode()).hexdigest()
        # Sorted feed_dict -> positional input order, exactly like the module.
        feed = sorted([(k, feed_dict[k]) for k in feed_dict], key=lambda x: x[0])
        self.values = [v for _, v in feed]
        self.output_names = ['output0']
        if ir != self._SUPPORTED_IR:
            # TODO(synk): general einstein_v2 IR -> Pallas lowering not implemented;
            # only the reduction-matmul example IR is supported here.
            raise NotImplementedError("Unsupported Antares IR: %s" % ir)

    def tune(self, step=100, use_cache=False, timeout=-1):
        # TODO(synk): server-side autotuning has no Pallas equivalent; tile
        # sizes are chosen analytically in _choose_tiles().
        return self

    def emit(self):
        return self

    def forward(self):
        input0, input1 = self.values  # sorted: input0, input1
        outputs = [antares_matmul(input0, input1)]
        outputs = outputs[0] if len(outputs) == 1 else tuple(outputs)
        return outputs

    __call__ = forward


if __name__ == "__main__":
    key = jax.random.PRNGKey(0)
    k0, k1, k2, k3 = jax.random.split(key, 4)

    # (1) Direct Pallas path on ragged (non-128-aligned) N and K: exercises the
    #     partially out-of-bounds edge blocks and the in-kernel K-remainder
    #     mask, plus the bf16x3 f32 split.
    N, K, M = 200, 264, 384
    a = jax.random.normal(k0, (N, K), dtype=jnp.float32)
    b = jax.random.normal(k1, (K, M), dtype=jnp.float32)
    out = jax.block_until_ready(antares_matmul(a, b, force_pallas=True))
    ref = jnp.dot(a, b, precision=lax.Precision.HIGHEST)
    assert out.shape == (N, M) and out.dtype == jnp.float32
    assert jnp.allclose(out, ref, atol=2e-3, rtol=2e-3), \
        float(jnp.max(jnp.abs(out - ref)))

    # (2) Module path (CustomOp) on the canonical Antares example IR; shape is
    #     above the tiny-problem fallback threshold, so forward() runs the
    #     Pallas kernel.
    N2, K2, M2 = 384, 512, 512
    input0 = jax.random.normal(k2, (N2, K2), dtype=jnp.float32)
    input1 = jax.random.normal(k3, (K2, M2), dtype=jnp.float32)
    op = CustomOp(
        ir="output0[N, M] +=! input0[N, K] * input1[K, M]",
        feed_dict={'input0': input0, 'input1': input1},
    ).tune(step=0).emit()

    out2 = jax.block_until_ready(op.forward())
    ref2 = jnp.dot(input0, input1, precision=lax.Precision.HIGHEST)
    assert out2.shape == (N2, M2) and out2.dtype == jnp.float32
    assert jnp.allclose(out2, ref2, atol=2e-3, rtol=2e-3), \
        float(jnp.max(jnp.abs(out2 - ref2)))

    print("KERNEL_OK")
</pallas_src>

<mosaic_0001>
module attributes {stable_mosaic.version = 11 : i64} {
  func.func @_lambda_(%arg0: i32, %arg1: i32, %arg2: i32, %arg3: memref<256x384xf32, #tpu.memory_space<vmem>>, %arg4: memref<384x384xf32, #tpu.memory_space<vmem>>, %arg5: memref<256x384xf32, #tpu.memory_space<vmem>>) attributes {dimension_semantics = [#tpu.dimension_semantics<parallel>, #tpu.dimension_semantics<parallel>, #tpu.dimension_semantics<arbitrary>], iteration_bounds = array<i64: 1, 1, 1>, scalar_prefetch = 0 : i64, scratch_operands = 0 : i64, tpu.core_type = #tpu.core_type<tc>, window_params = [{transform_indices = @transform_0, window_bounds = array<i64: 256, 384>}, {transform_indices = @transform_1, window_bounds = array<i64: 384, 384>}, {transform_indices = @transform_2, window_bounds = array<i64: 256, 384>}]} {
    %c0_i32 = arith.constant 0 : i32
    %0 = arith.cmpi eq, %arg2, %c0_i32 : i32
    %1 = arith.extui %0 : i1 to i32
    %c0_i32_0 = arith.constant 0 : i32
    %2 = arith.cmpi ne, %1, %c0_i32_0 : i32
    scf.if %2 {
      %cst_13 = arith.constant 0.000000e+00 : f32
      %37 = vector.broadcast %cst_13 : f32 to vector<256x384xf32>
      %c0_14 = arith.constant 0 : index
      %c0_15 = arith.constant 0 : index
      %38 = vector.load %arg5[%c0_14, %c0_15] : memref<256x384xf32, #tpu.memory_space<vmem>>, vector<256x384xf32>
      tpu.vector_store %arg5[%c0_14, %c0_15], %37 {strides = array<i32>} : memref<256x384xf32, #tpu.memory_space<vmem>>, vector<256x384xf32>,
    } else {
    }
    %c0 = arith.constant 0 : index
    %c0_1 = arith.constant 0 : index
    %3 = vector.load %arg3[%c0, %c0_1] : memref<256x384xf32, #tpu.memory_space<vmem>>, vector<256x384xf32>
    %c0_2 = arith.constant 0 : index
    %c0_3 = arith.constant 0 : index
    %4 = vector.load %arg4[%c0_2, %c0_3] : memref<384x384xf32, #tpu.memory_space<vmem>>, vector<384x384xf32>
    %c0_i32_4 = arith.constant 0 : i32
    %5 = arith.cmpi eq, %arg2, %c0_i32_4 : i32
    %c264_i32 = arith.constant 264 : i32
    %c384_i32 = arith.constant 384 : i32
    %6 = arith.select %5, %c264_i32, %c384_i32 : i32
    %7 = tpu.iota {dimensions = array<i32: 1>} : vector<1x384xi32>
    %8 = tpu.iota {dimensions = array<i32: 0>} : vector<384x1xi32>
    %9 = vector.broadcast %6 : i32 to vector<1x384xi32>
    %10 = arith.cmpi slt, %7, %9 : vector<1x384xi32>
    %cst = arith.constant 0.000000e+00 : f32
    %11 = vector.broadcast %cst : f32 to vector<256x384xf32>
    %12 = vector.shape_cast %10 : vector<1x384xi1> to vector<1x384xi1>
    %13 = vector.broadcast %12 : vector<1x384xi1> to vector<256x384xi1>
    %14 = arith.select %13, %3, %11 : vector<256x384xi1>, vector<256x384xf32>
    %15 = vector.broadcast %6 : i32 to vector<384x1xi32>
    %16 = arith.cmpi slt, %8, %15 : vector<384x1xi32>
    %cst_5 = arith.constant 0.000000e+00 : f32
    %17 = vector.broadcast %cst_5 : f32 to vector<384x384xf32>
    %18 = vector.shape_cast %16 : vector<384x1xi1> to vector<384x1xi1>
    %19 = vector.broadcast %18 : vector<384x1xi1> to vector<384x384xi1>
    %20 = arith.select %19, %4, %17 : vector<384x384xi1>, vector<384x384xf32>
    %21 = arith.truncf %14 : vector<256x384xf32> to vector<256x384xbf16>
    %22 = arith.extf %21 : vector<256x384xbf16> to vector<256x384xf32>
    %23 = arith.subf %14, %22 : vector<256x384xf32>
    %24 = arith.truncf %23 : vector<256x384xf32> to vector<256x384xbf16>
    %25 = arith.truncf %20 : vector<384x384xf32> to vector<384x384xbf16>
    %26 = arith.extf %25 : vector<384x384xbf16> to vector<384x384xf32>
    %27 = arith.subf %20, %26 : vector<384x384xf32>
    %28 = arith.truncf %27 : vector<384x384xf32> to vector<384x384xbf16>
    %cst_6 = arith.constant dense<0.000000e+00> : vector<256x384xf32>
    %29 = tpu.matmul %21, %25, %cst_6 {dimension_numbers = #tpu.dot_dimension_numbers<[1], [0], [0], [1], [0, 0, 1, 1], [], []>} : vector<256x384xbf16>, vector<384x384xbf16>, vector<256x384xf32> -> vector<256x384xf32>
    %cst_7 = arith.constant dense<0.000000e+00> : vector<256x384xf32>
    %30 = tpu.matmul %24, %25, %cst_7 {dimension_numbers = #tpu.dot_dimension_numbers<[1], [0], [0], [1], [0, 0, 1, 1], [], []>} : vector<256x384xbf16>, vector<384x384xbf16>, vector<256x384xf32> -> vector<256x384xf32>
    %31 = arith.addf %29, %30 : vector<256x384xf32>
    %cst_8 = arith.constant dense<0.000000e+00> : vector<256x384xf32>
    %32 = tpu.matmul %21, %28, %cst_8 {dimension_numbers = #tpu.dot_dimension_numbers<[1], [0], [0], [1], [0, 0, 1, 1], [], []>} : vector<256x384xbf16>, vector<384x384xbf16>, vector<256x384xf32> -> vector<256x384xf32>
    %33 = arith.addf %31, %32 : vector<256x384xf32>
    %c0_9 = arith.constant 0 : index
    %c0_10 = arith.constant 0 : index
    %34 = vector.load %arg5[%c0_9, %c0_10] : memref<256x384xf32, #tpu.memory_space<vmem>>, vector<256x384xf32>
    %35 = arith.addf %34, %33 : vector<256x384xf32>
    %c0_11 = arith.constant 0 : index
    %c0_12 = arith.constant 0 : index
    %36 = vector.load %arg5[%c0_11, %c0_12] : memref<256x384xf32, #tpu.memory_space<vmem>>, vector<256x384xf32>
    tpu.vector_store %arg5[%c0_11, %c0_12], %35 {strides = array<i32>} : memref<256x384xf32, #tpu.memory_space<vmem>>, vector<256x384xf32>,
    return
  }
  func.func @transform_0(%arg0: i32, %arg1: i32, %arg2: i32) -> (i32, i32) {
    %c0_i32 = arith.constant 0 : i32
    return %arg0, %arg2 : i32, i32
  }
  func.func @transform_1(%arg0: i32, %arg1: i32, %arg2: i32) -> (i32, i32) {
    %c0_i32 = arith.constant 0 : i32
    return %arg2, %arg1 : i32, i32
  }
  func.func @transform_2(%arg0: i32, %arg1: i32, %arg2: i32) -> (i32, i32) {
    %c0_i32 = arith.constant 0 : i32
    return %arg0, %arg1 : i32, i32
  }
}

</mosaic_0001>

<llo_original>
// kernel: tpu_custom_call.1
$region0: #{tpu_custom_call.1}
  #allocation0 [shape = 'u32[]', space=smem, size = 0x4, offset = 0x4, fixed_abs, tag = 'smem constant byte address 0x4 - core index']
  #allocation1 [shape = 'u32[72,128]{1,0:T(1,128)}', space=vmem, size = 0x9000, scoped, tag = 'internal scratch']
  %s0 = inlined_call_operand.vmem [shape: f32[200,264], index: 0, kind: input, shape index: {}]
  %s1 = inlined_call_operand.vmem [shape: f32[264,384], index: 1, kind: input, shape index: {}]
  %s2 = inlined_call_operand.hbm [shape: f32[200,384], index: 2, kind: output, shape index: {}]
  %s3 = sld [smem:[#allocation0]]
  $region22: #{tpu_custom_call.1} parent=0
    _
  %s5 = ssub.s32 1, %s3
  %s6 = scalar_select 0, %s5, %s3
  $region1: #{tpu_custom_call.1} parent=0
    #allocation2 [shape = 'u8[393216]{0}', space=vmem, size = 0x60000, scoped, tag = 'output window, operand 0, single buffered']
    #allocation3 [shape = 's32[1]{0}', space=sflag, size = 0x4, scoped, tag = 'scoped memory for tpu_custom_call.1']
    %7 = vsyncpa [#allocation3], 0
    // Predicated region
    $region2: #{tpu_custom_call.1} parent=1 // pred_check
      _
    $region3: #{tpu_custom_call.1} parent=1 // pred_check_branch
      %9 = sbr.rel (0) target = $region5
    $region4: #{tpu_custom_call.1} parent=1 // pred_region
      _
    $region5: #{tpu_custom_call.1} parent=1 // pred_fallthru
      _
    // Predicated region
    $region6: #{tpu_custom_call.1} parent=1 // pred_check
      _
    $region7: #{tpu_custom_call.1} parent=1 // pred_check_branch
      %11 = sbr.rel (0) target = $region9
    $region8: #{tpu_custom_call.1} parent=1 // pred_region
      _
    $region9: #{tpu_custom_call.1} parent=1 // pred_fallthru
      _
    %p12 = scmp.eq.s32.totalorder 0, 0
    // Predicated region
    $region10: #{tpu_custom_call.1} parent=1 // pred_check
      %p13 = pneg %p12
    $region11: #{tpu_custom_call.1} parent=1 // pred_check_branch
      %15 = sbr.rel (%p13) target = $region13
    $region12: #{tpu_custom_call.1} parent=1 // pred_region
      %16 = vst [vmem:[#allocation2] sm:$0xff] 0.0
      %17 = vst [vmem:[#allocation2 + $0x8] sm:$0xff] 0.0
      %18 = vst [vmem:[#allocation2 + $0x10] sm:$0xff] 0.0
      %19 = vst [vmem:[#allocation2 + $0x18] sm:$0xff] 0.0
      %20 = vst [vmem:[#allocation2 + $0x20] sm:$0xff] 0.0
      %21 = vst [vmem:[#allocation2 + $0x28] sm:$0xff] 0.0
      %22 = vst [vmem:[#allocation2 + $0x30] sm:$0xff] 0.0
      %23 = vst [vmem:[#allocation2 + $0x38] sm:$0xff] 0.0
      %24 = vst [vmem:[#allocation2 + $0x40] sm:$0xff] 0.0
      %25 = vst [vmem:[#allocation2 + $0x48] sm:$0xff] 0.0
      %26 = vst [vmem:[#allocation2 + $0x50] sm:$0xff] 0.0
      %27 = vst [vmem:[#allocation2 + $0x58] sm:$0xff] 0.0
      %28 = vst [vmem:[#allocation2 + $0x60] sm:$0xff] 0.0
      %29 = vst [vmem:[#allocation2 + $0x68] sm:$0xff] 0.0
      %30 = vst [vmem:[#allocation2 + $0x70] sm:$0xff] 0.0
      %31 = vst [vmem:[#allocation2 + $0x78] sm:$0xff] 0.0
      %32 = vst [vmem:[#allocation2 + $0x80] sm:$0xff] 0.0
      %33 = vst [vmem:[#allocation2 + $0x88] sm:$0xff] 0.0
      %34 = vst [vmem:[#allocation2 + $0x90] sm:$0xff] 0.0
      %35 = vst [vmem:[#allocation2 + $0x98] sm:$0xff] 0.0
      %36 = vst [vmem:[#allocation2 + $0xa0] sm:$0xff] 0.0
      %37 = vst [vmem:[#allocation2 + $0xa8] sm:$0xff] 0.0
      %38 = vst [vmem:[#allocation2 + $0xb0] sm:$0xff] 0.0
      %39 = vst [vmem:[#allocation2 + $0xb8] sm:$0xff] 0.0
      %40 = vst [vmem:[#allocation2 + $0xc0] sm:$0xff] 0.0
      %41 = vst [vmem:[#allocation2 + $0xc8] sm:$0xff] 0.0
      %42 = vst [vmem:[#allocation2 + $0xd0] sm:$0xff] 0.0
      %43 = vst [vmem:[#allocation2 + $0xd8] sm:$0xff] 0.0
      %44 = vst [vmem:[#allocation2 + $0xe0] sm:$0xff] 0.0
      %45 = vst [vmem:[#allocation2 + $0xe8] sm:$0xff] 0.0
      %46 = vst [vmem:[#allocation2 + $0xf0] sm:$0xff] 0.0
      %47 = vst [vmem:[#allocation2 + $0xf8] sm:$0xff] 0.0
      %48 = vst [vmem:[#allocation2 + $0x100] sm:$0xff] 0.0
      %49 = vst [vmem:[#allocation2 + $0x108] sm:$0xff] 0.0
      %50 = vst [vmem:[#allocation2 + $0x110] sm:$0xff] 0.0
      %51 = vst [vmem:[#allocation2 + $0x118] sm:$0xff] 0.0
      %52 = vst [vmem:[#allocation2 + $0x120] sm:$0xff] 0.0
      %53 = vst [vmem:[#allocation2 + $0x128] sm:$0xff] 0.0
      %54 = vst [vmem:[#allocation2 + $0x130] sm:$0xff] 0.0
      %55 = vst [vmem:[#allocation2 + $0x138] sm:$0xff] 0.0
      %56 = vst [vmem:[#allocation2 + $0x140] sm:$0xff] 0.0
      %57 = vst [vmem:[#allocation2 + $0x148] sm:$0xff] 0.0
      %58 = vst [vmem:[#allocation2 + $0x150] sm:$0xff] 0.0
      %59 = vst [vmem:[#allocation2 + $0x158] sm:$0xff] 0.0
      %60 = vst [vmem:[#allocation2 + $0x160] sm:$0xff] 0.0
      %61 = vst [vmem:[#allocation2 + $0x168] sm:$0xff] 0.0
      %62 = vst [vmem:[#allocation2 + $0x170] sm:$0xff] 0.0
      %63 = vst [vmem:[#allocation2 + $0x178] sm:$0xff] 0.0
      %64 = vst [vmem:[#allocation2 + $0x180] sm:$0xff] 0.0
      %65 = vst [vmem:[#allocation2 + $0x188] sm:$0xff] 0.0
      %66 = vst [vmem:[#allocation2 + $0x190] sm:$0xff] 0.0
      %67 = vst [vmem:[#allocation2 + $0x198] sm:$0xff] 0.0
      %68 = vst [vmem:[#allocation2 + $0x1a0] sm:$0xff] 0.0
      %69 = vst [vmem:[#allocation2 + $0x1a8] sm:$0xff] 0.0
      %70 = vst [vmem:[#allocation2 + $0x1b0] sm:$0xff] 0.0
      %71 = vst [vmem:[#allocation2 + $0x1b8] sm:$0xff] 0.0
      %72 = vst [vmem:[#allocation2 + $0x1c0] sm:$0xff] 0.0
      %73 = vst [vmem:[#allocation2 + $0x1c8] sm:$0xff] 0.0
      %74 = vst [vmem:[#allocation2 + $0x1d0] sm:$0xff] 0.0
      %75 = vst [vmem:[#allocation2 + $0x1d8] sm:$0xff] 0.0
      %76 = vst [vmem:[#allocation2 + $0x1e0] sm:$0xff] 0.0
      %77 = vst [vmem:[#allocation2 + $0x1e8] sm:$0xff] 0.0
      %78 = vst [vmem:[#allocation2 + $0x1f0] sm:$0xff] 0.0
      %79 = vst [vmem:[#allocation2 + $0x1f8] sm:$0xff] 0.0
      %80 = vst [vmem:[#allocation2 + $0x200] sm:$0xff] 0.0
      %81 = vst [vmem:[#allocation2 + $0x208] sm:$0xff] 0.0
      %82 = vst [vmem:[#allocation2 + $0x210] sm:$0xff] 0.0
      %83 = vst [vmem:[#allocation2 + $0x218] sm:$0xff] 0.0
      %84 = vst [vmem:[#allocation2 + $0x220] sm:$0xff] 0.0
      %85 = vst [vmem:[#allocation2 + $0x228] sm:$0xff] 0.0
      %86 = vst [vmem:[#allocation2 + $0x230] sm:$0xff] 0.0
      %87 = vst [vmem:[#allocation2 + $0x238] sm:$0xff] 0.0
      %88 = vst [vmem:[#allocation2 + $0x240] sm:$0xff] 0.0
      %89 = vst [vmem:[#allocation2 + $0x248] sm:$0xff] 0.0
      %90 = vst [vmem:[#allocation2 + $0x250] sm:$0xff] 0.0
      %91 = vst [vmem:[#allocation2 + $0x258] sm:$0xff] 0.0
      %92 = vst [vmem:[#allocation2 + $0x260] sm:$0xff] 0.0
      %93 = vst [vmem:[#allocation2 + $0x268] sm:$0xff] 0.0
      %94 = vst [vmem:[#allocation2 + $0x270] sm:$0xff] 0.0
      %95 = vst [vmem:[#allocation2 + $0x278] sm:$0xff] 0.0
      %96 = vst [vmem:[#allocation2 + $0x280] sm:$0xff] 0.0
      %97 = vst [vmem:[#allocation2 + $0x288] sm:$0xff] 0.0
      %98 = vst [vmem:[#allocation2 + $0x290] sm:$0xff] 0.0
      %99 = vst [vmem:[#allocation2 + $0x298] sm:$0xff] 0.0
      %100 = vst [vmem:[#allocation2 + $0x2a0] sm:$0xff] 0.0
      %101 = vst [vmem:[#allocation2 + $0x2a8] sm:$0xff] 0.0
      %102 = vst [vmem:[#allocation2 + $0x2b0] sm:$0xff] 0.0
      %103 = vst [vmem:[#allocation2 + $0x2b8] sm:$0xff] 0.0
      %104 = vst [vmem:[#allocation2 + $0x2c0] sm:$0xff] 0.0
      %105 = vst [vmem:[#allocation2 + $0x2c8] sm:$0xff] 0.0
      %106 = vst [vmem:[#allocation2 + $0x2d0] sm:$0xff] 0.0
      %107 = vst [vmem:[#allocation2 + $0x2d8] sm:$0xff] 0.0
      %108 = vst [vmem:[#allocation2 + $0x2e0] sm:$0xff] 0.0
      %109 = vst [vmem:[#allocation2 + $0x2e8] sm:$0xff] 0.0
      %110 = vst [vmem:[#allocation2 + $0x2f0] sm:$0xff] 0.0
      %111 = vst [vmem:[#allocation2 + $0x2f8] sm:$0xff] 0.0
    $region13: #{tpu_custom_call.1} parent=1 // pred_fallthru
      _
    %v112 = vld [vmem:[%s0] sm:$0xff]
    %v113 = vld [vmem:[%s0 + $0x8] sm:$0xff]
    %v114 = vld [vmem:[%s0 + $0x10] sm:$0xff]
    %v115 = vld [vmem:[%s0 + $0x18] sm:$0xff]
    %v116 = vld [vmem:[%s0 + $0x20] sm:$0xff]
    %v117 = vld [vmem:[%s0 + $0x28] sm:$0xff]
    %v118 = vld [vmem:[%s0 + $0x30] sm:$0xff]
    %v119 = vld [vmem:[%s0 + $0x38] sm:$0xff]
    %v120 = vld [vmem:[%s0 + $0x40] sm:$0xff]
    %v121 = vld [vmem:[%s0 + $0x48] sm:$0xff]
    %v122 = vld [vmem:[%s0 + $0x50] sm:$0xff]
    %v123 = vld [vmem:[%s0 + $0x58] sm:$0xff]
    %v124 = vld [vmem:[%s0 + $0x60] sm:$0xff]
    %v125 = vld [vmem:[%s0 + $0x68] sm:$0xff]
    %v126 = vld [vmem:[%s0 + $0x70] sm:$0xff]
    %v127 = vld [vmem:[%s0 + $0x78] sm:$0xff]
    %v128 = vld [vmem:[%s0 + $0x80] sm:$0xff]
    %v129 = vld [vmem:[%s0 + $0x88] sm:$0xff]
    %v130 = vld [vmem:[%s0 + $0x90] sm:$0xff]
    %v131 = vld [vmem:[%s0 + $0x98] sm:$0xff]
    %v132 = vld [vmem:[%s0 + $0xa0] sm:$0xff]
    %v133 = vld [vmem:[%s0 + $0xa8] sm:$0xff]
    %v134 = vld [vmem:[%s0 + $0xb0] sm:$0xff]
    %v135 = vld [vmem:[%s0 + $0xb8] sm:$0xff]
    %v136 = vld [vmem:[%s0 + $0xc0] sm:$0xff]
    %v137 = vld [vmem:[%s0 + $0xc8] sm:$0xff]
    %v138 = vld [vmem:[%s0 + $0xd0] sm:$0xff]
    %v139 = vld [vmem:[%s0 + $0xd8] sm:$0xff]
    %v140 = vld [vmem:[%s0 + $0xe0] sm:$0xff]
    %v141 = vld [vmem:[%s0 + $0xe8] sm:$0xff]
    %v142 = vld [vmem:[%s0 + $0xf0] sm:$0xff]
    %v143 = vld [vmem:[%s0 + $0xf8] sm:$0xff]
    %v144 = vld [vmem:[%s0 + $0x100] sm:$0xff]
    %v145 = vld [vmem:[%s0 + $0x108] sm:$0xff]
    %v146 = vld [vmem:[%s0 + $0x110] sm:$0xff]
    %v147 = vld [vmem:[%s0 + $0x118] sm:$0xff]
    %v148 = vld [vmem:[%s0 + $0x120] sm:$0xff]
    %v149 = vld [vmem:[%s0 + $0x128] sm:$0xff]
    %v150 = vld [vmem:[%s0 + $0x130] sm:$0xff]
    %v151 = vld [vmem:[%s0 + $0x138] sm:$0xff]
    %v152 = vld [vmem:[%s0 + $0x140] sm:$0xff]
    %v153 = vld [vmem:[%s0 + $0x148] sm:$0xff]
    %v154 = vld [vmem:[%s0 + $0x150] sm:$0xff]
    %v155 = vld [vmem:[%s0 + $0x158] sm:$0xff]
    %v156 = vld [vmem:[%s0 + $0x160] sm:$0xff]
    %v157 = vld [vmem:[%s0 + $0x168] sm:$0xff]
    %v158 = vld [vmem:[%s0 + $0x170] sm:$0xff]
    %v159 = vld [vmem:[%s0 + $0x178] sm:$0xff]
    %v160 = vld [vmem:[%s0 + $0x180] sm:$0xff]
    %v161 = vld [vmem:[%s0 + $0x188] sm:$0xff]
    %v162 = vld [vmem:[%s0 + $0x190] sm:$0xff]
    %v163 = vld [vmem:[%s0 + $0x198] sm:$0xff]
    %v164 = vld [vmem:[%s0 + $0x1a0] sm:$0xff]
    %v165 = vld [vmem:[%s0 + $0x1a8] sm:$0xff]
    %v166 = vld [vmem:[%s0 + $0x1b0] sm:$0xff]
    %v167 = vld [vmem:[%s0 + $0x1b8] sm:$0xff]
    %v168 = vld [vmem:[%s0 + $0x1c0] sm:$0xff]
    %v169 = vld [vmem:[%s0 + $0x1c8] sm:$0xff]
    %v170 = vld [vmem:[%s0 + $0x1d0] sm:$0xff]
    %v171 = vld [vmem:[%s0 + $0x1d8] sm:$0xff]
    %v172 = vld [vmem:[%s0 + $0x1e0] sm:$0xff]
    %v173 = vld [vmem:[%s0 + $0x1e8] sm:$0xff]
    %v174 = vld [vmem:[%s0 + $0x1f0] sm:$0xff]
    %v175 = vld [vmem:[%s0 + $0x1f8] sm:$0xff]
    %v176 = vld [vmem:[%s0 + $0x200] sm:$0xff]
    %v177 = vld [vmem:[%s0 + $0x208] sm:$0xff]
    %v178 = vld [vmem:[%s0 + $0x210] sm:$0xff]
    %v179 = vld [vmem:[%s0 + $0x218] sm:$0xff]
    %v180 = vld [vmem:[%s0 + $0x220] sm:$0xff]
    %v181 = vld [vmem:[%s0 + $0x228] sm:$0xff]
    %v182 = vld [vmem:[%s0 + $0x230] sm:$0xff]
    %v183 = vld [vmem:[%s0 + $0x238] sm:$0xff]
    %v184 = vld [vmem:[%s0 + $0x240] sm:$0xff]
    %v185 = vld [vmem:[%s0 + $0x248] sm:$0xff]
    %v186 = vld [vmem:[%s0 + $0x250] sm:$0xff]
    %v187 = vld [vmem:[%s0 + $0x258] sm:$0xff]
    %v188 = vld [vmem:[%s0 + $0x260] sm:$0xff]
    %v189 = vld [vmem:[%s0 + $0x268] sm:$0xff]
    %v190 = vld [vmem:[%s0 + $0x270] sm:$0xff]
    %v191 = vld [vmem:[%s0 + $0x278] sm:$0xff]
    %v192 = vld [vmem:[%s0 + $0x280] sm:$0xff]
    %v193 = vld [vmem:[%s0 + $0x288] sm:$0xff]
    %v194 = vld [vmem:[%s0 + $0x290] sm:$0xff]
    %v195 = vld [vmem:[%s0 + $0x298] sm:$0xff]
    %v196 = vld [vmem:[%s0 + $0x2a0] sm:$0xff]
    %v197 = vld [vmem:[%s0 + $0x2a8] sm:$0xff]
    %v198 = vld [vmem:[%s0 + $0x2b0] sm:$0xff]
    %v199 = vld [vmem:[%s0 + $0x2b8] sm:$0xff]
    %v200 = vld [vmem:[%s0 + $0x2c0] sm:$0xff]
    %v201 = vld [vmem:[%s0 + $0x2c8] sm:$0xff]
    %v202 = vld [vmem:[%s0 + $0x2d0] sm:$0xff]
    %v203 = vld [vmem:[%s0 + $0x2d8] sm:$0xff]
    %v204 = vld [vmem:[%s0 + $0x2e0] sm:$0xff]
    %v205 = vld [vmem:[%s0 + $0x2e8] sm:$0xff]
    %v206 = vld [vmem:[%s0 + $0x2f0] sm:$0xff]
    %v207 = vld [vmem:[%s0 + $0x2f8] sm:$0xff]
    %v208 = vld [vmem:[%s1] sm:$0xff]
    %v209 = vld [vmem:[%s1 + $0x8] sm:$0xff]
    %v210 = vld [vmem:[%s1 + $0x10] sm:$0xff]
    %v211 = vld [vmem:[%s1 + $0x18] sm:$0xff]
    %v212 = vld [vmem:[%s1 + $0x20] sm:$0xff]
    %v213 = vld [vmem:[%s1 + $0x28] sm:$0xff]
    %v214 = vld [vmem:[%s1 + $0x30] sm:$0xff]
    %v215 = vld [vmem:[%s1 + $0x38] sm:$0xff]
    %v216 = vld [vmem:[%s1 + $0x40] sm:$0xff]
    %v217 = vld [vmem:[%s1 + $0x48] sm:$0xff]
    %v218 = vld [vmem:[%s1 + $0x50] sm:$0xff]
    %v219 = vld [vmem:[%s1 + $0x58] sm:$0xff]
    %v220 = vld [vmem:[%s1 + $0x60] sm:$0xff]
    %v221 = vld [vmem:[%s1 + $0x68] sm:$0xff]
    %v222 = vld [vmem:[%s1 + $0x70] sm:$0xff]
    %v223 = vld [vmem:[%s1 + $0x78] sm:$0xff]
    %v224 = vld [vmem:[%s1 + $0x80] sm:$0xff]
    %v225 = vld [vmem:[%s1 + $0x88] sm:$0xff]
    %v226 = vld [vmem:[%s1 + $0x90] sm:$0xff]
    %v227 = vld [vmem:[%s1 + $0x98] sm:$0xff]
    %v228 = vld [vmem:[%s1 + $0xa0] sm:$0xff]
    %v229 = vld [vmem:[%s1 + $0xa8] sm:$0xff]
    %v230 = vld [vmem:[%s1 + $0xb0] sm:$0xff]
    %v231 = vld [vmem:[%s1 + $0xb8] sm:$0xff]
    %v232 = vld [vmem:[%s1 + $0xc0] sm:$0xff]
    %v233 = vld [vmem:[%s1 + $0xc8] sm:$0xff]
    %v234 = vld [vmem:[%s1 + $0xd0] sm:$0xff]
    %v235 = vld [vmem:[%s1 + $0xd8] sm:$0xff]
    %v236 = vld [vmem:[%s1 + $0xe0] sm:$0xff]
    %v237 = vld [vmem:[%s1 + $0xe8] sm:$0xff]
    %v238 = vld [vmem:[%s1 + $0xf0] sm:$0xff]
    %v239 = vld [vmem:[%s1 + $0xf8] sm:$0xff]
    %v240 = vld [vmem:[%s1 + $0x100] sm:$0xff]
    %v241 = vld [vmem:[%s1 + $0x108] sm:$0xff]
    %v242 = vld [vmem:[%s1 + $0x110] sm:$0xff]
    %v243 = vld [vmem:[%s1 + $0x118] sm:$0xff]
    %v244 = vld [vmem:[%s1 + $0x120] sm:$0xff]
    %v245 = vld [vmem:[%s1 + $0x128] sm:$0xff]
    %v246 = vld [vmem:[%s1 + $0x130] sm:$0xff]
    %v247 = vld [vmem:[%s1 + $0x138] sm:$0xff]
    %v248 = vld [vmem:[%s1 + $0x140] sm:$0xff]
    %v249 = vld [vmem:[%s1 + $0x148] sm:$0xff]
    %v250 = vld [vmem:[%s1 + $0x150] sm:$0xff]
    %v251 = vld [vmem:[%s1 + $0x158] sm:$0xff]
    %v252 = vld [vmem:[%s1 + $0x160] sm:$0xff]
    %v253 = vld [vmem:[%s1 + $0x168] sm:$0xff]
    %v254 = vld [vmem:[%s1 + $0x170] sm:$0xff]
    %v255 = vld [vmem:[%s1 + $0x178] sm:$0xff]
    %v256 = vld [vmem:[%s1 + $0x180] sm:$0xff]
    %v257 = vld [vmem:[%s1 + $0x188] sm:$0xff]
    %v258 = vld [vmem:[%s1 + $0x190] sm:$0xff]
    %v259 = vld [vmem:[%s1 + $0x198] sm:$0xff]
    %v260 = vld [vmem:[%s1 + $0x1a0] sm:$0xff]
    %v261 = vld [vmem:[%s1 + $0x1a8] sm:$0xff]
    %v262 = vld [vmem:[%s1 + $0x1b0] sm:$0xff]
    %v263 = vld [vmem:[%s1 + $0x1b8] sm:$0xff]
    %v264 = vld [vmem:[%s1 + $0x1c0] sm:$0xff]
    %v265 = vld [vmem:[%s1 + $0x1c8] sm:$0xff]
    %v266 = vld [vmem:[%s1 + $0x1d0] sm:$0xff]
    %v267 = vld [vmem:[%s1 + $0x1d8] sm:$0xff]
    %v268 = vld [vmem:[%s1 + $0x1e0] sm:$0xff]
    %v269 = vld [vmem:[%s1 + $0x1e8] sm:$0xff]
    %v270 = vld [vmem:[%s1 + $0x1f0] sm:$0xff]
    %v271 = vld [vmem:[%s1 + $0x1f8] sm:$0xff]
    %v272 = vld [vmem:[%s1 + $0x200] sm:$0xff]
    %v273 = vld [vmem:[%s1 + $0x208] sm:$0xff]
    %v274 = vld [vmem:[%s1 + $0x210] sm:$0xff]
    %v275 = vld [vmem:[%s1 + $0x218] sm:$0xff]
    %v276 = vld [vmem:[%s1 + $0x220] sm:$0xff]
    %v277 = vld [vmem:[%s1 + $0x228] sm:$0xff]
    %v278 = vld [vmem:[%s1 + $0x230] sm:$0xff]
    %v279 = vld [vmem:[%s1 + $0x238] sm:$0xff]
    %v280 = vld [vmem:[%s1 + $0x240] sm:$0xff]
    %v281 = vld [vmem:[%s1 + $0x248] sm:$0xff]
    %v282 = vld [vmem:[%s1 + $0x250] sm:$0xff]
    %v283 = vld [vmem:[%s1 + $0x258] sm:$0xff]
    %v284 = vld [vmem:[%s1 + $0x260] sm:$0xff]
    %v285 = vld [vmem:[%s1 + $0x268] sm:$0xff]
    %v286 = vld [vmem:[%s1 + $0x270] sm:$0xff]
    %v287 = vld [vmem:[%s1 + $0x278] sm:$0xff]
    %v288 = vld [vmem:[%s1 + $0x280] sm:$0xff]
    %v289 = vld [vmem:[%s1 + $0x288] sm:$0xff]
    %v290 = vld [vmem:[%s1 + $0x290] sm:$0xff]
    %v291 = vld [vmem:[%s1 + $0x298] sm:$0xff]
    %v292 = vld [vmem:[%s1 + $0x2a0] sm:$0xff]
    %v293 = vld [vmem:[%s1 + $0x2a8] sm:$0xff]
    %v294 = vld [vmem:[%s1 + $0x2b0] sm:$0xff]
    %v295 = vld [vmem:[%s1 + $0x2b8] sm:$0xff]
    %v296 = vld [vmem:[%s1 + $0x2c0] sm:$0xff]
    %v297 = vld [vmem:[%s1 + $0x2c8] sm:$0xff]
    %v298 = vld [vmem:[%s1 + $0x2d0] sm:$0xff]
    %v299 = vld [vmem:[%s1 + $0x2d8] sm:$0xff]
    %v300 = vld [vmem:[%s1 + $0x2e0] sm:$0xff]
    %v301 = vld [vmem:[%s1 + $0x2e8] sm:$0xff]
    %v302 = vld [vmem:[%s1 + $0x2f0] sm:$0xff]
    %v303 = vld [vmem:[%s1 + $0x2f8] sm:$0xff]
    %v304 = vld [vmem:[%s1 + $0x300] sm:$0xff]
    %v305 = vld [vmem:[%s1 + $0x308] sm:$0xff]
    %v306 = vld [vmem:[%s1 + $0x310] sm:$0xff]
    %v307 = vld [vmem:[%s1 + $0x318] sm:$0xff]
    %v308 = vld [vmem:[%s1 + $0x320] sm:$0xff]
    %v309 = vld [vmem:[%s1 + $0x328] sm:$0xff]
    %v310 = vld [vmem:[%s1 + $0x330] sm:$0xff]
    %v311 = vld [vmem:[%s1 + $0x338] sm:$0xff]
    %v312 = vld [vmem:[%s1 + $0x340] sm:$0xff]
    %v313 = vld [vmem:[%s1 + $0x348] sm:$0xff]
    %v314 = vld [vmem:[%s1 + $0x350] sm:$0xff]
    %v315 = vld [vmem:[%s1 + $0x358] sm:$0xff]
    %v316 = vld [vmem:[%s1 + $0x360] sm:$0xff]
    %v317 = vld [vmem:[%s1 + $0x368] sm:$0xff]
    %v318 = vld [vmem:[%s1 + $0x370] sm:$0xff]
    %v319 = vld [vmem:[%s1 + $0x378] sm:$0xff]
    %v320 = vld [vmem:[%s1 + $0x380] sm:$0xff]
    %v321 = vld [vmem:[%s1 + $0x388] sm:$0xff]
    %v322 = vld [vmem:[%s1 + $0x390] sm:$0xff]
    %v323 = vld [vmem:[%s1 + $0x398] sm:$0xff]
    %v324 = vld [vmem:[%s1 + $0x3a0] sm:$0xff]
    %v325 = vld [vmem:[%s1 + $0x3a8] sm:$0xff]
    %v326 = vld [vmem:[%s1 + $0x3b0] sm:$0xff]
    %v327 = vld [vmem:[%s1 + $0x3b8] sm:$0xff]
    %v328 = vld [vmem:[%s1 + $0x3c0] sm:$0xff]
    %v329 = vld [vmem:[%s1 + $0x3c8] sm:$0xff]
    %v330 = vld [vmem:[%s1 + $0x3d0] sm:$0xff]
    %v331 = vld [vmem:[%s1 + $0x3d8] sm:$0xff]
    %v332 = vld [vmem:[%s1 + $0x3e0] sm:$0xff]
    %v333 = vld [vmem:[%s1 + $0x3e8] sm:$0xff]
    %v334 = vld [vmem:[%s1 + $0x3f0] sm:$0xff]
    %v335 = vld [vmem:[%s1 + $0x3f8] sm:$0xff]
    %v336 = vld [vmem:[%s1 + $0x400] sm:$0xff]
    %v337 = vld [vmem:[%s1 + $0x408] sm:$0xff]
    %v338 = vld [vmem:[%s1 + $0x410] sm:$0xff]
    %v339 = vld [vmem:[%s1 + $0x418] sm:$0xff]
    %v340 = vld [vmem:[%s1 + $0x420] sm:$0xff]
    %v341 = vld [vmem:[%s1 + $0x428] sm:$0xff]
    %v342 = vld [vmem:[%s1 + $0x430] sm:$0xff]
    %v343 = vld [vmem:[%s1 + $0x438] sm:$0xff]
    %v344 = vld [vmem:[%s1 + $0x440] sm:$0xff]
    %v345 = vld [vmem:[%s1 + $0x448] sm:$0xff]
    %v346 = vld [vmem:[%s1 + $0x450] sm:$0xff]
    %v347 = vld [vmem:[%s1 + $0x458] sm:$0xff]
    %v348 = vld [vmem:[%s1 + $0x460] sm:$0xff]
    %v349 = vld [vmem:[%s1 + $0x468] sm:$0xff]
    %v350 = vld [vmem:[%s1 + $0x470] sm:$0xff]
    %v351 = vld [vmem:[%s1 + $0x478] sm:$0xff]
    %s352 = scalar_select %p12, 264, 384
    %v353 = vlaneseq
    %v354 = vand.u32 %v353, 127
    %v355 = vadd.s32 %v354, 128
    %v356 = vadd.s32 %v354, 256
    %v357 = vlaneseq
    %v358 = vshrl.u32 %v357, 7
    %v359 = vadd.s32 %v358, 8
    %v360 = vadd.s32 %v358, 16
    %v361 = vadd.s32 %v358, 24
    %v362 = vadd.s32 %v358, 32
    %v363 = vadd.s32 %v358, 40
    %v364 = vadd.s32 %v358, 48
    %v365 = vadd.s32 %v358, 56
    %v366 = vadd.s32 %v358, 64
    %v367 = vadd.s32 %v358, 72
    %v368 = vadd.s32 %v358, 80
    %v369 = vadd.s32 %v358, 88
    %v370 = vadd.s32 %v358, 96
    %v371 = vadd.s32 %v358, 104
    %v372 = vadd.s32 %v358, 112
    %v373 = vadd.s32 %v358, 120
    %v374 = vadd.s32 %v358, 128
    %v375 = vadd.s32 %v358, 136
    %v376 = vadd.s32 %v358, 144
    %v377 = vadd.s32 %v358, 152
    %v378 = vadd.s32 %v358, 160
    %v379 = vadd.s32 %v358, 168
    %v380 = vadd.s32 %v358, 176
    %v381 = vadd.s32 %v358, 184
    %v382 = vadd.s32 %v358, 192
    %v383 = vadd.s32 %v358, 200
    %v384 = vadd.s32 %v358, 208
    %v385 = vadd.s32 %v358, 216
    %v386 = vadd.s32 %v358, 224
    %v387 = vadd.s32 %v358, 232
    %v388 = vadd.s32 %v358, 240
    %v389 = vadd.s32 %v358, 248
    %v390 = vadd.s32 %v358, 256
    %v391 = vadd.s32 %v358, 264
    %v392 = vadd.s32 %v358, 272
    %v393 = vadd.s32 %v358, 280
    %v394 = vadd.s32 %v358, 288
    %v395 = vadd.s32 %v358, 296
    %v396 = vadd.s32 %v358, 304
    %v397 = vadd.s32 %v358, 312
    %v398 = vadd.s32 %v358, 320
    %v399 = vadd.s32 %v358, 328
    %v400 = vadd.s32 %v358, 336
    %v401 = vadd.s32 %v358, 344
    %v402 = vadd.s32 %v358, 352
    %v403 = vadd.s32 %v358, 360
    %v404 = vadd.s32 %v358, 368
    %v405 = vadd.s32 %v358, 376
    %v406 = vstv %s352
    %vm407 = vcmp.lt.s32.totalorder %v354, %v406
    %vm408 = vcmp.lt.s32.totalorder %v355, %v406
    %vm409 = vcmp.lt.s32.totalorder %v356, %v406
    %v410 = vsel %vm407, 1, 0
    %v411 = vsel %vm408, 1, 0
    %v412 = vsel %vm409, 1, 0
    %vm413 = vcmp.eq.s32.totalorder %v410, 1
    %vm414 = vcmp.eq.s32.totalorder %v411, 1
    %vm415 = vcmp.eq.s32.totalorder %v412, 1
    %v416 = vsel %vm413, %v112, 0.0
    %v417 = vsel %vm414, %v113, 0.0
    %v418 = vsel %vm415, %v114, 0.0
    %v419 = vsel %vm413, %v115, 0.0
    %v420 = vsel %vm414, %v116, 0.0
    %v421 = vsel %vm415, %v117, 0.0
    %v422 = vsel %vm413, %v118, 0.0
    %v423 = vsel %vm414, %v119, 0.0
    %v424 = vsel %vm415, %v120, 0.0
    %v425 = vsel %vm413, %v121, 0.0
    %v426 = vsel %vm414, %v122, 0.0
    %v427 = vsel %vm415, %v123, 0.0
    %v428 = vsel %vm413, %v124, 0.0
    %v429 = vsel %vm414, %v125, 0.0
    %v430 = vsel %vm415, %v126, 0.0
    %v431 = vsel %vm413, %v127, 0.0
    %v432 = vsel %vm414, %v128, 0.0
    %v433 = vsel %vm415, %v129, 0.0
    %v434 = vsel %vm413, %v130, 0.0
    %v435 = vsel %vm414, %v131, 0.0
    %v436 = vsel %vm415, %v132, 0.0
    %v437 = vsel %vm413, %v133, 0.0
    %v438 = vsel %vm414, %v134, 0.0
    %v439 = vsel %vm415, %v135, 0.0
    %v440 = vsel %vm413, %v136, 0.0
    %v441 = vsel %vm414, %v137, 0.0
    %v442 = vsel %vm415, %v138, 0.0
    %v443 = vsel %vm413, %v139, 0.0
    %v444 = vsel %vm414, %v140, 0.0
    %v445 = vsel %vm415, %v141, 0.0
    %v446 = vsel %vm413, %v142, 0.0
    %v447 = vsel %vm414, %v143, 0.0
    %v448 = vsel %vm415, %v144, 0.0
    %v449 = vsel %vm413, %v145, 0.0
    %v450 = vsel %vm414, %v146, 0.0
    %v451 = vsel %vm415, %v147, 0.0
    %v452 = vsel %vm413, %v148, 0.0
    %v453 = vsel %vm414, %v149, 0.0
    %v454 = vsel %vm415, %v150, 0.0
    %v455 = vsel %vm413, %v151, 0.0
    %v456 = vsel %vm414, %v152, 0.0
    %v457 = vsel %vm415, %v153, 0.0
    %v458 = vsel %vm413, %v154, 0.0
    %v459 = vsel %vm414, %v155, 0.0
    %v460 = vsel %vm415, %v156, 0.0
    %v461 = vsel %vm413, %v157, 0.0
    %v462 = vsel %vm414, %v158, 0.0
    %v463 = vsel %vm415, %v159, 0.0
    %v464 = vsel %vm413, %v160, 0.0
    %v465 = vsel %vm414, %v161, 0.0
    %v466 = vsel %vm415, %v162, 0.0
    %v467 = vsel %vm413, %v163, 0.0
    %v468 = vsel %vm414, %v164, 0.0
    %v469 = vsel %vm415, %v165, 0.0
    %v470 = vsel %vm413, %v166, 0.0
    %v471 = vsel %vm414, %v167, 0.0
    %v472 = vsel %vm415, %v168, 0.0
    %v473 = vsel %vm413, %v169, 0.0
    %v474 = vsel %vm414, %v170, 0.0
    %v475 = vsel %vm415, %v171, 0.0
    %v476 = vsel %vm413, %v172, 0.0
    %v477 = vsel %vm414, %v173, 0.0
    %v478 = vsel %vm415, %v174, 0.0
    %v479 = vsel %vm413, %v175, 0.0
    %v480 = vsel %vm414, %v176, 0.0
    %v481 = vsel %vm415, %v177, 0.0
    %v482 = vsel %vm413, %v178, 0.0
    %v483 = vsel %vm414, %v179, 0.0
    %v484 = vsel %vm415, %v180, 0.0
    %v485 = vsel %vm413, %v181, 0.0
    %v486 = vsel %vm414, %v182, 0.0
    %v487 = vsel %vm415, %v183, 0.0
    %v488 = vsel %vm413, %v184, 0.0
    %v489 = vsel %vm414, %v185, 0.0
    %v490 = vsel %vm415, %v186, 0.0
    %v491 = vsel %vm413, %v187, 0.0
    %v492 = vsel %vm414, %v188, 0.0
    %v493 = vsel %vm415, %v189, 0.0
    %v494 = vsel %vm413, %v190, 0.0
    %v495 = vsel %vm414, %v191, 0.0
    %v496 = vsel %vm415, %v192, 0.0
    %v497 = vsel %vm413, %v193, 0.0
    %v498 = vsel %vm414, %v194, 0.0
    %v499 = vsel %vm415, %v195, 0.0
    %v500 = vsel %vm413, %v196, 0.0
    %v501 = vsel %vm414, %v197, 0.0
    %v502 = vsel %vm415, %v198, 0.0
    %v503 = vsel %vm413, %v199, 0.0
    %v504 = vsel %vm414, %v200, 0.0
    %v505 = vsel %vm415, %v201, 0.0
    %v506 = vsel %vm413, %v202, 0.0
    %v507 = vsel %vm414, %v203, 0.0
    %v508 = vsel %vm415, %v204, 0.0
    %v509 = vsel %vm413, %v205, 0.0
    %v510 = vsel %vm414, %v206, 0.0
    %v511 = vsel %vm415, %v207, 0.0
    %vm512 = vcmp.lt.s32.totalorder %v358, %v406
    %vm513 = vcmp.lt.s32.totalorder %v359, %v406
    %vm514 = vcmp.lt.s32.totalorder %v360, %v406
    %vm515 = vcmp.lt.s32.totalorder %v361, %v406
    %vm516 = vcmp.lt.s32.totalorder %v362, %v406
    %vm517 = vcmp.lt.s32.totalorder %v363, %v406
    %vm518 = vcmp.lt.s32.totalorder %v364, %v406
    %vm519 = vcmp.lt.s32.totalorder %v365, %v406
    %vm520 = vcmp.lt.s32.totalorder %v366, %v406
    %vm521 = vcmp.lt.s32.totalorder %v367, %v406
    %vm522 = vcmp.lt.s32.totalorder %v368, %v406
    %vm523 = vcmp.lt.s32.totalorder %v369, %v406
    %vm524 = vcmp.lt.s32.totalorder %v370, %v406
    %vm525 = vcmp.lt.s32.totalorder %v371, %v406
    %vm526 = vcmp.lt.s32.totalorder %v372, %v406
    %vm527 = vcmp.lt.s32.totalorder %v373, %v406
    %vm528 = vcmp.lt.s32.totalorder %v374, %v406
    %vm529 = vcmp.lt.s32.totalorder %v375, %v406
    %vm530 = vcmp.lt.s32.totalorder %v376, %v406
    %vm531 = vcmp.lt.s32.totalorder %v377, %v406
    %vm532 = vcmp.lt.s32.totalorder %v378, %v406
    %vm533 = vcmp.lt.s32.totalorder %v379, %v406
    %vm534 = vcmp.lt.s32.totalorder %v380, %v406
    %vm535 = vcmp.lt.s32.totalorder %v381, %v406
    %vm536 = vcmp.lt.s32.totalorder %v382, %v406
    %vm537 = vcmp.lt.s32.totalorder %v383, %v406
    %vm538 = vcmp.lt.s32.totalorder %v384, %v406
    %vm539 = vcmp.lt.s32.totalorder %v385, %v406
    %vm540 = vcmp.lt.s32.totalorder %v386, %v406
    %vm541 = vcmp.lt.s32.totalorder %v387, %v406
    %vm542 = vcmp.lt.s32.totalorder %v388, %v406
    %vm543 = vcmp.lt.s32.totalorder %v389, %v406
    %vm544 = vcmp.lt.s32.totalorder %v390, %v406
    %vm545 = vcmp.lt.s32.totalorder %v391, %v406
    %vm546 = vcmp.lt.s32.totalorder %v392, %v406
    %vm547 = vcmp.lt.s32.totalorder %v393, %v406
    %vm548 = vcmp.lt.s32.totalorder %v394, %v406
    %vm549 = vcmp.lt.s32.totalorder %v395, %v406
    %vm550 = vcmp.lt.s32.totalorder %v396, %v406
    %vm551 = vcmp.lt.s32.totalorder %v397, %v406
    %vm552 = vcmp.lt.s32.totalorder %v398, %v406
    %vm553 = vcmp.lt.s32.totalorder %v399, %v406
    %vm554 = vcmp.lt.s32.totalorder %v400, %v406
    %vm555 = vcmp.lt.s32.totalorder %v401, %v406
    %vm556 = vcmp.lt.s32.totalorder %v402, %v406
    %vm557 = vcmp.lt.s32.totalorder %v403, %v406
    %vm558 = vcmp.lt.s32.totalorder %v404, %v406
    %vm559 = vcmp.lt.s32.totalorder %v405, %v406
    %v560 = vsel %vm512, 1, 0
    %v561 = vsel %vm513, 1, 0
    %v562 = vsel %vm514, 1, 0
    %v563 = vsel %vm515, 1, 0
    %v564 = vsel %vm516, 1, 0
    %v565 = vsel %vm517, 1, 0
    %v566 = vsel %vm518, 1, 0
    %v567 = vsel %vm519, 1, 0
    %v568 = vsel %vm520, 1, 0
    %v569 = vsel %vm521, 1, 0
    %v570 = vsel %vm522, 1, 0
    %v571 = vsel %vm523, 1, 0
    %v572 = vsel %vm524, 1, 0
    %v573 = vsel %vm525, 1, 0
    %v574 = vsel %vm526, 1, 0
    %v575 = vsel %vm527, 1, 0
    %v576 = vsel %vm528, 1, 0
    %v577 = vsel %vm529, 1, 0
    %v578 = vsel %vm530, 1, 0
    %v579 = vsel %vm531, 1, 0
    %v580 = vsel %vm532, 1, 0
    %v581 = vsel %vm533, 1, 0
    %v582 = vsel %vm534, 1, 0
    %v583 = vsel %vm535, 1, 0
    %v584 = vsel %vm536, 1, 0
    %v585 = vsel %vm537, 1, 0
    %v586 = vsel %vm538, 1, 0
    %v587 = vsel %vm539, 1, 0
    %v588 = vsel %vm540, 1, 0
    %v589 = vsel %vm541, 1, 0
    %v590 = vsel %vm542, 1, 0
    %v591 = vsel %vm543, 1, 0
    %v592 = vsel %vm544, 1, 0
    %v593 = vsel %vm545, 1, 0
    %v594 = vsel %vm546, 1, 0
    %v595 = vsel %vm547, 1, 0
    %v596 = vsel %vm548, 1, 0
    %v597 = vsel %vm549, 1, 0
    %v598 = vsel %vm550, 1, 0
    %v599 = vsel %vm551, 1, 0
    %v600 = vsel %vm552, 1, 0
    %v601 = vsel %vm553, 1, 0
    %v602 = vsel %vm554, 1, 0
    %v603 = vsel %vm555, 1, 0
    %v604 = vsel %vm556, 1, 0
    %v605 = vsel %vm557, 1, 0
    %v606 = vsel %vm558, 1, 0
    %v607 = vsel %vm559, 1, 0
    %vm608 = vcmp.eq.s32.totalorder %v560, 1
    %vm609 = vcmp.eq.s32.totalorder %v561, 1
    %vm610 = vcmp.eq.s32.totalorder %v562, 1
    %vm611 = vcmp.eq.s32.totalorder %v563, 1
    %vm612 = vcmp.eq.s32.totalorder %v564, 1
    %vm613 = vcmp.eq.s32.totalorder %v565, 1
    %vm614 = vcmp.eq.s32.totalorder %v566, 1
    %vm615 = vcmp.eq.s32.totalorder %v567, 1
    %vm616 = vcmp.eq.s32.totalorder %v568, 1
    %vm617 = vcmp.eq.s32.totalorder %v569, 1
    %vm618 = vcmp.eq.s32.totalorder %v570, 1
    %vm619 = vcmp.eq.s32.totalorder %v571, 1
    %vm620 = vcmp.eq.s32.totalorder %v572, 1
    %vm621 = vcmp.eq.s32.totalorder %v573, 1
    %vm622 = vcmp.eq.s32.totalorder %v574, 1
    %vm623 = vcmp.eq.s32.totalorder %v575, 1
    %vm624 = vcmp.eq.s32.totalorder %v576, 1
    %vm625 = vcmp.eq.s32.totalorder %v577, 1
    %vm626 = vcmp.eq.s32.totalorder %v578, 1
    %vm627 = vcmp.eq.s32.totalorder %v579, 1
    %vm628 = vcmp.eq.s32.totalorder %v580, 1
    %vm629 = vcmp.eq.s32.totalorder %v581, 1
    %vm630 = vcmp.eq.s32.totalorder %v582, 1
    %vm631 = vcmp.eq.s32.totalorder %v583, 1
    %vm632 = vcmp.eq.s32.totalorder %v584, 1
    %vm633 = vcmp.eq.s32.totalorder %v585, 1
    %vm634 = vcmp.eq.s32.totalorder %v586, 1
    %vm635 = vcmp.eq.s32.totalorder %v587, 1
    %vm636 = vcmp.eq.s32.totalorder %v588, 1
    %vm637 = vcmp.eq.s32.totalorder %v589, 1
    %vm638 = vcmp.eq.s32.totalorder %v590, 1
    %vm639 = vcmp.eq.s32.totalorder %v591, 1
    %vm640 = vcmp.eq.s32.totalorder %v592, 1
    %vm641 = vcmp.eq.s32.totalorder %v593, 1
    %vm642 = vcmp.eq.s32.totalorder %v594, 1
    %vm643 = vcmp.eq.s32.totalorder %v595, 1
    %vm644 = vcmp.eq.s32.totalorder %v596, 1
    %vm645 = vcmp.eq.s32.totalorder %v597, 1
    %vm646 = vcmp.eq.s32.totalorder %v598, 1
    %vm647 = vcmp.eq.s32.totalorder %v599, 1
    %vm648 = vcmp.eq.s32.totalorder %v600, 1
    %vm649 = vcmp.eq.s32.totalorder %v601, 1
    %vm650 = vcmp.eq.s32.totalorder %v602, 1
    %vm651 = vcmp.eq.s32.totalorder %v603, 1
    %vm652 = vcmp.eq.s32.totalorder %v604, 1
    %vm653 = vcmp.eq.s32.totalorder %v605, 1
    %vm654 = vcmp.eq.s32.totalorder %v606, 1
    %vm655 = vcmp.eq.s32.totalorder %v607, 1
    %v656 = vsel %vm608, %v208, 0.0
    %v657 = vsel %vm608, %v209, 0.0
    %v658 = vsel %vm608, %v210, 0.0
    %v659 = vsel %vm609, %v211, 0.0
    %v660 = vsel %vm609, %v212, 0.0
    %v661 = vsel %vm609, %v213, 0.0
    %v662 = vsel %vm610, %v214, 0.0
    %v663 = vsel %vm610, %v215, 0.0
    %v664 = vsel %vm610, %v216, 0.0
    %v665 = vsel %vm611, %v217, 0.0
    %v666 = vsel %vm611, %v218, 0.0
    %v667 = vsel %vm611, %v219, 0.0
    %v668 = vsel %vm612, %v220, 0.0
    %v669 = vsel %vm612, %v221, 0.0
    %v670 = vsel %vm612, %v222, 0.0
    %v671 = vsel %vm613, %v223, 0.0
    %v672 = vsel %vm613, %v224, 0.0
    %v673 = vsel %vm613, %v225, 0.0
    %v674 = vsel %vm614, %v226, 0.0
    %v675 = vsel %vm614, %v227, 0.0
    %v676 = vsel %vm614, %v228, 0.0
    %v677 = vsel %vm615, %v229, 0.0
    %v678 = vsel %vm615, %v230, 0.0
    %v679 = vsel %vm615, %v231, 0.0
    %v680 = vsel %vm616, %v232, 0.0
    %v681 = vsel %vm616, %v233, 0.0
    %v682 = vsel %vm616, %v234, 0.0
    %v683 = vsel %vm617, %v235, 0.0
    %v684 = vsel %vm617, %v236, 0.0
    %v685 = vsel %vm617, %v237, 0.0
    %v686 = vsel %vm618, %v238, 0.0
    %v687 = vsel %vm618, %v239, 0.0
    %v688 = vsel %vm618, %v240, 0.0
    %v689 = vsel %vm619, %v241, 0.0
    %v690 = vsel %vm619, %v242, 0.0
    %v691 = vsel %vm619, %v243, 0.0
    %v692 = vsel %vm620, %v244, 0.0
    %v693 = vsel %vm620, %v245, 0.0
    %v694 = vsel %vm620, %v246, 0.0
    %v695 = vsel %vm621, %v247, 0.0
    %v696 = vsel %vm621, %v248, 0.0
    %v697 = vsel %vm621, %v249, 0.0
    %v698 = vsel %vm622, %v250, 0.0
    %v699 = vsel %vm622, %v251, 0.0
    %v700 = vsel %vm622, %v252, 0.0
    %v701 = vsel %vm623, %v253, 0.0
    %v702 = vsel %vm623, %v254, 0.0
    %v703 = vsel %vm623, %v255, 0.0
    %v704 = vsel %vm624, %v256, 0.0
    %v705 = vsel %vm624, %v257, 0.0
    %v706 = vsel %vm624, %v258, 0.0
    %v707 = vsel %vm625, %v259, 0.0
    %v708 = vsel %vm625, %v260, 0.0
    %v709 = vsel %vm625, %v261, 0.0
    %v710 = vsel %vm626, %v262, 0.0
    %v711 = vsel %vm626, %v263, 0.0
    %v712 = vsel %vm626, %v264, 0.0
    %v713 = vsel %vm627, %v265, 0.0
    %v714 = vsel %vm627, %v266, 0.0
    %v715 = vsel %vm627, %v267, 0.0
    %v716 = vsel %vm628, %v268, 0.0
    %v717 = vsel %vm628, %v269, 0.0
    %v718 = vsel %vm628, %v270, 0.0
    %v719 = vsel %vm629, %v271, 0.0
    %v720 = vsel %vm629, %v272, 0.0
    %v721 = vsel %vm629, %v273, 0.0
    %v722 = vsel %vm630, %v274, 0.0
    %v723 = vsel %vm630, %v275, 0.0
    %v724 = vsel %vm630, %v276, 0.0
    %v725 = vsel %vm631, %v277, 0.0
    %v726 = vsel %vm631, %v278, 0.0
    %v727 = vsel %vm631, %v279, 0.0
    %v728 = vsel %vm632, %v280, 0.0
    %v729 = vsel %vm632, %v281, 0.0
    %v730 = vsel %vm632, %v282, 0.0
    %v731 = vsel %vm633, %v283, 0.0
    %v732 = vsel %vm633, %v284, 0.0
    %v733 = vsel %vm633, %v285, 0.0
    %v734 = vsel %vm634, %v286, 0.0
    %v735 = vsel %vm634, %v287, 0.0
    %v736 = vsel %vm634, %v288, 0.0
    %v737 = vsel %vm635, %v289, 0.0
    %v738 = vsel %vm635, %v290, 0.0
    %v739 = vsel %vm635, %v291, 0.0
    %v740 = vsel %vm636, %v292, 0.0
    %v741 = vsel %vm636, %v293, 0.0
    %v742 = vsel %vm636, %v294, 0.0
    %v743 = vsel %vm637, %v295, 0.0
    %v744 = vsel %vm637, %v296, 0.0
    %v745 = vsel %vm637, %v297, 0.0
    %v746 = vsel %vm638, %v298, 0.0
    %v747 = vsel %vm638, %v299, 0.0
    %v748 = vsel %vm638, %v300, 0.0
    %v749 = vsel %vm639, %v301, 0.0
    %v750 = vsel %vm639, %v302, 0.0
    %v751 = vsel %vm639, %v303, 0.0
    %v752 = vsel %vm640, %v304, 0.0
    %v753 = vsel %vm640, %v305, 0.0
    %v754 = vsel %vm640, %v306, 0.0
    %v755 = vsel %vm641, %v307, 0.0
    %v756 = vsel %vm641, %v308, 0.0
    %v757 = vsel %vm641, %v309, 0.0
    %v758 = vsel %vm642, %v310, 0.0
    %v759 = vsel %vm642, %v311, 0.0
    %v760 = vsel %vm642, %v312, 0.0
    %v761 = vsel %vm643, %v313, 0.0
    %v762 = vsel %vm643, %v314, 0.0
    %v763 = vsel %vm643, %v315, 0.0
    %v764 = vsel %vm644, %v316, 0.0
    %v765 = vsel %vm644, %v317, 0.0
    %v766 = vsel %vm644, %v318, 0.0
    %v767 = vsel %vm645, %v319, 0.0
    %v768 = vsel %vm645, %v320, 0.0
    %v769 = vsel %vm645, %v321, 0.0
    %v770 = vsel %vm646, %v322, 0.0
    %v771 = vsel %vm646, %v323, 0.0
    %v772 = vsel %vm646, %v324, 0.0
    %v773 = vsel %vm647, %v325, 0.0
    %v774 = vsel %vm647, %v326, 0.0
    %v775 = vsel %vm647, %v327, 0.0
    %v776 = vsel %vm648, %v328, 0.0
    %v777 = vsel %vm648, %v329, 0.0
    %v778 = vsel %vm648, %v330, 0.0
    %v779 = vsel %vm649, %v331, 0.0
    %v780 = vsel %vm649, %v332, 0.0
    %v781 = vsel %vm649, %v333, 0.0
    %v782 = vsel %vm650, %v334, 0.0
    %v783 = vsel %vm650, %v335, 0.0
    %v784 = vsel %vm650, %v336, 0.0
    %v785 = vsel %vm651, %v337, 0.0
    %v786 = vsel %vm651, %v338, 0.0
    %v787 = vsel %vm651, %v339, 0.0
    %v788 = vsel %vm652, %v340, 0.0
    %v789 = vsel %vm652, %v341, 0.0
    %v790 = vsel %vm652, %v342, 0.0
    %v791 = vsel %vm653, %v343, 0.0
    %v792 = vsel %vm653, %v344, 0.0
    %v793 = vsel %vm653, %v345, 0.0
    %v794 = vsel %vm654, %v346, 0.0
    %v795 = vsel %vm654, %v347, 0.0
    %v796 = vsel %vm654, %v348, 0.0
    %v797 = vsel %vm655, %v349, 0.0
    %v798 = vsel %vm655, %v350, 0.0
    %v799 = vsel %vm655, %v351, 0.0
    %v800 = vpack.c.bf16 %v417, %v416
    %v801 = vpack.c.bf16 %v418, %v418
    %v802 = vpack.c.bf16 %v420, %v419
    %v803 = vpack.c.bf16 %v421, %v421
    %v804 = vpack.c.bf16 %v423, %v422
    %v805 = vpack.c.bf16 %v424, %v424
    %v806 = vpack.c.bf16 %v426, %v425
    %v807 = vpack.c.bf16 %v427, %v427
    %v808 = vpack.c.bf16 %v429, %v428
    %v809 = vpack.c.bf16 %v430, %v430
    %v810 = vpack.c.bf16 %v432, %v431
    %v811 = vpack.c.bf16 %v433, %v433
    %v812 = vpack.c.bf16 %v435, %v434
    %v813 = vpack.c.bf16 %v436, %v436
    %v814 = vpack.c.bf16 %v438, %v437
    %v815 = vpack.c.bf16 %v439, %v439
    %v816 = vpack.c.bf16 %v441, %v440
    %v817 = vpack.c.bf16 %v442, %v442
    %v818 = vpack.c.bf16 %v444, %v443
    %v819 = vpack.c.bf16 %v445, %v445
    %v820 = vpack.c.bf16 %v447, %v446
    %v821 = vpack.c.bf16 %v448, %v448
    %v822 = vpack.c.bf16 %v450, %v449
    %v823 = vpack.c.bf16 %v451, %v451
    %v824 = vpack.c.bf16 %v453, %v452
    %v825 = vpack.c.bf16 %v454, %v454
    %v826 = vpack.c.bf16 %v456, %v455
    %v827 = vpack.c.bf16 %v457, %v457
    %v828 = vpack.c.bf16 %v459, %v458
    %v829 = vpack.c.bf16 %v460, %v460
    %v830 = vpack.c.bf16 %v462, %v461
    %v831 = vpack.c.bf16 %v463, %v463
    %v832 = vpack.c.bf16 %v465, %v464
    %v833 = vpack.c.bf16 %v466, %v466
    %v834 = vpack.c.bf16 %v468, %v467
    %v835 = vpack.c.bf16 %v469, %v469
    %v836 = vpack.c.bf16 %v471, %v470
    %v837 = vpack.c.bf16 %v472, %v472
    %v838 = vpack.c.bf16 %v474, %v473
    %v839 = vpack.c.bf16 %v475, %v475
    %v840 = vpack.c.bf16 %v477, %v476
    %v841 = vpack.c.bf16 %v478, %v478
    %v842 = vpack.c.bf16 %v480, %v479
    %v843 = vpack.c.bf16 %v481, %v481
    %v844 = vpack.c.bf16 %v483, %v482
    %v845 = vpack.c.bf16 %v484, %v484
    %v846 = vpack.c.bf16 %v486, %v485
    %v847 = vpack.c.bf16 %v487, %v487
    %v848 = vpack.c.bf16 %v489, %v488
    %v849 = vpack.c.bf16 %v490, %v490
    %v850 = vpack.c.bf16 %v492, %v491
    %v851 = vpack.c.bf16 %v493, %v493
    %v852 = vpack.c.bf16 %v495, %v494
    %v853 = vpack.c.bf16 %v496, %v496
    %v854 = vpack.c.bf16 %v498, %v497
    %v855 = vpack.c.bf16 %v499, %v499
    %v856 = vpack.c.bf16 %v501, %v500
    %v857 = vpack.c.bf16 %v502, %v502
    %v858 = vpack.c.bf16 %v504, %v503
    %v859 = vpack.c.bf16 %v505, %v505
    %v860 = vpack.c.bf16 %v507, %v506
    %v861 = vpack.c.bf16 %v508, %v508
    %v862 = vpack.c.bf16 %v510, %v509
    %v863 = vpack.c.bf16 %v511, %v511
    %v864 = vunpack.c.l.bf16 %v800
    %v865 = vunpack.c.h.bf16 %v800
    %v866 = vunpack.c.l.bf16 %v801
    %v867 = vunpack.c.l.bf16 %v802
    %v868 = vunpack.c.h.bf16 %v802
    %v869 = vunpack.c.l.bf16 %v803
    %v870 = vunpack.c.l.bf16 %v804
    %v871 = vunpack.c.h.bf16 %v804
    %v872 = vunpack.c.l.bf16 %v805
    %v873 = vunpack.c.l.bf16 %v806
    %v874 = vunpack.c.h.bf16 %v806
    %v875 = vunpack.c.l.bf16 %v807
    %v876 = vunpack.c.l.bf16 %v808
    %v877 = vunpack.c.h.bf16 %v808
    %v878 = vunpack.c.l.bf16 %v809
    %v879 = vunpack.c.l.bf16 %v810
    %v880 = vunpack.c.h.bf16 %v810
    %v881 = vunpack.c.l.bf16 %v811
    %v882 = vunpack.c.l.bf16 %v812
    %v883 = vunpack.c.h.bf16 %v812
    %v884 = vunpack.c.l.bf16 %v813
    %v885 = vunpack.c.l.bf16 %v814
    %v886 = vunpack.c.h.bf16 %v814
    %v887 = vunpack.c.l.bf16 %v815
    %v888 = vunpack.c.l.bf16 %v816
    %v889 = vunpack.c.h.bf16 %v816
    %v890 = vunpack.c.l.bf16 %v817
    %v891 = vunpack.c.l.bf16 %v818
    %v892 = vunpack.c.h.bf16 %v818
    %v893 = vunpack.c.l.bf16 %v819
    %v894 = vunpack.c.l.bf16 %v820
    %v895 = vunpack.c.h.bf16 %v820
    %v896 = vunpack.c.l.bf16 %v821
    %v897 = vunpack.c.l.bf16 %v822
    %v898 = vunpack.c.h.bf16 %v822
    %v899 = vunpack.c.l.bf16 %v823
    %v900 = vunpack.c.l.bf16 %v824
    %v901 = vunpack.c.h.bf16 %v824
    %v902 = vunpack.c.l.bf16 %v825
    %v903 = vunpack.c.l.bf16 %v826
    %v904 = vunpack.c.h.bf16 %v826
    %v905 = vunpack.c.l.bf16 %v827
    %v906 = vunpack.c.l.bf16 %v828
    %v907 = vunpack.c.h.bf16 %v828
    %v908 = vunpack.c.l.bf16 %v829
    %v909 = vunpack.c.l.bf16 %v830
    %v910 = vunpack.c.h.bf16 %v830
    %v911 = vunpack.c.l.bf16 %v831
    %v912 = vunpack.c.l.bf16 %v832
    %v913 = vunpack.c.h.bf16 %v832
    %v914 = vunpack.c.l.bf16 %v833
    %v915 = vunpack.c.l.bf16 %v834
    %v916 = vunpack.c.h.bf16 %v834
    %v917 = vunpack.c.l.bf16 %v835
    %v918 = vunpack.c.l.bf16 %v836
    %v919 = vunpack.c.h.bf16 %v836
    %v920 = vunpack.c.l.bf16 %v837
    %v921 = vunpack.c.l.bf16 %v838
    %v922 = vunpack.c.h.bf16 %v838
    %v923 = vunpack.c.l.bf16 %v839
    %v924 = vunpack.c.l.bf16 %v840
    %v925 = vunpack.c.h.bf16 %v840
    %v926 = vunpack.c.l.bf16 %v841
    %v927 = vunpack.c.l.bf16 %v842
    %v928 = vunpack.c.h.bf16 %v842
    %v929 = vunpack.c.l.bf16 %v843
    %v930 = vunpack.c.l.bf16 %v844
    %v931 = vunpack.c.h.bf16 %v844
    %v932 = vunpack.c.l.bf16 %v845
    %v933 = vunpack.c.l.bf16 %v846
    %v934 = vunpack.c.h.bf16 %v846
    %v935 = vunpack.c.l.bf16 %v847
    %v936 = vunpack.c.l.bf16 %v848
    %v937 = vunpack.c.h.bf16 %v848
    %v938 = vunpack.c.l.bf16 %v849
    %v939 = vunpack.c.l.bf16 %v850
    %v940 = vunpack.c.h.bf16 %v850
    %v941 = vunpack.c.l.bf16 %v851
    %v942 = vunpack.c.l.bf16 %v852
    %v943 = vunpack.c.h.bf16 %v852
    %v944 = vunpack.c.l.bf16 %v853
    %v945 = vunpack.c.l.bf16 %v854
    %v946 = vunpack.c.h.bf16 %v854
    %v947 = vunpack.c.l.bf16 %v855
    %v948 = vunpack.c.l.bf16 %v856
    %v949 = vunpack.c.h.bf16 %v856
    %v950 = vunpack.c.l.bf16 %v857
    %v951 = vunpack.c.l.bf16 %v858
    %v952 = vunpack.c.h.bf16 %v858
    %v953 = vunpack.c.l.bf16 %v859
    %v954 = vunpack.c.l.bf16 %v860
    %v955 = vunpack.c.h.bf16 %v860
    %v956 = vunpack.c.l.bf16 %v861
    %v957 = vunpack.c.l.bf16 %v862
    %v958 = vunpack.c.h.bf16 %v862
    %v959 = vunpack.c.l.bf16 %v863
    %v960 = vsub.f32 %v416, %v864
    %v961 = vsub.f32 %v417, %v865
    %v962 = vsub.f32 %v418, %v866
    %v963 = vsub.f32 %v419, %v867
    %v964 = vsub.f32 %v420, %v868
    %v965 = vsub.f32 %v421, %v869
    %v966 = vsub.f32 %v422, %v870
    %v967 = vsub.f32 %v423, %v871
    %v968 = vsub.f32 %v424, %v872
    %v969 = vsub.f32 %v425, %v873
    %v970 = vsub.f32 %v426, %v874
    %v971 = vsub.f32 %v427, %v875
    %v972 = vsub.f32 %v428, %v876
    %v973 = vsub.f32 %v429, %v877
    %v974 = vsub.f32 %v430, %v878
    %v975 = vsub.f32 %v431, %v879
    %v976 = vsub.f32 %v432, %v880
    %v977 = vsub.f32 %v433, %v881
    %v978 = vsub.f32 %v434, %v882
    %v979 = vsub.f32 %v435, %v883
    %v980 = vsub.f32 %v436, %v884
    %v981 = vsub.f32 %v437, %v885
    %v982 = vsub.f32 %v438, %v886
    %v983 = vsub.f32 %v439, %v887
    %v984 = vsub.f32 %v440, %v888
    %v985 = vsub.f32 %v441, %v889
    %v986 = vsub.f32 %v442, %v890
    %v987 = vsub.f32 %v443, %v891
    %v988 = vsub.f32 %v444, %v892
    %v989 = vsub.f32 %v445, %v893
    %v990 = vsub.f32 %v446, %v894
    %v991 = vsub.f32 %v447, %v895
    %v992 = vsub.f32 %v448, %v896
    %v993 = vsub.f32 %v449, %v897
    %v994 = vsub.f32 %v450, %v898
    %v995 = vsub.f32 %v451, %v899
    %v996 = vsub.f32 %v452, %v900
    %v997 = vsub.f32 %v453, %v901
    %v998 = vsub.f32 %v454, %v902
    %v999 = vsub.f32 %v455, %v903
    %v1000 = vsub.f32 %v456, %v904
    %v1001 = vsub.f32 %v457, %v905
    %v1002 = vsub.f32 %v458, %v906
    %v1003 = vsub.f32 %v459, %v907
    %v1004 = vsub.f32 %v460, %v908
    %v1005 = vsub.f32 %v461, %v909
    %v1006 = vsub.f32 %v462, %v910
    %v1007 = vsub.f32 %v463, %v911
    %v1008 = vsub.f32 %v464, %v912
    %v1009 = vsub.f32 %v465, %v913
    %v1010 = vsub.f32 %v466, %v914
    %v1011 = vsub.f32 %v467, %v915
    %v1012 = vsub.f32 %v468, %v916
    %v1013 = vsub.f32 %v469, %v917
    %v1014 = vsub.f32 %v470, %v918
    %v1015 = vsub.f32 %v471, %v919
    %v1016 = vsub.f32 %v472, %v920
    %v1017 = vsub.f32 %v473, %v921
    %v1018 = vsub.f32 %v474, %v922
    %v1019 = vsub.f32 %v475, %v923
    %v1020 = vsub.f32 %v476, %v924
    %v1021 = vsub.f32 %v477, %v925
    %v1022 = vsub.f32 %v478, %v926
    %v1023 = vsub.f32 %v479, %v927
    %v1024 = vsub.f32 %v480, %v928
    %v1025 = vsub.f32 %v481, %v929
    %v1026 = vsub.f32 %v482, %v930
    %v1027 = vsub.f32 %v483, %v931
    %v1028 = vsub.f32 %v484, %v932
    %v1029 = vsub.f32 %v485, %v933
    %v1030 = vsub.f32 %v486, %v934
    %v1031 = vsub.f32 %v487, %v935
    %v1032 = vsub.f32 %v488, %v936
    %v1033 = vsub.f32 %v489, %v937
    %v1034 = vsub.f32 %v490, %v938
    %v1035 = vsub.f32 %v491, %v939
    %v1036 = vsub.f32 %v492, %v940
    %v1037 = vsub.f32 %v493, %v941
    %v1038 = vsub.f32 %v494, %v942
    %v1039 = vsub.f32 %v495, %v943
    %v1040 = vsub.f32 %v496, %v944
    %v1041 = vsub.f32 %v497, %v945
    %v1042 = vsub.f32 %v498, %v946
    %v1043 = vsub.f32 %v499, %v947
    %v1044 = vsub.f32 %v500, %v948
    %v1045 = vsub.f32 %v501, %v949
    %v1046 = vsub.f32 %v502, %v950
    %v1047 = vsub.f32 %v503, %v951
    %v1048 = vsub.f32 %v504, %v952
    %v1049 = vsub.f32 %v505, %v953
    %v1050 = vsub.f32 %v506, %v954
    %v1051 = vsub.f32 %v507, %v955
    %v1052 = vsub.f32 %v508, %v956
    %v1053 = vsub.f32 %v509, %v957
    %v1054 = vsub.f32 %v510, %v958
    %v1055 = vsub.f32 %v511, %v959
    %v1056 = vpack.c.bf16 %v963, %v960
    %v1057 = vpack.c.bf16 %v964, %v961
    %v1058 = vpack.c.bf16 %v965, %v962
    %v1059 = vpack.c.bf16 %v969, %v966
    %v1060 = vpack.c.bf16 %v970, %v967
    %v1061 = vpack.c.bf16 %v971, %v968
    %v1062 = vpack.c.bf16 %v975, %v972
    %v1063 = vpack.c.bf16 %v976, %v973
    %v1064 = vpack.c.bf16 %v977, %v974
    %v1065 = vpack.c.bf16 %v981, %v978
    %v1066 = vpack.c.bf16 %v982, %v979
    %v1067 = vpack.c.bf16 %v983, %v980
    %v1068 = vpack.c.bf16 %v987, %v984
    %v1069 = vpack.c.bf16 %v988, %v985
    %v1070 = vpack.c.bf16 %v989, %v986
    %v1071 = vpack.c.bf16 %v993, %v990
    %v1072 = vpack.c.bf16 %v994, %v991
    %v1073 = vpack.c.bf16 %v995, %v992
    %v1074 = vpack.c.bf16 %v999, %v996
    %v1075 = vpack.c.bf16 %v1000, %v997
    %v1076 = vpack.c.bf16 %v1001, %v998
    %v1077 = vpack.c.bf16 %v1005, %v1002
    %v1078 = vpack.c.bf16 %v1006, %v1003
    %v1079 = vpack.c.bf16 %v1007, %v1004
    %v1080 = vpack.c.bf16 %v1011, %v1008
    %v1081 = vpack.c.bf16 %v1012, %v1009
    %v1082 = vpack.c.bf16 %v1013, %v1010
    %v1083 = vpack.c.bf16 %v1017, %v1014
    %v1084 = vpack.c.bf16 %v1018, %v1015
    %v1085 = vpack.c.bf16 %v1019, %v1016
    %v1086 = vpack.c.bf16 %v1023, %v1020
    %v1087 = vpack.c.bf16 %v1024, %v1021
    %v1088 = vpack.c.bf16 %v1025, %v1022
    %v1089 = vpack.c.bf16 %v1029, %v1026
    %v1090 = vpack.c.bf16 %v1030, %v1027
    %v1091 = vpack.c.bf16 %v1031, %v1028
    %v1092 = vpack.c.bf16 %v1035, %v1032
    %v1093 = vpack.c.bf16 %v1036, %v1033
    %v1094 = vpack.c.bf16 %v1037, %v1034
    %v1095 = vpack.c.bf16 %v1041, %v1038
    %v1096 = vpack.c.bf16 %v1042, %v1039
    %v1097 = vpack.c.bf16 %v1043, %v1040
    %v1098 = vpack.c.bf16 %v1047, %v1044
    %v1099 = vpack.c.bf16 %v1048, %v1045
    %v1100 = vpack.c.bf16 %v1049, %v1046
    %v1101 = vpack.c.bf16 %v1053, %v1050
    %v1102 = vpack.c.bf16 %v1054, %v1051
    %v1103 = vpack.c.bf16 %v1055, %v1052
    %v1104 = vpack.c.bf16 %v657, %v656
    %v1105 = vpack.c.bf16 %v658, %v658
    %v1106 = vpack.c.bf16 %v660, %v659
    %v1107 = vpack.c.bf16 %v661, %v661
    %v1108 = vpack.c.bf16 %v663, %v662
    %v1109 = vpack.c.bf16 %v664, %v664
    %v1110 = vpack.c.bf16 %v666, %v665
    %v1111 = vpack.c.bf16 %v667, %v667
    %v1112 = vpack.c.bf16 %v669, %v668
    %v1113 = vpack.c.bf16 %v670, %v670
    %v1114 = vpack.c.bf16 %v672, %v671
    %v1115 = vpack.c.bf16 %v673, %v673
    %v1116 = vpack.c.bf16 %v675, %v674
    %v1117 = vpack.c.bf16 %v676, %v676
    %v1118 = vpack.c.bf16 %v678, %v677
    %v1119 = vpack.c.bf16 %v679, %v679
    %v1120 = vpack.c.bf16 %v681, %v680
    %v1121 = vpack.c.bf16 %v682, %v682
    %v1122 = vpack.c.bf16 %v684, %v683
    %v1123 = vpack.c.bf16 %v685, %v685
    %v1124 = vpack.c.bf16 %v687, %v686
    %v1125 = vpack.c.bf16 %v688, %v688
    %v1126 = vpack.c.bf16 %v690, %v689
    %v1127 = vpack.c.bf16 %v691, %v691
    %v1128 = vpack.c.bf16 %v693, %v692
    %v1129 = vpack.c.bf16 %v694, %v694
    %v1130 = vpack.c.bf16 %v696, %v695
    %v1131 = vpack.c.bf16 %v697, %v697
    %v1132 = vpack.c.bf16 %v699, %v698
    %v1133 = vpack.c.bf16 %v700, %v700
    %v1134 = vpack.c.bf16 %v702, %v701
    %v1135 = vpack.c.bf16 %v703, %v703
    %v1136 = vpack.c.bf16 %v705, %v704
    %v1137 = vpack.c.bf16 %v706, %v706
    %v1138 = vpack.c.bf16 %v708, %v707
    %v1139 = vpack.c.bf16 %v709, %v709
    %v1140 = vpack.c.bf16 %v711, %v710
    %v1141 = vpack.c.bf16 %v712, %v712
    %v1142 = vpack.c.bf16 %v714, %v713
    %v1143 = vpack.c.bf16 %v715, %v715
    %v1144 = vpack.c.bf16 %v717, %v716
    %v1145 = vpack.c.bf16 %v718, %v718
    %v1146 = vpack.c.bf16 %v720, %v719
    %v1147 = vpack.c.bf16 %v721, %v721
    %v1148 = vpack.c.bf16 %v723, %v722
    %v1149 = vpack.c.bf16 %v724, %v724
    %v1150 = vpack.c.bf16 %v726, %v725
    %v1151 = vpack.c.bf16 %v727, %v727
    %v1152 = vpack.c.bf16 %v729, %v728
    %v1153 = vpack.c.bf16 %v730, %v730
    %v1154 = vpack.c.bf16 %v732, %v731
    %v1155 = vpack.c.bf16 %v733, %v733
    %v1156 = vpack.c.bf16 %v735, %v734
    %v1157 = vpack.c.bf16 %v736, %v736
    %v1158 = vpack.c.bf16 %v738, %v737
    %v1159 = vpack.c.bf16 %v739, %v739
    %v1160 = vpack.c.bf16 %v741, %v740
    %v1161 = vpack.c.bf16 %v742, %v742
    %v1162 = vpack.c.bf16 %v744, %v743
    %v1163 = vpack.c.bf16 %v745, %v745
    %v1164 = vpack.c.bf16 %v747, %v746
    %v1165 = vpack.c.bf16 %v748, %v748
    %v1166 = vpack.c.bf16 %v750, %v749
    %v1167 = vpack.c.bf16 %v751, %v751
    %v1168 = vpack.c.bf16 %v753, %v752
    %v1169 = vpack.c.bf16 %v754, %v754
    %v1170 = vpack.c.bf16 %v756, %v755
    %v1171 = vpack.c.bf16 %v757, %v757
    %v1172 = vpack.c.bf16 %v759, %v758
    %v1173 = vpack.c.bf16 %v760, %v760
    %v1174 = vpack.c.bf16 %v762, %v761
    %v1175 = vpack.c.bf16 %v763, %v763
    %v1176 = vpack.c.bf16 %v765, %v764
    %v1177 = vpack.c.bf16 %v766, %v766
    %v1178 = vpack.c.bf16 %v768, %v767
    %v1179 = vpack.c.bf16 %v769, %v769
    %v1180 = vpack.c.bf16 %v771, %v770
    %v1181 = vpack.c.bf16 %v772, %v772
    %v1182 = vpack.c.bf16 %v774, %v773
    %v1183 = vpack.c.bf16 %v775, %v775
    %v1184 = vpack.c.bf16 %v777, %v776
    %v1185 = vpack.c.bf16 %v778, %v778
    %v1186 = vpack.c.bf16 %v780, %v779
    %v1187 = vpack.c.bf16 %v781, %v781
    %v1188 = vpack.c.bf16 %v783, %v782
    %v1189 = vpack.c.bf16 %v784, %v784
    %v1190 = vpack.c.bf16 %v786, %v785
    %v1191 = vpack.c.bf16 %v787, %v787
    %v1192 = vpack.c.bf16 %v789, %v788
    %v1193 = vpack.c.bf16 %v790, %v790
    %v1194 = vpack.c.bf16 %v792, %v791
    %v1195 = vpack.c.bf16 %v793, %v793
    %v1196 = vpack.c.bf16 %v795, %v794
    %v1197 = vpack.c.bf16 %v796, %v796
    %v1198 = vpack.c.bf16 %v798, %v797
    %v1199 = vpack.c.bf16 %v799, %v799
    %v1200 = vunpack.c.l.bf16 %v1104
    %v1201 = vunpack.c.h.bf16 %v1104
    %v1202 = vunpack.c.l.bf16 %v1105
    %v1203 = vunpack.c.l.bf16 %v1106
    %v1204 = vunpack.c.h.bf16 %v1106
    %v1205 = vunpack.c.l.bf16 %v1107
    %v1206 = vunpack.c.l.bf16 %v1108
    %v1207 = vunpack.c.h.bf16 %v1108
    %v1208 = vunpack.c.l.bf16 %v1109
    %v1209 = vunpack.c.l.bf16 %v1110
    %v1210 = vunpack.c.h.bf16 %v1110
    %v1211 = vunpack.c.l.bf16 %v1111
    %v1212 = vunpack.c.l.bf16 %v1112
    %v1213 = vunpack.c.h.bf16 %v1112
    %v1214 = vunpack.c.l.bf16 %v1113
    %v1215 = vunpack.c.l.bf16 %v1114
    %v1216 = vunpack.c.h.bf16 %v1114
    %v1217 = vunpack.c.l.bf16 %v1115
    %v1218 = vunpack.c.l.bf16 %v1116
    %v1219 = vunpack.c.h.bf16 %v1116
    %v1220 = vunpack.c.l.bf16 %v1117
    %v1221 = vunpack.c.l.bf16 %v1118
    %v1222 = vunpack.c.h.bf16 %v1118
    %v1223 = vunpack.c.l.bf16 %v1119
    %v1224 = vunpack.c.l.bf16 %v1120
    %v1225 = vunpack.c.h.bf16 %v1120
    %v1226 = vunpack.c.l.bf16 %v1121
    %v1227 = vunpack.c.l.bf16 %v1122
    %v1228 = vunpack.c.h.bf16 %v1122
    %v1229 = vunpack.c.l.bf16 %v1123
    %v1230 = vunpack.c.l.bf16 %v1124
    %v1231 = vunpack.c.h.bf16 %v1124
    %v1232 = vunpack.c.l.bf16 %v1125
    %v1233 = vunpack.c.l.bf16 %v1126
    %v1234 = vunpack.c.h.bf16 %v1126
    %v1235 = vunpack.c.l.bf16 %v1127
    %v1236 = vunpack.c.l.bf16 %v1128
    %v1237 = vunpack.c.h.bf16 %v1128
    %v1238 = vunpack.c.l.bf16 %v1129
    %v1239 = vunpack.c.l.bf16 %v1130
    %v1240 = vunpack.c.h.bf16 %v1130
    %v1241 = vunpack.c.l.bf16 %v1131
    %v1242 = vunpack.c.l.bf16 %v1132
    %v1243 = vunpack.c.h.bf16 %v1132
    %v1244 = vunpack.c.l.bf16 %v1133
    %v1245 = vunpack.c.l.bf16 %v1134
    %v1246 = vunpack.c.h.bf16 %v1134
    %v1247 = vunpack.c.l.bf16 %v1135
    %v1248 = vunpack.c.l.bf16 %v1136
    %v1249 = vunpack.c.h.bf16 %v1136
    %v1250 = vunpack.c.l.bf16 %v1137
    %v1251 = vunpack.c.l.bf16 %v1138
    %v1252 = vunpack.c.h.bf16 %v1138
    %v1253 = vunpack.c.l.bf16 %v1139
    %v1254 = vunpack.c.l.bf16 %v1140
    %v1255 = vunpack.c.h.bf16 %v1140
    %v1256 = vunpack.c.l.bf16 %v1141
    %v1257 = vunpack.c.l.bf16 %v1142
    %v1258 = vunpack.c.h.bf16 %v1142
    %v1259 = vunpack.c.l.bf16 %v1143
    %v1260 = vunpack.c.l.bf16 %v1144
    %v1261 = vunpack.c.h.bf16 %v1144
    %v1262 = vunpack.c.l.bf16 %v1145
    %v1263 = vunpack.c.l.bf16 %v1146
    %v1264 = vunpack.c.h.bf16 %v1146
    %v1265 = vunpack.c.l.bf16 %v1147
    %v1266 = vunpack.c.l.bf16 %v1148
    %v1267 = vunpack.c.h.bf16 %v1148
    %v1268 = vunpack.c.l.bf16 %v1149
    %v1269 = vunpack.c.l.bf16 %v1150
    %v1270 = vunpack.c.h.bf16 %v1150
    %v1271 = vunpack.c.l.bf16 %v1151
    %v1272 = vunpack.c.l.bf16 %v1152
    %v1273 = vunpack.c.h.bf16 %v1152
    %v1274 = vunpack.c.l.bf16 %v1153
    %v1275 = vunpack.c.l.bf16 %v1154
    %v1276 = vunpack.c.h.bf16 %v1154
    %v1277 = vunpack.c.l.bf16 %v1155
    %v1278 = vunpack.c.l.bf16 %v1156
    %v1279 = vunpack.c.h.bf16 %v1156
    %v1280 = vunpack.c.l.bf16 %v1157
    %v1281 = vunpack.c.l.bf16 %v1158
    %v1282 = vunpack.c.h.bf16 %v1158
    %v1283 = vunpack.c.l.bf16 %v1159
    %v1284 = vunpack.c.l.bf16 %v1160
    %v1285 = vunpack.c.h.bf16 %v1160
    %v1286 = vunpack.c.l.bf16 %v1161
    %v1287 = vunpack.c.l.bf16 %v1162
    %v1288 = vunpack.c.h.bf16 %v1162
    %v1289 = vunpack.c.l.bf16 %v1163
    %v1290 = vunpack.c.l.bf16 %v1164
    %v1291 = vunpack.c.h.bf16 %v1164
    %v1292 = vunpack.c.l.bf16 %v1165
    %v1293 = vunpack.c.l.bf16 %v1166
    %v1294 = vunpack.c.h.bf16 %v1166
    %v1295 = vunpack.c.l.bf16 %v1167
    %v1296 = vunpack.c.l.bf16 %v1168
    %v1297 = vunpack.c.h.bf16 %v1168
    %v1298 = vunpack.c.l.bf16 %v1169
    %v1299 = vunpack.c.l.bf16 %v1170
    %v1300 = vunpack.c.h.bf16 %v1170
    %v1301 = vunpack.c.l.bf16 %v1171
    %v1302 = vunpack.c.l.bf16 %v1172
    %v1303 = vunpack.c.h.bf16 %v1172
    %v1304 = vunpack.c.l.bf16 %v1173
    %v1305 = vunpack.c.l.bf16 %v1174
    %v1306 = vunpack.c.h.bf16 %v1174
    %v1307 = vunpack.c.l.bf16 %v1175
    %v1308 = vunpack.c.l.bf16 %v1176
    %v1309 = vunpack.c.h.bf16 %v1176
    %v1310 = vunpack.c.l.bf16 %v1177
    %v1311 = vunpack.c.l.bf16 %v1178
    %v1312 = vunpack.c.h.bf16 %v1178
    %v1313 = vunpack.c.l.bf16 %v1179
    %v1314 = vunpack.c.l.bf16 %v1180
    %v1315 = vunpack.c.h.bf16 %v1180
    %v1316 = vunpack.c.l.bf16 %v1181
    %v1317 = vunpack.c.l.bf16 %v1182
    %v1318 = vunpack.c.h.bf16 %v1182
    %v1319 = vunpack.c.l.bf16 %v1183
    %v1320 = vunpack.c.l.bf16 %v1184
    %v1321 = vunpack.c.h.bf16 %v1184
    %v1322 = vunpack.c.l.bf16 %v1185
    %v1323 = vunpack.c.l.bf16 %v1186
    %v1324 = vunpack.c.h.bf16 %v1186
    %v1325 = vunpack.c.l.bf16 %v1187
    %v1326 = vunpack.c.l.bf16 %v1188
    %v1327 = vunpack.c.h.bf16 %v1188
    %v1328 = vunpack.c.l.bf16 %v1189
    %v1329 = vunpack.c.l.bf16 %v1190
    %v1330 = vunpack.c.h.bf16 %v1190
    %v1331 = vunpack.c.l.bf16 %v1191
    %v1332 = vunpack.c.l.bf16 %v1192
    %v1333 = vunpack.c.h.bf16 %v1192
    %v1334 = vunpack.c.l.bf16 %v1193
    %v1335 = vunpack.c.l.bf16 %v1194
    %v1336 = vunpack.c.h.bf16 %v1194
    %v1337 = vunpack.c.l.bf16 %v1195
    %v1338 = vunpack.c.l.bf16 %v1196
    %v1339 = vunpack.c.h.bf16 %v1196
    %v1340 = vunpack.c.l.bf16 %v1197
    %v1341 = vunpack.c.l.bf16 %v1198
    %v1342 = vunpack.c.h.bf16 %v1198
    %v1343 = vunpack.c.l.bf16 %v1199
    %v1344 = vsub.f32 %v656, %v1200
    %v1345 = vsub.f32 %v657, %v1201
    %v1346 = vsub.f32 %v658, %v1202
    %v1347 = vsub.f32 %v659, %v1203
    %v1348 = vsub.f32 %v660, %v1204
    %v1349 = vsub.f32 %v661, %v1205
    %v1350 = vsub.f32 %v662, %v1206
    %v1351 = vsub.f32 %v663, %v1207
    %v1352 = vsub.f32 %v664, %v1208
    %v1353 = vsub.f32 %v665, %v1209
    %v1354 = vsub.f32 %v666, %v1210
    %v1355 = vsub.f32 %v667, %v1211
    %v1356 = vsub.f32 %v668, %v1212
    %v1357 = vsub.f32 %v669, %v1213
    %v1358 = vsub.f32 %v670, %v1214
    %v1359 = vsub.f32 %v671, %v1215
    %v1360 = vsub.f32 %v672, %v1216
    %v1361 = vsub.f32 %v673, %v1217
    %v1362 = vsub.f32 %v674, %v1218
    %v1363 = vsub.f32 %v675, %v1219
    %v1364 = vsub.f32 %v676, %v1220
    %v1365 = vsub.f32 %v677, %v1221
    %v1366 = vsub.f32 %v678, %v1222
    %v1367 = vsub.f32 %v679, %v1223
    %v1368 = vsub.f32 %v680, %v1224
    %v1369 = vsub.f32 %v681, %v1225
    %v1370 = vsub.f32 %v682, %v1226
    %v1371 = vsub.f32 %v683, %v1227
    %v1372 = vsub.f32 %v684, %v1228
    %v1373 = vsub.f32 %v685, %v1229
    %v1374 = vsub.f32 %v686, %v1230
    %v1375 = vsub.f32 %v687, %v1231
    %v1376 = vsub.f32 %v688, %v1232
    %v1377 = vsub.f32 %v689, %v1233
    %v1378 = vsub.f32 %v690, %v1234
    %v1379 = vsub.f32 %v691, %v1235
    %v1380 = vsub.f32 %v692, %v1236
    %v1381 = vsub.f32 %v693, %v1237
    %v1382 = vsub.f32 %v694, %v1238
    %v1383 = vsub.f32 %v695, %v1239
    %v1384 = vsub.f32 %v696, %v1240
    %v1385 = vsub.f32 %v697, %v1241
    %v1386 = vsub.f32 %v698, %v1242
    %v1387 = vsub.f32 %v699, %v1243
    %v1388 = vsub.f32 %v700, %v1244
    %v1389 = vsub.f32 %v701, %v1245
    %v1390 = vsub.f32 %v702, %v1246
    %v1391 = vsub.f32 %v703, %v1247
    %v1392 = vsub.f32 %v704, %v1248
    %v1393 = vsub.f32 %v705, %v1249
    %v1394 = vsub.f32 %v706, %v1250
    %v1395 = vsub.f32 %v707, %v1251
    %v1396 = vsub.f32 %v708, %v1252
    %v1397 = vsub.f32 %v709, %v1253
    %v1398 = vsub.f32 %v710, %v1254
    %v1399 = vsub.f32 %v711, %v1255
    %v1400 = vsub.f32 %v712, %v1256
    %v1401 = vsub.f32 %v713, %v1257
    %v1402 = vsub.f32 %v714, %v1258
    %v1403 = vsub.f32 %v715, %v1259
    %v1404 = vsub.f32 %v716, %v1260
    %v1405 = vsub.f32 %v717, %v1261
    %v1406 = vsub.f32 %v718, %v1262
    %v1407 = vsub.f32 %v719, %v1263
    %v1408 = vsub.f32 %v720, %v1264
    %v1409 = vsub.f32 %v721, %v1265
    %v1410 = vsub.f32 %v722, %v1266
    %v1411 = vsub.f32 %v723, %v1267
    %v1412 = vsub.f32 %v724, %v1268
    %v1413 = vsub.f32 %v725, %v1269
    %v1414 = vsub.f32 %v726, %v1270
    %v1415 = vsub.f32 %v727, %v1271
    %v1416 = vsub.f32 %v728, %v1272
    %v1417 = vsub.f32 %v729, %v1273
    %v1418 = vsub.f32 %v730, %v1274
    %v1419 = vsub.f32 %v731, %v1275
    %v1420 = vsub.f32 %v732, %v1276
    %v1421 = vsub.f32 %v733, %v1277
    %v1422 = vsub.f32 %v734, %v1278
    %v1423 = vsub.f32 %v735, %v1279
    %v1424 = vsub.f32 %v736, %v1280
    %v1425 = vsub.f32 %v737, %v1281
    %v1426 = vsub.f32 %v738, %v1282
    %v1427 = vsub.f32 %v739, %v1283
    %v1428 = vsub.f32 %v740, %v1284
    %v1429 = vsub.f32 %v741, %v1285
    %v1430 = vsub.f32 %v742, %v1286
    %v1431 = vsub.f32 %v743, %v1287
    %v1432 = vsub.f32 %v744, %v1288
    %v1433 = vsub.f32 %v745, %v1289
    %v1434 = vsub.f32 %v746, %v1290
    %v1435 = vsub.f32 %v747, %v1291
    %v1436 = vsub.f32 %v748, %v1292
    %v1437 = vsub.f32 %v749, %v1293
    %v1438 = vsub.f32 %v750, %v1294
    %v1439 = vsub.f32 %v751, %v1295
    %v1440 = vsub.f32 %v752, %v1296
    %v1441 = vsub.f32 %v753, %v1297
    %v1442 = vsub.f32 %v754, %v1298
    %v1443 = vsub.f32 %v755, %v1299
    %v1444 = vsub.f32 %v756, %v1300
    %v1445 = vsub.f32 %v757, %v1301
    %v1446 = vsub.f32 %v758, %v1302
    %v1447 = vsub.f32 %v759, %v1303
    %v1448 = vsub.f32 %v760, %v1304
    %v1449 = vsub.f32 %v761, %v1305
    %v1450 = vsub.f32 %v762, %v1306
    %v1451 = vsub.f32 %v763, %v1307
    %v1452 = vsub.f32 %v764, %v1308
    %v1453 = vsub.f32 %v765, %v1309
    %v1454 = vsub.f32 %v766, %v1310
    %v1455 = vsub.f32 %v767, %v1311
    %v1456 = vsub.f32 %v768, %v1312
    %v1457 = vsub.f32 %v769, %v1313
    %v1458 = vsub.f32 %v770, %v1314
    %v1459 = vsub.f32 %v771, %v1315
    %v1460 = vsub.f32 %v772, %v1316
    %v1461 = vsub.f32 %v773, %v1317
    %v1462 = vsub.f32 %v774, %v1318
    %v1463 = vsub.f32 %v775, %v1319
    %v1464 = vsub.f32 %v776, %v1320
    %v1465 = vsub.f32 %v777, %v1321
    %v1466 = vsub.f32 %v778, %v1322
    %v1467 = vsub.f32 %v779, %v1323
    %v1468 = vsub.f32 %v780, %v1324
    %v1469 = vsub.f32 %v781, %v1325
    %v1470 = vsub.f32 %v782, %v1326
    %v1471 = vsub.f32 %v783, %v1327
    %v1472 = vsub.f32 %v784, %v1328
    %v1473 = vsub.f32 %v785, %v1329
    %v1474 = vsub.f32 %v786, %v1330
    %v1475 = vsub.f32 %v787, %v1331
    %v1476 = vsub.f32 %v788, %v1332
    %v1477 = vsub.f32 %v789, %v1333
    %v1478 = vsub.f32 %v790, %v1334
    %v1479 = vsub.f32 %v791, %v1335
    %v1480 = vsub.f32 %v792, %v1336
    %v1481 = vsub.f32 %v793, %v1337
    %v1482 = vsub.f32 %v794, %v1338
    %v1483 = vsub.f32 %v795, %v1339
    %v1484 = vsub.f32 %v796, %v1340
    %v1485 = vsub.f32 %v797, %v1341
    %v1486 = vsub.f32 %v798, %v1342
    %v1487 = vsub.f32 %v799, %v1343
    %v1488 = vpack.c.bf16 %v1347, %v1344
    %v1489 = vpack.c.bf16 %v1348, %v1345
    %v1490 = vpack.c.bf16 %v1349, %v1346
    %v1491 = vpack.c.bf16 %v1353, %v1350
    %v1492 = vpack.c.bf16 %v1354, %v1351
    %v1493 = vpack.c.bf16 %v1355, %v1352
    %v1494 = vpack.c.bf16 %v1359, %v1356
    %v1495 = vpack.c.bf16 %v1360, %v1357
    %v1496 = vpack.c.bf16 %v1361, %v1358
    %v1497 = vpack.c.bf16 %v1365, %v1362
    %v1498 = vpack.c.bf16 %v1366, %v1363
    %v1499 = vpack.c.bf16 %v1367, %v1364
    %v1500 = vpack.c.bf16 %v1371, %v1368
    %v1501 = vpack.c.bf16 %v1372, %v1369
    %v1502 = vpack.c.bf16 %v1373, %v1370
    %v1503 = vpack.c.bf16 %v1377, %v1374
    %v1504 = vpack.c.bf16 %v1378, %v1375
    %v1505 = vpack.c.bf16 %v1379, %v1376
    %v1506 = vpack.c.bf16 %v1383, %v1380
    %v1507 = vpack.c.bf16 %v1384, %v1381
    %v1508 = vpack.c.bf16 %v1385, %v1382
    %v1509 = vpack.c.bf16 %v1389, %v1386
    %v1510 = vpack.c.bf16 %v1390, %v1387
    %v1511 = vpack.c.bf16 %v1391, %v1388
    %v1512 = vpack.c.bf16 %v1395, %v1392
    %v1513 = vpack.c.bf16 %v1396, %v1393
    %v1514 = vpack.c.bf16 %v1397, %v1394
    %v1515 = vpack.c.bf16 %v1401, %v1398
    %v1516 = vpack.c.bf16 %v1402, %v1399
    %v1517 = vpack.c.bf16 %v1403, %v1400
    %v1518 = vpack.c.bf16 %v1407, %v1404
    %v1519 = vpack.c.bf16 %v1408, %v1405
    %v1520 = vpack.c.bf16 %v1409, %v1406
    %v1521 = vpack.c.bf16 %v1413, %v1410
    %v1522 = vpack.c.bf16 %v1414, %v1411
    %v1523 = vpack.c.bf16 %v1415, %v1412
    %v1524 = vpack.c.bf16 %v1419, %v1416
    %v1525 = vpack.c.bf16 %v1420, %v1417
    %v1526 = vpack.c.bf16 %v1421, %v1418
    %v1527 = vpack.c.bf16 %v1425, %v1422
    %v1528 = vpack.c.bf16 %v1426, %v1423
    %v1529 = vpack.c.bf16 %v1427, %v1424
    %v1530 = vpack.c.bf16 %v1431, %v1428
    %v1531 = vpack.c.bf16 %v1432, %v1429
    %v1532 = vpack.c.bf16 %v1433, %v1430
    %v1533 = vpack.c.bf16 %v1437, %v1434
    %v1534 = vpack.c.bf16 %v1438, %v1435
    %v1535 = vpack.c.bf16 %v1439, %v1436
    %v1536 = vpack.c.bf16 %v1443, %v1440
    %v1537 = vpack.c.bf16 %v1444, %v1441
    %v1538 = vpack.c.bf16 %v1445, %v1442
    %v1539 = vpack.c.bf16 %v1449, %v1446
    %v1540 = vpack.c.bf16 %v1450, %v1447
    %v1541 = vpack.c.bf16 %v1451, %v1448
    %v1542 = vpack.c.bf16 %v1455, %v1452
    %v1543 = vpack.c.bf16 %v1456, %v1453
    %v1544 = vpack.c.bf16 %v1457, %v1454
    %v1545 = vpack.c.bf16 %v1461, %v1458
    %v1546 = vpack.c.bf16 %v1462, %v1459
    %v1547 = vpack.c.bf16 %v1463, %v1460
    %v1548 = vpack.c.bf16 %v1467, %v1464
    %v1549 = vpack.c.bf16 %v1468, %v1465
    %v1550 = vpack.c.bf16 %v1469, %v1466
    %v1551 = vpack.c.bf16 %v1473, %v1470
    %v1552 = vpack.c.bf16 %v1474, %v1471
    %v1553 = vpack.c.bf16 %v1475, %v1472
    %v1554 = vpack.c.bf16 %v1479, %v1476
    %v1555 = vpack.c.bf16 %v1480, %v1477
    %v1556 = vpack.c.bf16 %v1481, %v1478
    %v1557 = vpack.c.bf16 %v1485, %v1482
    %v1558 = vpack.c.bf16 %v1486, %v1483
    %v1559 = vpack.c.bf16 %v1487, %v1484
    %v1656 = vunpack.c.l.b16 %v1104
    %v1657 = vunpack.c.h.b16 %v1104
    %v1658 = vunpack.c.l.b16 %v1105
    %v1659 = vunpack.c.l.b16 %v1106
    %v1660 = vunpack.c.h.b16 %v1106
    %v1661 = vunpack.c.l.b16 %v1107
    %v1662 = vunpack.c.l.b16 %v1108
    %v1663 = vunpack.c.h.b16 %v1108
    %v1664 = vunpack.c.l.b16 %v1109
    %v1665 = vunpack.c.l.b16 %v1110
    %v1666 = vunpack.c.h.b16 %v1110
    %v1667 = vunpack.c.l.b16 %v1111
    %v1668 = vunpack.c.l.b16 %v1112
    %v1669 = vunpack.c.h.b16 %v1112
    %v1670 = vunpack.c.l.b16 %v1113
    %v1671 = vunpack.c.l.b16 %v1114
    %v1672 = vunpack.c.h.b16 %v1114
    %v1673 = vunpack.c.l.b16 %v1115
    %v1674 = vunpack.c.l.b16 %v1116
    %v1675 = vunpack.c.h.b16 %v1116
    %v1676 = vunpack.c.l.b16 %v1117
    %v1677 = vunpack.c.l.b16 %v1118
    %v1678 = vunpack.c.h.b16 %v1118
    %v1679 = vunpack.c.l.b16 %v1119
    %v1680 = vunpack.c.l.b16 %v1120
    %v1681 = vunpack.c.h.b16 %v1120
    %v1682 = vunpack.c.l.b16 %v1121
    %v1683 = vunpack.c.l.b16 %v1122
    %v1684 = vunpack.c.h.b16 %v1122
    %v1685 = vunpack.c.l.b16 %v1123
    %v1686 = vunpack.c.l.b16 %v1124
    %v1687 = vunpack.c.h.b16 %v1124
    %v1688 = vunpack.c.l.b16 %v1125
    %v1689 = vunpack.c.l.b16 %v1126
    %v1690 = vunpack.c.h.b16 %v1126
    %v1691 = vunpack.c.l.b16 %v1127
    %v1692 = vunpack.c.l.b16 %v1128
    %v1693 = vunpack.c.h.b16 %v1128
    %v1694 = vunpack.c.l.b16 %v1129
    %v1695 = vunpack.c.l.b16 %v1130
    %v1696 = vunpack.c.h.b16 %v1130
    %v1697 = vunpack.c.l.b16 %v1131
    %v1698 = vunpack.c.l.b16 %v1132
    %v1699 = vunpack.c.h.b16 %v1132
    %v1700 = vunpack.c.l.b16 %v1133
    %v1701 = vunpack.c.l.b16 %v1134
    %v1702 = vunpack.c.h.b16 %v1134
    %v1703 = vunpack.c.l.b16 %v1135
    %v1704 = vunpack.c.l.b16 %v1136
    %v1705 = vunpack.c.h.b16 %v1136
    %v1706 = vunpack.c.l.b16 %v1137
    %v1707 = vunpack.c.l.b16 %v1138
    %v1708 = vunpack.c.h.b16 %v1138
    %v1709 = vunpack.c.l.b16 %v1139
    %v1710 = vunpack.c.l.b16 %v1140
    %v1711 = vunpack.c.h.b16 %v1140
    %v1712 = vunpack.c.l.b16 %v1141
    %v1713 = vunpack.c.l.b16 %v1142
    %v1714 = vunpack.c.h.b16 %v1142
    %v1715 = vunpack.c.l.b16 %v1143
    %v1716 = vunpack.c.l.b16 %v1144
    %v1717 = vunpack.c.h.b16 %v1144
    %v1718 = vunpack.c.l.b16 %v1145
    %v1719 = vunpack.c.l.b16 %v1146
    %v1720 = vunpack.c.h.b16 %v1146
    %v1721 = vunpack.c.l.b16 %v1147
    %v1722 = vunpack.c.l.b16 %v1148
    %v1723 = vunpack.c.h.b16 %v1148
    %v1724 = vunpack.c.l.b16 %v1149
    %v1725 = vunpack.c.l.b16 %v1150
    %v1726 = vunpack.c.h.b16 %v1150
    %v1727 = vunpack.c.l.b16 %v1151
    %v1728 = vunpack.c.l.b16 %v1152
    %v1729 = vunpack.c.h.b16 %v1152
    %v1730 = vunpack.c.l.b16 %v1153
    %v1731 = vunpack.c.l.b16 %v1154
    %v1732 = vunpack.c.h.b16 %v1154
    %v1733 = vunpack.c.l.b16 %v1155
    %v1734 = vunpack.c.l.b16 %v1156
    %v1735 = vunpack.c.h.b16 %v1156
    %v1736 = vunpack.c.l.b16 %v1157
    %v1737 = vunpack.c.l.b16 %v1158
    %v1738 = vunpack.c.h.b16 %v1158
    %v1739 = vunpack.c.l.b16 %v1159
    %v1740 = vunpack.c.l.b16 %v1160
    %v1741 = vunpack.c.h.b16 %v1160
    %v1742 = vunpack.c.l.b16 %v1161
    %v1743 = vunpack.c.l.b16 %v1162
    %v1744 = vunpack.c.h.b16 %v1162
    %v1745 = vunpack.c.l.b16 %v1163
    %v1746 = vunpack.c.l.b16 %v1164
    %v1747 = vunpack.c.h.b16 %v1164
    %v1748 = vunpack.c.l.b16 %v1165
    %v1749 = vunpack.c.l.b16 %v1166
    %v1750 = vunpack.c.h.b16 %v1166
    %v1751 = vunpack.c.l.b16 %v1167
    %v1752 = vunpack.c.l.b16 %v1168
    %v1753 = vunpack.c.h.b16 %v1168
    %v1754 = vunpack.c.l.b16 %v1169
    %v1755 = vunpack.c.l.b16 %v1170
    %v1756 = vunpack.c.h.b16 %v1170
    %v1757 = vunpack.c.l.b16 %v1171
    %v1758 = vunpack.c.l.b16 %v1172
    %v1759 = vunpack.c.h.b16 %v1172
    %v1760 = vunpack.c.l.b16 %v1173
    %v1761 = vunpack.c.l.b16 %v1174
    %v1762 = vunpack.c.h.b16 %v1174
    %v1763 = vunpack.c.l.b16 %v1175
    %v1764 = vunpack.c.l.b16 %v1176
    %v1765 = vunpack.c.h.b16 %v1176
    %v1766 = vunpack.c.l.b16 %v1177
    %v1767 = vunpack.c.l.b16 %v1178
    %v1768 = vunpack.c.h.b16 %v1178
    %v1769 = vunpack.c.l.b16 %v1179
    %v1770 = vunpack.c.l.b16 %v1180
    %v1771 = vunpack.c.h.b16 %v1180
    %v1772 = vunpack.c.l.b16 %v1181
    %v1773 = vunpack.c.l.b16 %v1182
    %v1774 = vunpack.c.h.b16 %v1182
    %v1775 = vunpack.c.l.b16 %v1183
    %v1776 = vunpack.c.l.b16 %v1184
    %v1777 = vunpack.c.h.b16 %v1184
    %v1778 = vunpack.c.l.b16 %v1185
    %v1779 = vunpack.c.l.b16 %v1186
    %v1780 = vunpack.c.h.b16 %v1186
    %v1781 = vunpack.c.l.b16 %v1187
    %v1782 = vunpack.c.l.b16 %v1188
    %v1783 = vunpack.c.h.b16 %v1188
    %v1784 = vunpack.c.l.b16 %v1189
    %v1785 = vunpack.c.l.b16 %v1190
    %v1786 = vunpack.c.h.b16 %v1190
    %v1787 = vunpack.c.l.b16 %v1191
    %v1788 = vunpack.c.l.b16 %v1192
    %v1789 = vunpack.c.h.b16 %v1192
    %v1790 = vunpack.c.l.b16 %v1193
    %v1791 = vunpack.c.l.b16 %v1194
    %v1792 = vunpack.c.h.b16 %v1194
    %v1793 = vunpack.c.l.b16 %v1195
    %v1794 = vunpack.c.l.b16 %v1196
    %v1795 = vunpack.c.h.b16 %v1196
    %v1796 = vunpack.c.l.b16 %v1197
    %v1797 = vunpack.c.l.b16 %v1198
    %v1798 = vunpack.c.h.b16 %v1198
    %v1799 = vunpack.c.l.b16 %v1199
    %v1800 = vpack.c.b16 %v1659, %v1656
    %v1801 = vpack.c.b16 %v1660, %v1657
    %v1802 = vpack.c.b16 %v1661, %v1658
    %v1803 = vpack.c.b16 %v1665, %v1662
    %v1804 = vpack.c.b16 %v1666, %v1663
    %v1805 = vpack.c.b16 %v1667, %v1664
    %v1806 = vpack.c.b16 %v1671, %v1668
    %v1807 = vpack.c.b16 %v1672, %v1669
    %v1808 = vpack.c.b16 %v1673, %v1670
    %v1809 = vpack.c.b16 %v1677, %v1674
    %v1810 = vpack.c.b16 %v1678, %v1675
    %v1811 = vpack.c.b16 %v1679, %v1676
    %v1812 = vpack.c.b16 %v1683, %v1680
    %v1813 = vpack.c.b16 %v1684, %v1681
    %v1814 = vpack.c.b16 %v1685, %v1682
    %v1815 = vpack.c.b16 %v1689, %v1686
    %v1816 = vpack.c.b16 %v1690, %v1687
    %v1817 = vpack.c.b16 %v1691, %v1688
    %v1818 = vpack.c.b16 %v1695, %v1692
    %v1819 = vpack.c.b16 %v1696, %v1693
    %v1820 = vpack.c.b16 %v1697, %v1694
    %v1821 = vpack.c.b16 %v1701, %v1698
    %v1822 = vpack.c.b16 %v1702, %v1699
    %v1823 = vpack.c.b16 %v1703, %v1700
    %v1824 = vpack.c.b16 %v1707, %v1704
    %v1825 = vpack.c.b16 %v1708, %v1705
    %v1826 = vpack.c.b16 %v1709, %v1706
    %v1827 = vpack.c.b16 %v1713, %v1710
    %v1828 = vpack.c.b16 %v1714, %v1711
    %v1829 = vpack.c.b16 %v1715, %v1712
    %v1830 = vpack.c.b16 %v1719, %v1716
    %v1831 = vpack.c.b16 %v1720, %v1717
    %v1832 = vpack.c.b16 %v1721, %v1718
    %v1833 = vpack.c.b16 %v1725, %v1722
    %v1834 = vpack.c.b16 %v1726, %v1723
    %v1835 = vpack.c.b16 %v1727, %v1724
    %v1836 = vpack.c.b16 %v1731, %v1728
    %v1837 = vpack.c.b16 %v1732, %v1729
    %v1838 = vpack.c.b16 %v1733, %v1730
    %v1839 = vpack.c.b16 %v1737, %v1734
    %v1840 = vpack.c.b16 %v1738, %v1735
    %v1841 = vpack.c.b16 %v1739, %v1736
    %v1842 = vpack.c.b16 %v1743, %v1740
    %v1843 = vpack.c.b16 %v1744, %v1741
    %v1844 = vpack.c.b16 %v1745, %v1742
    %v1845 = vpack.c.b16 %v1749, %v1746
    %v1846 = vpack.c.b16 %v1750, %v1747
    %v1847 = vpack.c.b16 %v1751, %v1748
    %v1848 = vpack.c.b16 %v1755, %v1752
    %v1849 = vpack.c.b16 %v1756, %v1753
    %v1850 = vpack.c.b16 %v1757, %v1754
    %v1851 = vpack.c.b16 %v1761, %v1758
    %v1852 = vpack.c.b16 %v1762, %v1759
    %v1853 = vpack.c.b16 %v1763, %v1760
    %v1854 = vpack.c.b16 %v1767, %v1764
    %v1855 = vpack.c.b16 %v1768, %v1765
    %v1856 = vpack.c.b16 %v1769, %v1766
    %v1857 = vpack.c.b16 %v1773, %v1770
    %v1858 = vpack.c.b16 %v1774, %v1771
    %v1859 = vpack.c.b16 %v1775, %v1772
    %v1860 = vpack.c.b16 %v1779, %v1776
    %v1861 = vpack.c.b16 %v1780, %v1777
    %v1862 = vpack.c.b16 %v1781, %v1778
    %v1863 = vpack.c.b16 %v1785, %v1782
    %v1864 = vpack.c.b16 %v1786, %v1783
    %v1865 = vpack.c.b16 %v1787, %v1784
    %v1866 = vpack.c.b16 %v1791, %v1788
    %v1867 = vpack.c.b16 %v1792, %v1789
    %v1868 = vpack.c.b16 %v1793, %v1790
    %v1869 = vpack.c.b16 %v1797, %v1794
    %v1870 = vpack.c.b16 %v1798, %v1795
    %v1871 = vpack.c.b16 %v1799, %v1796
    %1944 = vmatpush.bf16.msra.mxu0 %v1821
    %1945 = vmatpush.bf16.msra.mxu0 %v1818
    %1946 = vmatpush.bf16.msra.mxu0 %v1815
    %1947 = vmatpush.bf16.msra.mxu0 %v1812
    %1948 = vmatpush.bf16.msra.mxu0 %v1809
    %1949 = vmatpush.bf16.msra.mxu0 %v1806
    %1950 = vmatpush.bf16.msra.mxu0 %v1803
    %1951 = vmatpush.bf16.msra.mxu0 %v1800
    %1952 = vmatmul.bf16.gmra.mxu0 %v1056
    %v1953 = vpop.f32.mrf.mxu0
    %v1954 = vadd.f32 0.0, %v1953
    %v1955 = vpop.f32.mrf.mxu0
    %v1956 = vadd.f32 0.0, %v1955
    %1957 = vmatmul.bf16.gmra.mxu0 %v1059
    %v1958 = vpop.f32.mrf.mxu0
    %v1959 = vadd.f32 0.0, %v1958
    %v1960 = vpop.f32.mrf.mxu0
    %v1961 = vadd.f32 0.0, %v1960
    %1962 = vmatmul.bf16.gmra.mxu0 %v1062
    %v1963 = vpop.f32.mrf.mxu0
    %v1964 = vadd.f32 0.0, %v1963
    %v1965 = vpop.f32.mrf.mxu0
    %v1966 = vadd.f32 0.0, %v1965
    %1967 = vmatmul.bf16.gmra.mxu0 %v1065
    %v1968 = vpop.f32.mrf.mxu0
    %v1969 = vadd.f32 0.0, %v1968
    %v1970 = vpop.f32.mrf.mxu0
    %v1971 = vadd.f32 0.0, %v1970
    %1972 = vmatmul.bf16.gmra.mxu0 %v1068
    %v1973 = vpop.f32.mrf.mxu0
    %v1974 = vadd.f32 0.0, %v1973
    %v1975 = vpop.f32.mrf.mxu0
    %v1976 = vadd.f32 0.0, %v1975
    %1977 = vmatmul.bf16.gmra.mxu0 %v1071
    %v1978 = vpop.f32.mrf.mxu0
    %v1979 = vadd.f32 0.0, %v1978
    %v1980 = vpop.f32.mrf.mxu0
    %v1981 = vadd.f32 0.0, %v1980
    %1982 = vmatmul.bf16.gmra.mxu0 %v1074
    %v1983 = vpop.f32.mrf.mxu0
    %v1984 = vadd.f32 0.0, %v1983
    %v1985 = vpop.f32.mrf.mxu0
    %v1986 = vadd.f32 0.0, %v1985
    %1987 = vmatmul.bf16.gmra.mxu0 %v1077
    %v1988 = vpop.f32.mrf.mxu0
    %v1989 = vadd.f32 0.0, %v1988
    %v1990 = vpop.f32.mrf.mxu0
    %v1991 = vadd.f32 0.0, %v1990
    %1992 = vmatmul.bf16.gmra.mxu0 %v1080
    %v1993 = vpop.f32.mrf.mxu0
    %v1994 = vadd.f32 0.0, %v1993
    %v1995 = vpop.f32.mrf.mxu0
    %v1996 = vadd.f32 0.0, %v1995
    %1997 = vmatmul.bf16.gmra.mxu0 %v1083
    %v1998 = vpop.f32.mrf.mxu0
    %v1999 = vadd.f32 0.0, %v1998
    %v2000 = vpop.f32.mrf.mxu0
    %v2001 = vadd.f32 0.0, %v2000
    %2002 = vmatmul.bf16.gmra.mxu0 %v1086
    %v2003 = vpop.f32.mrf.mxu0
    %v2004 = vadd.f32 0.0, %v2003
    %v2005 = vpop.f32.mrf.mxu0
    %v2006 = vadd.f32 0.0, %v2005
    %2007 = vmatmul.bf16.gmra.mxu0 %v1089
    %v2008 = vpop.f32.mrf.mxu0
    %v2009 = vadd.f32 0.0, %v2008
    %v2010 = vpop.f32.mrf.mxu0
    %v2011 = vadd.f32 0.0, %v2010
    %2012 = vmatmul.bf16.gmra.mxu0 %v1092
    %v2013 = vpop.f32.mrf.mxu0
    %v2014 = vadd.f32 0.0, %v2013
    %v2015 = vpop.f32.mrf.mxu0
    %v2016 = vadd.f32 0.0, %v2015
    %2017 = vmatmul.bf16.gmra.mxu0 %v1095
    %v2018 = vpop.f32.mrf.mxu0
    %v2019 = vadd.f32 0.0, %v2018
    %v2020 = vpop.f32.mrf.mxu0
    %v2021 = vadd.f32 0.0, %v2020
    %2022 = vmatmul.bf16.gmra.mxu0 %v1098
    %v2023 = vpop.f32.mrf.mxu0
    %v2024 = vadd.f32 0.0, %v2023
    %v2025 = vpop.f32.mrf.mxu0
    %v2026 = vadd.f32 0.0, %v2025
    %2027 = vmatmul.bf16.gmra.mxu0 %v1101
    %v2028 = vpop.f32.mrf.mxu0
    %v2029 = vadd.f32 0.0, %v2028
    %v2030 = vpop.f32.mrf.mxu0
    %v2031 = vadd.f32 0.0, %v2030
    %2032 = vdwg.mxu0
    %2033 = vmatpush.bf16.msra.mxu0 %v1845
    %2034 = vmatpush.bf16.msra.mxu0 %v1842
    %2035 = vmatpush.bf16.msra.mxu0 %v1839
    %2036 = vmatpush.bf16.msra.mxu0 %v1836
    %2037 = vmatpush.bf16.msra.mxu0 %v1833
    %2038 = vmatpush.bf16.msra.mxu0 %v1830
    %2039 = vmatpush.bf16.msra.mxu0 %v1827
    %2040 = vmatpush.bf16.msra.mxu0 %v1824
    %2041 = vmatmul.bf16.gmra.mxu0 %v1057
    %v2042 = vpop.f32.mrf.mxu0
    %v2043 = vadd.f32 %v1954, %v2042
    %v2044 = vpop.f32.mrf.mxu0
    %v2045 = vadd.f32 %v1956, %v2044
    %2046 = vmatmul.bf16.gmra.mxu0 %v1060
    %v2047 = vpop.f32.mrf.mxu0
    %v2048 = vadd.f32 %v1959, %v2047
    %v2049 = vpop.f32.mrf.mxu0
    %v2050 = vadd.f32 %v1961, %v2049
    %2051 = vmatmul.bf16.gmra.mxu0 %v1063
    %v2052 = vpop.f32.mrf.mxu0
    %v2053 = vadd.f32 %v1964, %v2052
    %v2054 = vpop.f32.mrf.mxu0
    %v2055 = vadd.f32 %v1966, %v2054
    %2056 = vmatmul.bf16.gmra.mxu0 %v1066
    %v2057 = vpop.f32.mrf.mxu0
    %v2058 = vadd.f32 %v1969, %v2057
    %v2059 = vpop.f32.mrf.mxu0
    %v2060 = vadd.f32 %v1971, %v2059
    %2061 = vmatmul.bf16.gmra.mxu0 %v1069
    %v2062 = vpop.f32.mrf.mxu0
    %v2063 = vadd.f32 %v1974, %v2062
    %v2064 = vpop.f32.mrf.mxu0
    %v2065 = vadd.f32 %v1976, %v2064
    %2066 = vmatmul.bf16.gmra.mxu0 %v1072
    %v2067 = vpop.f32.mrf.mxu0
    %v2068 = vadd.f32 %v1979, %v2067
    %v2069 = vpop.f32.mrf.mxu0
    %v2070 = vadd.f32 %v1981, %v2069
    %2071 = vmatmul.bf16.gmra.mxu0 %v1075
    %v2072 = vpop.f32.mrf.mxu0
    %v2073 = vadd.f32 %v1984, %v2072
    %v2074 = vpop.f32.mrf.mxu0
    %v2075 = vadd.f32 %v1986, %v2074
    %2076 = vmatmul.bf16.gmra.mxu0 %v1078
    %v2077 = vpop.f32.mrf.mxu0
    %v2078 = vadd.f32 %v1989, %v2077
    %v2079 = vpop.f32.mrf.mxu0
    %v2080 = vadd.f32 %v1991, %v2079
    %2081 = vmatmul.bf16.gmra.mxu0 %v1081
    %v2082 = vpop.f32.mrf.mxu0
    %v2083 = vadd.f32 %v1994, %v2082
    %v2084 = vpop.f32.mrf.mxu0
    %v2085 = vadd.f32 %v1996, %v2084
    %2086 = vmatmul.bf16.gmra.mxu0 %v1084
    %v2087 = vpop.f32.mrf.mxu0
    %v2088 = vadd.f32 %v1999, %v2087
    %v2089 = vpop.f32.mrf.mxu0
    %v2090 = vadd.f32 %v2001, %v2089
    %2091 = vmatmul.bf16.gmra.mxu0 %v1087
    %v2092 = vpop.f32.mrf.mxu0
    %v2093 = vadd.f32 %v2004, %v2092
    %v2094 = vpop.f32.mrf.mxu0
    %v2095 = vadd.f32 %v2006, %v2094
    %2096 = vmatmul.bf16.gmra.mxu0 %v1090
    %v2097 = vpop.f32.mrf.mxu0
    %v2098 = vadd.f32 %v2009, %v2097
    %v2099 = vpop.f32.mrf.mxu0
    %v2100 = vadd.f32 %v2011, %v2099
    %2101 = vmatmul.bf16.gmra.mxu0 %v1093
    %v2102 = vpop.f32.mrf.mxu0
    %v2103 = vadd.f32 %v2014, %v2102
    %v2104 = vpop.f32.mrf.mxu0
    %v2105 = vadd.f32 %v2016, %v2104
    %2106 = vmatmul.bf16.gmra.mxu0 %v1096
    %v2107 = vpop.f32.mrf.mxu0
    %v2108 = vadd.f32 %v2019, %v2107
    %v2109 = vpop.f32.mrf.mxu0
    %v2110 = vadd.f32 %v2021, %v2109
    %2111 = vmatmul.bf16.gmra.mxu0 %v1099
    %v2112 = vpop.f32.mrf.mxu0
    %v2113 = vadd.f32 %v2024, %v2112
    %v2114 = vpop.f32.mrf.mxu0
    %v2115 = vadd.f32 %v2026, %v2114
    %2116 = vmatmul.bf16.gmra.mxu0 %v1102
    %v2117 = vpop.f32.mrf.mxu0
    %v2118 = vadd.f32 %v2029, %v2117
    %v2119 = vpop.f32.mrf.mxu0
    %v2120 = vadd.f32 %v2031, %v2119
    %2121 = vdwg.mxu0
    %2122 = vmatpush.bf16.msra.mxu0 %v1869
    %2123 = vmatpush.bf16.msra.mxu0 %v1866
    %2124 = vmatpush.bf16.msra.mxu0 %v1863
    %2125 = vmatpush.bf16.msra.mxu0 %v1860
    %2126 = vmatpush.bf16.msra.mxu0 %v1857
    %2127 = vmatpush.bf16.msra.mxu0 %v1854
    %2128 = vmatpush.bf16.msra.mxu0 %v1851
    %2129 = vmatpush.bf16.msra.mxu0 %v1848
    %2130 = vmatmul.bf16.gmra.mxu0 %v1058
    %v2131 = vpop.f32.mrf.mxu0
    %v2132 = vadd.f32 %v2043, %v2131
    %v2133 = vpop.f32.mrf.mxu0
    %v2134 = vadd.f32 %v2045, %v2133
    %2135 = vmatmul.bf16.gmra.mxu0 %v1061
    %v2136 = vpop.f32.mrf.mxu0
    %v2137 = vadd.f32 %v2048, %v2136
    %v2138 = vpop.f32.mrf.mxu0
    %v2139 = vadd.f32 %v2050, %v2138
    %2140 = vmatmul.bf16.gmra.mxu0 %v1064
    %v2141 = vpop.f32.mrf.mxu0
    %v2142 = vadd.f32 %v2053, %v2141
    %v2143 = vpop.f32.mrf.mxu0
    %v2144 = vadd.f32 %v2055, %v2143
    %2145 = vmatmul.bf16.gmra.mxu0 %v1067
    %v2146 = vpop.f32.mrf.mxu0
    %v2147 = vadd.f32 %v2058, %v2146
    %v2148 = vpop.f32.mrf.mxu0
    %v2149 = vadd.f32 %v2060, %v2148
    %2150 = vmatmul.bf16.gmra.mxu0 %v1070
    %v2151 = vpop.f32.mrf.mxu0
    %v2152 = vadd.f32 %v2063, %v2151
    %v2153 = vpop.f32.mrf.mxu0
    %v2154 = vadd.f32 %v2065, %v2153
    %2155 = vmatmul.bf16.gmra.mxu0 %v1073
    %v2156 = vpop.f32.mrf.mxu0
    %v2157 = vadd.f32 %v2068, %v2156
    %v2158 = vpop.f32.mrf.mxu0
    %v2159 = vadd.f32 %v2070, %v2158
    %2160 = vmatmul.bf16.gmra.mxu0 %v1076
    %v2161 = vpop.f32.mrf.mxu0
    %v2162 = vadd.f32 %v2073, %v2161
    %v2163 = vpop.f32.mrf.mxu0
    %v2164 = vadd.f32 %v2075, %v2163
    %2165 = vmatmul.bf16.gmra.mxu0 %v1079
    %v2166 = vpop.f32.mrf.mxu0
    %v2167 = vadd.f32 %v2078, %v2166
    %v2168 = vpop.f32.mrf.mxu0
    %v2169 = vadd.f32 %v2080, %v2168
    %2170 = vmatmul.bf16.gmra.mxu0 %v1082
    %v2171 = vpop.f32.mrf.mxu0
    %v2172 = vadd.f32 %v2083, %v2171
    %v2173 = vpop.f32.mrf.mxu0
    %v2174 = vadd.f32 %v2085, %v2173
    %2175 = vmatmul.bf16.gmra.mxu0 %v1085
    %v2176 = vpop.f32.mrf.mxu0
    %v2177 = vadd.f32 %v2088, %v2176
    %v2178 = vpop.f32.mrf.mxu0
    %v2179 = vadd.f32 %v2090, %v2178
    %2180 = vmatmul.bf16.gmra.mxu0 %v1088
    %v2181 = vpop.f32.mrf.mxu0
    %v2182 = vadd.f32 %v2093, %v2181
    %v2183 = vpop.f32.mrf.mxu0
    %v2184 = vadd.f32 %v2095, %v2183
    %2185 = vmatmul.bf16.gmra.mxu0 %v1091
    %v2186 = vpop.f32.mrf.mxu0
    %v2187 = vadd.f32 %v2098, %v2186
    %v2188 = vpop.f32.mrf.mxu0
    %v2189 = vadd.f32 %v2100, %v2188
    %2190 = vmatmul.bf16.gmra.mxu0 %v1094
    %v2191 = vpop.f32.mrf.mxu0
    %v2192 = vadd.f32 %v2103, %v2191
    %v2193 = vpop.f32.mrf.mxu0
    %v2194 = vadd.f32 %v2105, %v2193
    %2195 = vmatmul.bf16.gmra.mxu0 %v1097
    %v2196 = vpop.f32.mrf.mxu0
    %v2197 = vadd.f32 %v2108, %v2196
    %v2198 = vpop.f32.mrf.mxu0
    %v2199 = vadd.f32 %v2110, %v2198
    %2200 = vmatmul.bf16.gmra.mxu0 %v1100
    %v2201 = vpop.f32.mrf.mxu0
    %v2202 = vadd.f32 %v2113, %v2201
    %v2203 = vpop.f32.mrf.mxu0
    %v2204 = vadd.f32 %v2115, %v2203
    %2205 = vmatmul.bf16.gmra.mxu0 %v1103
    %v2206 = vpop.f32.mrf.mxu0
    %v2207 = vadd.f32 %v2118, %v2206
    %v2208 = vpop.f32.mrf.mxu0
    %v2209 = vadd.f32 %v2120, %v2208
    %2210 = vdwg.mxu0
    %2211 = vmatpush.bf16.msra.mxu0 %v1822
    %2212 = vmatpush.bf16.msra.mxu0 %v1819
    %2213 = vmatpush.bf16.msra.mxu0 %v1816
    %2214 = vmatpush.bf16.msra.mxu0 %v1813
    %2215 = vmatpush.bf16.msra.mxu0 %v1810
    %2216 = vmatpush.bf16.msra.mxu0 %v1807
    %2217 = vmatpush.bf16.msra.mxu0 %v1804
    %2218 = vmatpush.bf16.msra.mxu0 %v1801
    %2219 = vmatmul.bf16.gmra.mxu0 %v1056
    %v2220 = vpop.f32.mrf.mxu0
    %v2221 = vadd.f32 0.0, %v2220
    %v2222 = vpop.f32.mrf.mxu0
    %v2223 = vadd.f32 0.0, %v2222
    %2224 = vmatmul.bf16.gmra.mxu0 %v1059
    %v2225 = vpop.f32.mrf.mxu0
    %v2226 = vadd.f32 0.0, %v2225
    %v2227 = vpop.f32.mrf.mxu0
    %v2228 = vadd.f32 0.0, %v2227
    %2229 = vmatmul.bf16.gmra.mxu0 %v1062
    %v2230 = vpop.f32.mrf.mxu0
    %v2231 = vadd.f32 0.0, %v2230
    %v2232 = vpop.f32.mrf.mxu0
    %v2233 = vadd.f32 0.0, %v2232
    %2234 = vmatmul.bf16.gmra.mxu0 %v1065
    %v2235 = vpop.f32.mrf.mxu0
    %v2236 = vadd.f32 0.0, %v2235
    %v2237 = vpop.f32.mrf.mxu0
    %v2238 = vadd.f32 0.0, %v2237
    %2239 = vmatmul.bf16.gmra.mxu0 %v1068
    %v2240 = vpop.f32.mrf.mxu0
    %v2241 = vadd.f32 0.0, %v2240
    %v2242 = vpop.f32.mrf.mxu0
    %v2243 = vadd.f32 0.0, %v2242
    %2244 = vmatmul.bf16.gmra.mxu0 %v1071
    %v2245 = vpop.f32.mrf.mxu0
    %v2246 = vadd.f32 0.0, %v2245
    %v2247 = vpop.f32.mrf.mxu0
    %v2248 = vadd.f32 0.0, %v2247
    %2249 = vmatmul.bf16.gmra.mxu0 %v1074
    %v2250 = vpop.f32.mrf.mxu0
    %v2251 = vadd.f32 0.0, %v2250
    %v2252 = vpop.f32.mrf.mxu0
    %v2253 = vadd.f32 0.0, %v2252
    %2254 = vmatmul.bf16.gmra.mxu0 %v1077
    %v2255 = vpop.f32.mrf.mxu0
    %v2256 = vadd.f32 0.0, %v2255
    %v2257 = vpop.f32.mrf.mxu0
    %v2258 = vadd.f32 0.0, %v2257
    %2259 = vmatmul.bf16.gmra.mxu0 %v1080
    %v2260 = vpop.f32.mrf.mxu0
    %v2261 = vadd.f32 0.0, %v2260
    %v2262 = vpop.f32.mrf.mxu0
    %v2263 = vadd.f32 0.0, %v2262
    %2264 = vmatmul.bf16.gmra.mxu0 %v1083
    %v2265 = vpop.f32.mrf.mxu0
    %v2266 = vadd.f32 0.0, %v2265
    %v2267 = vpop.f32.mrf.mxu0
    %v2268 = vadd.f32 0.0, %v2267
    %2269 = vmatmul.bf16.gmra.mxu0 %v1086
    %v2270 = vpop.f32.mrf.mxu0
    %v2271 = vadd.f32 0.0, %v2270
    %v2272 = vpop.f32.mrf.mxu0
    %v2273 = vadd.f32 0.0, %v2272
    %2274 = vmatmul.bf16.gmra.mxu0 %v1089
    %v2275 = vpop.f32.mrf.mxu0
    %v2276 = vadd.f32 0.0, %v2275
    %v2277 = vpop.f32.mrf.mxu0
    %v2278 = vadd.f32 0.0, %v2277
    %2279 = vmatmul.bf16.gmra.mxu0 %v1092
    %v2280 = vpop.f32.mrf.mxu0
    %v2281 = vadd.f32 0.0, %v2280
    %v2282 = vpop.f32.mrf.mxu0
    %v2283 = vadd.f32 0.0, %v2282
    %2284 = vmatmul.bf16.gmra.mxu0 %v1095
    %v2285 = vpop.f32.mrf.mxu0
    %v2286 = vadd.f32 0.0, %v2285
    %v2287 = vpop.f32.mrf.mxu0
    %v2288 = vadd.f32 0.0, %v2287
    %2289 = vmatmul.bf16.gmra.mxu0 %v1098
    %v2290 = vpop.f32.mrf.mxu0
    %v2291 = vadd.f32 0.0, %v2290
    %v2292 = vpop.f32.mrf.mxu0
    %v2293 = vadd.f32 0.0, %v2292
    %2294 = vmatmul.bf16.gmra.mxu0 %v1101
    %v2295 = vpop.f32.mrf.mxu0
    %v2296 = vadd.f32 0.0, %v2295
    %v2297 = vpop.f32.mrf.mxu0
    %v2298 = vadd.f32 0.0, %v2297
    %2299 = vdwg.mxu0
    %2300 = vmatpush.bf16.msra.mxu0 %v1846
    %2301 = vmatpush.bf16.msra.mxu0 %v1843
    %2302 = vmatpush.bf16.msra.mxu0 %v1840
    %2303 = vmatpush.bf16.msra.mxu0 %v1837
    %2304 = vmatpush.bf16.msra.mxu0 %v1834
    %2305 = vmatpush.bf16.msra.mxu0 %v1831
    %2306 = vmatpush.bf16.msra.mxu0 %v1828
    %2307 = vmatpush.bf16.msra.mxu0 %v1825
    %2308 = vmatmul.bf16.gmra.mxu0 %v1057
    %v2309 = vpop.f32.mrf.mxu0
    %v2310 = vadd.f32 %v2221, %v2309
    %v2311 = vpop.f32.mrf.mxu0
    %v2312 = vadd.f32 %v2223, %v2311
    %2313 = vmatmul.bf16.gmra.mxu0 %v1060
    %v2314 = vpop.f32.mrf.mxu0
    %v2315 = vadd.f32 %v2226, %v2314
    %v2316 = vpop.f32.mrf.mxu0
    %v2317 = vadd.f32 %v2228, %v2316
    %2318 = vmatmul.bf16.gmra.mxu0 %v1063
    %v2319 = vpop.f32.mrf.mxu0
    %v2320 = vadd.f32 %v2231, %v2319
    %v2321 = vpop.f32.mrf.mxu0
    %v2322 = vadd.f32 %v2233, %v2321
    %2323 = vmatmul.bf16.gmra.mxu0 %v1066
    %v2324 = vpop.f32.mrf.mxu0
    %v2325 = vadd.f32 %v2236, %v2324
    %v2326 = vpop.f32.mrf.mxu0
    %v2327 = vadd.f32 %v2238, %v2326
    %2328 = vmatmul.bf16.gmra.mxu0 %v1069
    %v2329 = vpop.f32.mrf.mxu0
    %v2330 = vadd.f32 %v2241, %v2329
    %v2331 = vpop.f32.mrf.mxu0
    %v2332 = vadd.f32 %v2243, %v2331
    %2333 = vmatmul.bf16.gmra.mxu0 %v1072
    %v2334 = vpop.f32.mrf.mxu0
    %v2335 = vadd.f32 %v2246, %v2334
    %v2336 = vpop.f32.mrf.mxu0
    %v2337 = vadd.f32 %v2248, %v2336
    %2338 = vmatmul.bf16.gmra.mxu0 %v1075
    %v2339 = vpop.f32.mrf.mxu0
    %v2340 = vadd.f32 %v2251, %v2339
    %v2341 = vpop.f32.mrf.mxu0
    %v2342 = vadd.f32 %v2253, %v2341
    %2343 = vmatmul.bf16.gmra.mxu0 %v1078
    %v2344 = vpop.f32.mrf.mxu0
    %v2345 = vadd.f32 %v2256, %v2344
    %v2346 = vpop.f32.mrf.mxu0
    %v2347 = vadd.f32 %v2258, %v2346
    %2348 = vmatmul.bf16.gmra.mxu0 %v1081
    %v2349 = vpop.f32.mrf.mxu0
    %v2350 = vadd.f32 %v2261, %v2349
    %v2351 = vpop.f32.mrf.mxu0
    %v2352 = vadd.f32 %v2263, %v2351
    %2353 = vmatmul.bf16.gmra.mxu0 %v1084
    %v2354 = vpop.f32.mrf.mxu0
    %v2355 = vadd.f32 %v2266, %v2354
    %v2356 = vpop.f32.mrf.mxu0
    %v2357 = vadd.f32 %v2268, %v2356
    %2358 = vmatmul.bf16.gmra.mxu0 %v1087
    %v2359 = vpop.f32.mrf.mxu0
    %v2360 = vadd.f32 %v2271, %v2359
    %v2361 = vpop.f32.mrf.mxu0
    %v2362 = vadd.f32 %v2273, %v2361
    %2363 = vmatmul.bf16.gmra.mxu0 %v1090
    %v2364 = vpop.f32.mrf.mxu0
    %v2365 = vadd.f32 %v2276, %v2364
    %v2366 = vpop.f32.mrf.mxu0
    %v2367 = vadd.f32 %v2278, %v2366
    %2368 = vmatmul.bf16.gmra.mxu0 %v1093
    %v2369 = vpop.f32.mrf.mxu0
    %v2370 = vadd.f32 %v2281, %v2369
    %v2371 = vpop.f32.mrf.mxu0
    %v2372 = vadd.f32 %v2283, %v2371
    %2373 = vmatmul.bf16.gmra.mxu0 %v1096
    %v2374 = vpop.f32.mrf.mxu0
    %v2375 = vadd.f32 %v2286, %v2374
    %v2376 = vpop.f32.mrf.mxu0
    %v2377 = vadd.f32 %v2288, %v2376
    %2378 = vmatmul.bf16.gmra.mxu0 %v1099
    %v2379 = vpop.f32.mrf.mxu0
    %v2380 = vadd.f32 %v2291, %v2379
    %v2381 = vpop.f32.mrf.mxu0
    %v2382 = vadd.f32 %v2293, %v2381
    %2383 = vmatmul.bf16.gmra.mxu0 %v1102
    %v2384 = vpop.f32.mrf.mxu0
    %v2385 = vadd.f32 %v2296, %v2384
    %v2386 = vpop.f32.mrf.mxu0
    %v2387 = vadd.f32 %v2298, %v2386
    %2388 = vdwg.mxu0
    %2389 = vmatpush.bf16.msra.mxu0 %v1870
    %2390 = vmatpush.bf16.msra.mxu0 %v1867
    %2391 = vmatpush.bf16.msra.mxu0 %v1864
    %2392 = vmatpush.bf16.msra.mxu0 %v1861
    %2393 = vmatpush.bf16.msra.mxu0 %v1858
    %2394 = vmatpush.bf16.msra.mxu0 %v1855
    %2395 = vmatpush.bf16.msra.mxu0 %v1852
    %2396 = vmatpush.bf16.msra.mxu0 %v1849
    %2397 = vmatmul.bf16.gmra.mxu0 %v1058
    %v2398 = vpop.f32.mrf.mxu0
    %v2399 = vadd.f32 %v2310, %v2398
    %v2400 = vpop.f32.mrf.mxu0
    %v2401 = vadd.f32 %v2312, %v2400
    %2402 = vmatmul.bf16.gmra.mxu0 %v1061
    %v2403 = vpop.f32.mrf.mxu0
    %v2404 = vadd.f32 %v2315, %v2403
    %v2405 = vpop.f32.mrf.mxu0
    %v2406 = vadd.f32 %v2317, %v2405
    %2407 = vmatmul.bf16.gmra.mxu0 %v1064
    %v2408 = vpop.f32.mrf.mxu0
    %v2409 = vadd.f32 %v2320, %v2408
    %v2410 = vpop.f32.mrf.mxu0
    %v2411 = vadd.f32 %v2322, %v2410
    %2412 = vmatmul.bf16.gmra.mxu0 %v1067
    %v2413 = vpop.f32.mrf.mxu0
    %v2414 = vadd.f32 %v2325, %v2413
    %v2415 = vpop.f32.mrf.mxu0
    %v2416 = vadd.f32 %v2327, %v2415
    %2417 = vmatmul.bf16.gmra.mxu0 %v1070
    %v2418 = vpop.f32.mrf.mxu0
    %v2419 = vadd.f32 %v2330, %v2418
    %v2420 = vpop.f32.mrf.mxu0
    %v2421 = vadd.f32 %v2332, %v2420
    %2422 = vmatmul.bf16.gmra.mxu0 %v1073
    %v2423 = vpop.f32.mrf.mxu0
    %v2424 = vadd.f32 %v2335, %v2423
    %v2425 = vpop.f32.mrf.mxu0
    %v2426 = vadd.f32 %v2337, %v2425
    %2427 = vmatmul.bf16.gmra.mxu0 %v1076
    %v2428 = vpop.f32.mrf.mxu0
    %v2429 = vadd.f32 %v2340, %v2428
    %v2430 = vpop.f32.mrf.mxu0
    %v2431 = vadd.f32 %v2342, %v2430
    %2432 = vmatmul.bf16.gmra.mxu0 %v1079
    %v2433 = vpop.f32.mrf.mxu0
    %v2434 = vadd.f32 %v2345, %v2433
    %v2435 = vpop.f32.mrf.mxu0
    %v2436 = vadd.f32 %v2347, %v2435
    %2437 = vmatmul.bf16.gmra.mxu0 %v1082
    %v2438 = vpop.f32.mrf.mxu0
    %v2439 = vadd.f32 %v2350, %v2438
    %v2440 = vpop.f32.mrf.mxu0
    %v2441 = vadd.f32 %v2352, %v2440
    %2442 = vmatmul.bf16.gmra.mxu0 %v1085
    %v2443 = vpop.f32.mrf.mxu0
    %v2444 = vadd.f32 %v2355, %v2443
    %v2445 = vpop.f32.mrf.mxu0
    %v2446 = vadd.f32 %v2357, %v2445
    %2447 = vmatmul.bf16.gmra.mxu0 %v1088
    %v2448 = vpop.f32.mrf.mxu0
    %v2449 = vadd.f32 %v2360, %v2448
    %v2450 = vpop.f32.mrf.mxu0
    %v2451 = vadd.f32 %v2362, %v2450
    %2452 = vmatmul.bf16.gmra.mxu0 %v1091
    %v2453 = vpop.f32.mrf.mxu0
    %v2454 = vadd.f32 %v2365, %v2453
    %v2455 = vpop.f32.mrf.mxu0
    %v2456 = vadd.f32 %v2367, %v2455
    %2457 = vmatmul.bf16.gmra.mxu0 %v1094
    %v2458 = vpop.f32.mrf.mxu0
    %v2459 = vadd.f32 %v2370, %v2458
    %v2460 = vpop.f32.mrf.mxu0
    %v2461 = vadd.f32 %v2372, %v2460
    %2462 = vmatmul.bf16.gmra.mxu0 %v1097
    %v2463 = vpop.f32.mrf.mxu0
    %v2464 = vadd.f32 %v2375, %v2463
    %v2465 = vpop.f32.mrf.mxu0
    %v2466 = vadd.f32 %v2377, %v2465
    %2467 = vmatmul.bf16.gmra.mxu0 %v1100
    %v2468 = vpop.f32.mrf.mxu0
    %v2469 = vadd.f32 %v2380, %v2468
    %v2470 = vpop.f32.mrf.mxu0
    %v2471 = vadd.f32 %v2382, %v2470
    %2472 = vmatmul.bf16.gmra.mxu0 %v1103
    %v2473 = vpop.f32.mrf.mxu0
    %v2474 = vadd.f32 %v2385, %v2473
    %v2475 = vpop.f32.mrf.mxu0
    %v2476 = vadd.f32 %v2387, %v2475
    %2477 = vdwg.mxu0
    %2478 = vmatpush.bf16.msra.mxu0 %v1823
    %2479 = vmatpush.bf16.msra.mxu0 %v1820
    %2480 = vmatpush.bf16.msra.mxu0 %v1817
    %2481 = vmatpush.bf16.msra.mxu0 %v1814
    %2482 = vmatpush.bf16.msra.mxu0 %v1811
    %2483 = vmatpush.bf16.msra.mxu0 %v1808
    %2484 = vmatpush.bf16.msra.mxu0 %v1805
    %2485 = vmatpush.bf16.msra.mxu0 %v1802
    %2486 = vmatmul.bf16.gmra.mxu0 %v1056
    %v2487 = vpop.f32.mrf.mxu0
    %v2488 = vadd.f32 0.0, %v2487
    %v2489 = vpop.f32.mrf.mxu0
    %v2490 = vadd.f32 0.0, %v2489
    %2491 = vmatmul.bf16.gmra.mxu0 %v1059
    %v2492 = vpop.f32.mrf.mxu0
    %v2493 = vadd.f32 0.0, %v2492
    %v2494 = vpop.f32.mrf.mxu0
    %v2495 = vadd.f32 0.0, %v2494
    %2496 = vmatmul.bf16.gmra.mxu0 %v1062
    %v2497 = vpop.f32.mrf.mxu0
    %v2498 = vadd.f32 0.0, %v2497
    %v2499 = vpop.f32.mrf.mxu0
    %v2500 = vadd.f32 0.0, %v2499
    %2501 = vmatmul.bf16.gmra.mxu0 %v1065
    %v2502 = vpop.f32.mrf.mxu0
    %v2503 = vadd.f32 0.0, %v2502
    %v2504 = vpop.f32.mrf.mxu0
    %v2505 = vadd.f32 0.0, %v2504
    %2506 = vmatmul.bf16.gmra.mxu0 %v1068
    %v2507 = vpop.f32.mrf.mxu0
    %v2508 = vadd.f32 0.0, %v2507
    %v2509 = vpop.f32.mrf.mxu0
    %v2510 = vadd.f32 0.0, %v2509
    %2511 = vmatmul.bf16.gmra.mxu0 %v1071
    %v2512 = vpop.f32.mrf.mxu0
    %v2513 = vadd.f32 0.0, %v2512
    %v2514 = vpop.f32.mrf.mxu0
    %v2515 = vadd.f32 0.0, %v2514
    %2516 = vmatmul.bf16.gmra.mxu0 %v1074
    %v2517 = vpop.f32.mrf.mxu0
    %v2518 = vadd.f32 0.0, %v2517
    %v2519 = vpop.f32.mrf.mxu0
    %v2520 = vadd.f32 0.0, %v2519
    %2521 = vmatmul.bf16.gmra.mxu0 %v1077
    %v2522 = vpop.f32.mrf.mxu0
    %v2523 = vadd.f32 0.0, %v2522
    %v2524 = vpop.f32.mrf.mxu0
    %v2525 = vadd.f32 0.0, %v2524
    %2526 = vmatmul.bf16.gmra.mxu0 %v1080
    %v2527 = vpop.f32.mrf.mxu0
    %v2528 = vadd.f32 0.0, %v2527
    %v2529 = vpop.f32.mrf.mxu0
    %v2530 = vadd.f32 0.0, %v2529
    %2531 = vmatmul.bf16.gmra.mxu0 %v1083
    %v2532 = vpop.f32.mrf.mxu0
    %v2533 = vadd.f32 0.0, %v2532
    %v2534 = vpop.f32.mrf.mxu0
    %v2535 = vadd.f32 0.0, %v2534
    %2536 = vmatmul.bf16.gmra.mxu0 %v1086
    %v2537 = vpop.f32.mrf.mxu0
    %v2538 = vadd.f32 0.0, %v2537
    %v2539 = vpop.f32.mrf.mxu0
    %v2540 = vadd.f32 0.0, %v2539
    %2541 = vmatmul.bf16.gmra.mxu0 %v1089
    %v2542 = vpop.f32.mrf.mxu0
    %v2543 = vadd.f32 0.0, %v2542
    %v2544 = vpop.f32.mrf.mxu0
    %v2545 = vadd.f32 0.0, %v2544
    %2546 = vmatmul.bf16.gmra.mxu0 %v1092
    %v2547 = vpop.f32.mrf.mxu0
    %v2548 = vadd.f32 0.0, %v2547
    %v2549 = vpop.f32.mrf.mxu0
    %v2550 = vadd.f32 0.0, %v2549
    %2551 = vmatmul.bf16.gmra.mxu0 %v1095
    %v2552 = vpop.f32.mrf.mxu0
    %v2553 = vadd.f32 0.0, %v2552
    %v2554 = vpop.f32.mrf.mxu0
    %v2555 = vadd.f32 0.0, %v2554
    %2556 = vmatmul.bf16.gmra.mxu0 %v1098
    %v2557 = vpop.f32.mrf.mxu0
    %v2558 = vadd.f32 0.0, %v2557
    %v2559 = vpop.f32.mrf.mxu0
    %v2560 = vadd.f32 0.0, %v2559
    %2561 = vmatmul.bf16.gmra.mxu0 %v1101
    %v2562 = vpop.f32.mrf.mxu0
    %v2563 = vadd.f32 0.0, %v2562
    %v2564 = vpop.f32.mrf.mxu0
    %v2565 = vadd.f32 0.0, %v2564
    %2566 = vdwg.mxu0
    %2567 = vmatpush.bf16.msra.mxu0 %v1847
    %2568 = vmatpush.bf16.msra.mxu0 %v1844
    %2569 = vmatpush.bf16.msra.mxu0 %v1841
    %2570 = vmatpush.bf16.msra.mxu0 %v1838
    %2571 = vmatpush.bf16.msra.mxu0 %v1835
    %2572 = vmatpush.bf16.msra.mxu0 %v1832
    %2573 = vmatpush.bf16.msra.mxu0 %v1829
    %2574 = vmatpush.bf16.msra.mxu0 %v1826
    %2575 = vmatmul.bf16.gmra.mxu0 %v1057
    %v2576 = vpop.f32.mrf.mxu0
    %v2577 = vadd.f32 %v2488, %v2576
    %v2578 = vpop.f32.mrf.mxu0
    %v2579 = vadd.f32 %v2490, %v2578
    %2580 = vmatmul.bf16.gmra.mxu0 %v1060
    %v2581 = vpop.f32.mrf.mxu0
    %v2582 = vadd.f32 %v2493, %v2581
    %v2583 = vpop.f32.mrf.mxu0
    %v2584 = vadd.f32 %v2495, %v2583
    %2585 = vmatmul.bf16.gmra.mxu0 %v1063
    %v2586 = vpop.f32.mrf.mxu0
    %v2587 = vadd.f32 %v2498, %v2586
    %v2588 = vpop.f32.mrf.mxu0
    %v2589 = vadd.f32 %v2500, %v2588
    %2590 = vmatmul.bf16.gmra.mxu0 %v1066
    %v2591 = vpop.f32.mrf.mxu0
    %v2592 = vadd.f32 %v2503, %v2591
    %v2593 = vpop.f32.mrf.mxu0
    %v2594 = vadd.f32 %v2505, %v2593
    %2595 = vmatmul.bf16.gmra.mxu0 %v1069
    %v2596 = vpop.f32.mrf.mxu0
    %v2597 = vadd.f32 %v2508, %v2596
    %v2598 = vpop.f32.mrf.mxu0
    %v2599 = vadd.f32 %v2510, %v2598
    %2600 = vmatmul.bf16.gmra.mxu0 %v1072
    %v2601 = vpop.f32.mrf.mxu0
    %v2602 = vadd.f32 %v2513, %v2601
    %v2603 = vpop.f32.mrf.mxu0
    %v2604 = vadd.f32 %v2515, %v2603
    %2605 = vmatmul.bf16.gmra.mxu0 %v1075
    %v2606 = vpop.f32.mrf.mxu0
    %v2607 = vadd.f32 %v2518, %v2606
    %v2608 = vpop.f32.mrf.mxu0
    %v2609 = vadd.f32 %v2520, %v2608
    %2610 = vmatmul.bf16.gmra.mxu0 %v1078
    %v2611 = vpop.f32.mrf.mxu0
    %v2612 = vadd.f32 %v2523, %v2611
    %v2613 = vpop.f32.mrf.mxu0
    %v2614 = vadd.f32 %v2525, %v2613
    %2615 = vmatmul.bf16.gmra.mxu0 %v1081
    %v2616 = vpop.f32.mrf.mxu0
    %v2617 = vadd.f32 %v2528, %v2616
    %v2618 = vpop.f32.mrf.mxu0
    %v2619 = vadd.f32 %v2530, %v2618
    %2620 = vmatmul.bf16.gmra.mxu0 %v1084
    %v2621 = vpop.f32.mrf.mxu0
    %v2622 = vadd.f32 %v2533, %v2621
    %v2623 = vpop.f32.mrf.mxu0
    %v2624 = vadd.f32 %v2535, %v2623
    %2625 = vmatmul.bf16.gmra.mxu0 %v1087
    %v2626 = vpop.f32.mrf.mxu0
    %v2627 = vadd.f32 %v2538, %v2626
    %v2628 = vpop.f32.mrf.mxu0
    %v2629 = vadd.f32 %v2540, %v2628
    %2630 = vmatmul.bf16.gmra.mxu0 %v1090
    %v2631 = vpop.f32.mrf.mxu0
    %v2632 = vadd.f32 %v2543, %v2631
    %v2633 = vpop.f32.mrf.mxu0
    %v2634 = vadd.f32 %v2545, %v2633
    %2635 = vmatmul.bf16.gmra.mxu0 %v1093
    %v2636 = vpop.f32.mrf.mxu0
    %v2637 = vadd.f32 %v2548, %v2636
    %v2638 = vpop.f32.mrf.mxu0
    %v2639 = vadd.f32 %v2550, %v2638
    %2640 = vmatmul.bf16.gmra.mxu0 %v1096
    %v2641 = vpop.f32.mrf.mxu0
    %v2642 = vadd.f32 %v2553, %v2641
    %v2643 = vpop.f32.mrf.mxu0
    %v2644 = vadd.f32 %v2555, %v2643
    %2645 = vmatmul.bf16.gmra.mxu0 %v1099
    %v2646 = vpop.f32.mrf.mxu0
    %v2647 = vadd.f32 %v2558, %v2646
    %v2648 = vpop.f32.mrf.mxu0
    %v2649 = vadd.f32 %v2560, %v2648
    %2650 = vmatmul.bf16.gmra.mxu0 %v1102
    %v2651 = vpop.f32.mrf.mxu0
    %v2652 = vadd.f32 %v2563, %v2651
    %v2653 = vpop.f32.mrf.mxu0
    %v2654 = vadd.f32 %v2565, %v2653
    %2655 = vdwg.mxu0
    %2656 = vmatpush.bf16.msra.mxu0 %v1871
    %2657 = vmatpush.bf16.msra.mxu0 %v1868
    %2658 = vmatpush.bf16.msra.mxu0 %v1865
    %2659 = vmatpush.bf16.msra.mxu0 %v1862
    %2660 = vmatpush.bf16.msra.mxu0 %v1859
    %2661 = vmatpush.bf16.msra.mxu0 %v1856
    %2662 = vmatpush.bf16.msra.mxu0 %v1853
    %2663 = vmatpush.bf16.msra.mxu0 %v1850
    %2664 = vmatmul.bf16.gmra.mxu0 %v1058
    %v2665 = vpop.f32.mrf.mxu0
    %v2666 = vadd.f32 %v2577, %v2665
    %v2667 = vpop.f32.mrf.mxu0
    %v2668 = vadd.f32 %v2579, %v2667
    %2669 = vmatmul.bf16.gmra.mxu0 %v1061
    %v2670 = vpop.f32.mrf.mxu0
    %v2671 = vadd.f32 %v2582, %v2670
    %v2672 = vpop.f32.mrf.mxu0
    %v2673 = vadd.f32 %v2584, %v2672
    %2674 = vmatmul.bf16.gmra.mxu0 %v1064
    %v2675 = vpop.f32.mrf.mxu0
    %v2676 = vadd.f32 %v2587, %v2675
    %v2677 = vpop.f32.mrf.mxu0
    %v2678 = vadd.f32 %v2589, %v2677
    %2679 = vmatmul.bf16.gmra.mxu0 %v1067
    %v2680 = vpop.f32.mrf.mxu0
    %v2681 = vadd.f32 %v2592, %v2680
    %v2682 = vpop.f32.mrf.mxu0
    %v2683 = vadd.f32 %v2594, %v2682
    %2684 = vmatmul.bf16.gmra.mxu0 %v1070
    %v2685 = vpop.f32.mrf.mxu0
    %v2686 = vadd.f32 %v2597, %v2685
    %v2687 = vpop.f32.mrf.mxu0
    %v2688 = vadd.f32 %v2599, %v2687
    %2689 = vmatmul.bf16.gmra.mxu0 %v1073
    %v2690 = vpop.f32.mrf.mxu0
    %v2691 = vadd.f32 %v2602, %v2690
    %v2692 = vpop.f32.mrf.mxu0
    %v2693 = vadd.f32 %v2604, %v2692
    %2694 = vmatmul.bf16.gmra.mxu0 %v1076
    %v2695 = vpop.f32.mrf.mxu0
    %v2696 = vadd.f32 %v2607, %v2695
    %v2697 = vpop.f32.mrf.mxu0
    %v2698 = vadd.f32 %v2609, %v2697
    %2699 = vmatmul.bf16.gmra.mxu0 %v1079
    %v2700 = vpop.f32.mrf.mxu0
    %v2701 = vadd.f32 %v2612, %v2700
    %v2702 = vpop.f32.mrf.mxu0
    %v2703 = vadd.f32 %v2614, %v2702
    %2704 = vmatmul.bf16.gmra.mxu0 %v1082
    %v2705 = vpop.f32.mrf.mxu0
    %v2706 = vadd.f32 %v2617, %v2705
    %v2707 = vpop.f32.mrf.mxu0
    %v2708 = vadd.f32 %v2619, %v2707
    %2709 = vmatmul.bf16.gmra.mxu0 %v1085
    %v2710 = vpop.f32.mrf.mxu0
    %v2711 = vadd.f32 %v2622, %v2710
    %v2712 = vpop.f32.mrf.mxu0
    %v2713 = vadd.f32 %v2624, %v2712
    %2714 = vmatmul.bf16.gmra.mxu0 %v1088
    %v2715 = vpop.f32.mrf.mxu0
    %v2716 = vadd.f32 %v2627, %v2715
    %v2717 = vpop.f32.mrf.mxu0
    %v2718 = vadd.f32 %v2629, %v2717
    %2719 = vmatmul.bf16.gmra.mxu0 %v1091
    %v2720 = vpop.f32.mrf.mxu0
    %v2721 = vadd.f32 %v2632, %v2720
    %v2722 = vpop.f32.mrf.mxu0
    %v2723 = vadd.f32 %v2634, %v2722
    %2724 = vmatmul.bf16.gmra.mxu0 %v1094
    %v2725 = vpop.f32.mrf.mxu0
    %v2726 = vadd.f32 %v2637, %v2725
    %v2727 = vpop.f32.mrf.mxu0
    %v2728 = vadd.f32 %v2639, %v2727
    %2729 = vmatmul.bf16.gmra.mxu0 %v1097
    %v2730 = vpop.f32.mrf.mxu0
    %v2731 = vadd.f32 %v2642, %v2730
    %v2732 = vpop.f32.mrf.mxu0
    %v2733 = vadd.f32 %v2644, %v2732
    %2734 = vmatmul.bf16.gmra.mxu0 %v1100
    %v2735 = vpop.f32.mrf.mxu0
    %v2736 = vadd.f32 %v2647, %v2735
    %v2737 = vpop.f32.mrf.mxu0
    %v2738 = vadd.f32 %v2649, %v2737
    %2739 = vmatmul.bf16.gmra.mxu0 %v1103
    %v2740 = vpop.f32.mrf.mxu0
    %v2741 = vadd.f32 %v2652, %v2740
    %v2742 = vpop.f32.mrf.mxu0
    %v2743 = vadd.f32 %v2654, %v2742
    %2744 = vdwg.mxu0
    %v2809 = vunpack.c.l.b16 %v800
    %v2810 = vunpack.c.h.b16 %v800
    %v2811 = vunpack.c.l.b16 %v801
    %v2812 = vunpack.c.l.b16 %v802
    %v2813 = vunpack.c.h.b16 %v802
    %v2814 = vunpack.c.l.b16 %v803
    %v2815 = vunpack.c.l.b16 %v804
    %v2816 = vunpack.c.h.b16 %v804
    %v2817 = vunpack.c.l.b16 %v805
    %v2818 = vunpack.c.l.b16 %v806
    %v2819 = vunpack.c.h.b16 %v806
    %v2820 = vunpack.c.l.b16 %v807
    %v2821 = vunpack.c.l.b16 %v808
    %v2822 = vunpack.c.h.b16 %v808
    %v2823 = vunpack.c.l.b16 %v809
    %v2824 = vunpack.c.l.b16 %v810
    %v2825 = vunpack.c.h.b16 %v810
    %v2826 = vunpack.c.l.b16 %v811
    %v2827 = vunpack.c.l.b16 %v812
    %v2828 = vunpack.c.h.b16 %v812
    %v2829 = vunpack.c.l.b16 %v813
    %v2830 = vunpack.c.l.b16 %v814
    %v2831 = vunpack.c.h.b16 %v814
    %v2832 = vunpack.c.l.b16 %v815
    %v2833 = vunpack.c.l.b16 %v816
    %v2834 = vunpack.c.h.b16 %v816
    %v2835 = vunpack.c.l.b16 %v817
    %v2836 = vunpack.c.l.b16 %v818
    %v2837 = vunpack.c.h.b16 %v818
    %v2838 = vunpack.c.l.b16 %v819
    %v2839 = vunpack.c.l.b16 %v820
    %v2840 = vunpack.c.h.b16 %v820
    %v2841 = vunpack.c.l.b16 %v821
    %v2842 = vunpack.c.l.b16 %v822
    %v2843 = vunpack.c.h.b16 %v822
    %v2844 = vunpack.c.l.b16 %v823
    %v2845 = vunpack.c.l.b16 %v824
    %v2846 = vunpack.c.h.b16 %v824
    %v2847 = vunpack.c.l.b16 %v825
    %v2848 = vunpack.c.l.b16 %v826
    %v2849 = vunpack.c.h.b16 %v826
    %v2850 = vunpack.c.l.b16 %v827
    %v2851 = vunpack.c.l.b16 %v828
    %v2852 = vunpack.c.h.b16 %v828
    %v2853 = vunpack.c.l.b16 %v829
    %v2854 = vunpack.c.l.b16 %v830
    %v2855 = vunpack.c.h.b16 %v830
    %v2856 = vunpack.c.l.b16 %v831
    %v2857 = vunpack.c.l.b16 %v832
    %v2858 = vunpack.c.h.b16 %v832
    %v2859 = vunpack.c.l.b16 %v833
    %v2860 = vunpack.c.l.b16 %v834
    %v2861 = vunpack.c.h.b16 %v834
    %v2862 = vunpack.c.l.b16 %v835
    %v2863 = vunpack.c.l.b16 %v836
    %v2864 = vunpack.c.h.b16 %v836
    %v2865 = vunpack.c.l.b16 %v837
    %v2866 = vunpack.c.l.b16 %v838
    %v2867 = vunpack.c.h.b16 %v838
    %v2868 = vunpack.c.l.b16 %v839
    %v2869 = vunpack.c.l.b16 %v840
    %v2870 = vunpack.c.h.b16 %v840
    %v2871 = vunpack.c.l.b16 %v841
    %v2872 = vunpack.c.l.b16 %v842
    %v2873 = vunpack.c.h.b16 %v842
    %v2874 = vunpack.c.l.b16 %v843
    %v2875 = vunpack.c.l.b16 %v844
    %v2876 = vunpack.c.h.b16 %v844
    %v2877 = vunpack.c.l.b16 %v845
    %v2878 = vunpack.c.l.b16 %v846
    %v2879 = vunpack.c.h.b16 %v846
    %v2880 = vunpack.c.l.b16 %v847
    %v2881 = vunpack.c.l.b16 %v848
    %v2882 = vunpack.c.h.b16 %v848
    %v2883 = vunpack.c.l.b16 %v849
    %v2884 = vunpack.c.l.b16 %v850
    %v2885 = vunpack.c.h.b16 %v850
    %v2886 = vunpack.c.l.b16 %v851
    %v2887 = vunpack.c.l.b16 %v852
    %v2888 = vunpack.c.h.b16 %v852
    %v2889 = vunpack.c.l.b16 %v853
    %v2890 = vunpack.c.l.b16 %v854
    %v2891 = vunpack.c.h.b16 %v854
    %v2892 = vunpack.c.l.b16 %v855
    %v2893 = vunpack.c.l.b16 %v856
    %v2894 = vunpack.c.h.b16 %v856
    %v2895 = vunpack.c.l.b16 %v857
    %v2896 = vunpack.c.l.b16 %v858
    %v2897 = vunpack.c.h.b16 %v858
    %v2898 = vunpack.c.l.b16 %v859
    %v2899 = vunpack.c.l.b16 %v860
    %v2900 = vunpack.c.h.b16 %v860
    %v2901 = vunpack.c.l.b16 %v861
    %v2902 = vunpack.c.l.b16 %v862
    %v2903 = vunpack.c.h.b16 %v862
    %v2904 = vunpack.c.l.b16 %v863
    %v2905 = vpack.c.b16 %v2812, %v2809
    %v2906 = vpack.c.b16 %v2813, %v2810
    %v2907 = vpack.c.b16 %v2814, %v2811
    %v2908 = vpack.c.b16 %v2818, %v2815
    %v2909 = vpack.c.b16 %v2819, %v2816
    %v2910 = vpack.c.b16 %v2820, %v2817
    %v2911 = vpack.c.b16 %v2824, %v2821
    %v2912 = vpack.c.b16 %v2825, %v2822
    %v2913 = vpack.c.b16 %v2826, %v2823
    %v2914 = vpack.c.b16 %v2830, %v2827
    %v2915 = vpack.c.b16 %v2831, %v2828
    %v2916 = vpack.c.b16 %v2832, %v2829
    %v2917 = vpack.c.b16 %v2836, %v2833
    %v2918 = vpack.c.b16 %v2837, %v2834
    %v2919 = vpack.c.b16 %v2838, %v2835
    %v2920 = vpack.c.b16 %v2842, %v2839
    %v2921 = vpack.c.b16 %v2843, %v2840
    %v2922 = vpack.c.b16 %v2844, %v2841
    %v2923 = vpack.c.b16 %v2848, %v2845
    %v2924 = vpack.c.b16 %v2849, %v2846
    %v2925 = vpack.c.b16 %v2850, %v2847
    %v2926 = vpack.c.b16 %v2854, %v2851
    %v2927 = vpack.c.b16 %v2855, %v2852
    %v2928 = vpack.c.b16 %v2856, %v2853
    %v2929 = vpack.c.b16 %v2860, %v2857
    %v2930 = vpack.c.b16 %v2861, %v2858
    %v2931 = vpack.c.b16 %v2862, %v2859
    %v2932 = vpack.c.b16 %v2866, %v2863
    %v2933 = vpack.c.b16 %v2867, %v2864
    %v2934 = vpack.c.b16 %v2868, %v2865
    %v2935 = vpack.c.b16 %v2872, %v2869
    %v2936 = vpack.c.b16 %v2873, %v2870
    %v2937 = vpack.c.b16 %v2874, %v2871
    %v2938 = vpack.c.b16 %v2878, %v2875
    %v2939 = vpack.c.b16 %v2879, %v2876
    %v2940 = vpack.c.b16 %v2880, %v2877
    %v2941 = vpack.c.b16 %v2884, %v2881
    %v2942 = vpack.c.b16 %v2885, %v2882
    %v2943 = vpack.c.b16 %v2886, %v2883
    %v2944 = vpack.c.b16 %v2890, %v2887
    %v2945 = vpack.c.b16 %v2891, %v2888
    %v2946 = vpack.c.b16 %v2892, %v2889
    %v2947 = vpack.c.b16 %v2896, %v2893
    %v2948 = vpack.c.b16 %v2897, %v2894
    %v2949 = vpack.c.b16 %v2898, %v2895
    %v2950 = vpack.c.b16 %v2902, %v2899
    %v2951 = vpack.c.b16 %v2903, %v2900
    %v2952 = vpack.c.b16 %v2904, %v2901
    %3001 = vmatpush.bf16.msra.mxu0 %v1821
    %3002 = vmatpush.bf16.msra.mxu0 %v1818
    %3003 = vmatpush.bf16.msra.mxu0 %v1815
    %3004 = vmatpush.bf16.msra.mxu0 %v1812
    %3005 = vmatpush.bf16.msra.mxu0 %v1809
    %3006 = vmatpush.bf16.msra.mxu0 %v1806
    %3007 = vmatpush.bf16.msra.mxu0 %v1803
    %3008 = vmatpush.bf16.msra.mxu0 %v1800
    %3009 = vmatmul.bf16.gmra.mxu0 %v2905
    %v3010 = vpop.f32.mrf.mxu0
    %v3011 = vadd.f32 %v2132, %v3010
    %v3012 = vpop.f32.mrf.mxu0
    %v3013 = vadd.f32 %v2134, %v3012
    %3014 = vmatmul.bf16.gmra.mxu0 %v2908
    %v3015 = vpop.f32.mrf.mxu0
    %v3016 = vadd.f32 %v2137, %v3015
    %v3017 = vpop.f32.mrf.mxu0
    %v3018 = vadd.f32 %v2139, %v3017
    %3019 = vmatmul.bf16.gmra.mxu0 %v2911
    %v3020 = vpop.f32.mrf.mxu0
    %v3021 = vadd.f32 %v2142, %v3020
    %v3022 = vpop.f32.mrf.mxu0
    %v3023 = vadd.f32 %v2144, %v3022
    %3024 = vmatmul.bf16.gmra.mxu0 %v2914
    %v3025 = vpop.f32.mrf.mxu0
    %v3026 = vadd.f32 %v2147, %v3025
    %v3027 = vpop.f32.mrf.mxu0
    %v3028 = vadd.f32 %v2149, %v3027
    %3029 = vmatmul.bf16.gmra.mxu0 %v2917
    %v3030 = vpop.f32.mrf.mxu0
    %v3031 = vadd.f32 %v2152, %v3030
    %v3032 = vpop.f32.mrf.mxu0
    %v3033 = vadd.f32 %v2154, %v3032
    %3034 = vmatmul.bf16.gmra.mxu0 %v2920
    %v3035 = vpop.f32.mrf.mxu0
    %v3036 = vadd.f32 %v2157, %v3035
    %v3037 = vpop.f32.mrf.mxu0
    %v3038 = vadd.f32 %v2159, %v3037
    %3039 = vmatmul.bf16.gmra.mxu0 %v2923
    %v3040 = vpop.f32.mrf.mxu0
    %v3041 = vadd.f32 %v2162, %v3040
    %v3042 = vpop.f32.mrf.mxu0
    %v3043 = vadd.f32 %v2164, %v3042
    %3044 = vmatmul.bf16.gmra.mxu0 %v2926
    %v3045 = vpop.f32.mrf.mxu0
    %v3046 = vadd.f32 %v2167, %v3045
    %v3047 = vpop.f32.mrf.mxu0
    %v3048 = vadd.f32 %v2169, %v3047
    %3049 = vmatmul.bf16.gmra.mxu0 %v2929
    %v3050 = vpop.f32.mrf.mxu0
    %v3051 = vadd.f32 %v2172, %v3050
    %v3052 = vpop.f32.mrf.mxu0
    %v3053 = vadd.f32 %v2174, %v3052
    %3054 = vmatmul.bf16.gmra.mxu0 %v2932
    %v3055 = vpop.f32.mrf.mxu0
    %v3056 = vadd.f32 %v2177, %v3055
    %v3057 = vpop.f32.mrf.mxu0
    %v3058 = vadd.f32 %v2179, %v3057
    %3059 = vmatmul.bf16.gmra.mxu0 %v2935
    %v3060 = vpop.f32.mrf.mxu0
    %v3061 = vadd.f32 %v2182, %v3060
    %v3062 = vpop.f32.mrf.mxu0
    %v3063 = vadd.f32 %v2184, %v3062
    %3064 = vmatmul.bf16.gmra.mxu0 %v2938
    %v3065 = vpop.f32.mrf.mxu0
    %v3066 = vadd.f32 %v2187, %v3065
    %v3067 = vpop.f32.mrf.mxu0
    %v3068 = vadd.f32 %v2189, %v3067
    %3069 = vmatmul.bf16.gmra.mxu0 %v2941
    %v3070 = vpop.f32.mrf.mxu0
    %v3071 = vadd.f32 %v2192, %v3070
    %v3072 = vpop.f32.mrf.mxu0
    %v3073 = vadd.f32 %v2194, %v3072
    %3074 = vmatmul.bf16.gmra.mxu0 %v2944
    %v3075 = vpop.f32.mrf.mxu0
    %v3076 = vadd.f32 %v2197, %v3075
    %v3077 = vpop.f32.mrf.mxu0
    %v3078 = vadd.f32 %v2199, %v3077
    %3079 = vmatmul.bf16.gmra.mxu0 %v2947
    %v3080 = vpop.f32.mrf.mxu0
    %v3081 = vadd.f32 %v2202, %v3080
    %v3082 = vpop.f32.mrf.mxu0
    %v3083 = vadd.f32 %v2204, %v3082
    %3084 = vmatmul.bf16.gmra.mxu0 %v2950
    %v3085 = vpop.f32.mrf.mxu0
    %v3086 = vadd.f32 %v2207, %v3085
    %v3087 = vpop.f32.mrf.mxu0
    %v3088 = vadd.f32 %v2209, %v3087
    %3089 = vdwg.mxu0
    %3090 = vmatpush.bf16.msra.mxu0 %v1845
    %3091 = vmatpush.bf16.msra.mxu0 %v1842
    %3092 = vmatpush.bf16.msra.mxu0 %v1839
    %3093 = vmatpush.bf16.msra.mxu0 %v1836
    %3094 = vmatpush.bf16.msra.mxu0 %v1833
    %3095 = vmatpush.bf16.msra.mxu0 %v1830
    %3096 = vmatpush.bf16.msra.mxu0 %v1827
    %3097 = vmatpush.bf16.msra.mxu0 %v1824
    %3098 = vmatmul.bf16.gmra.mxu0 %v2906
    %v3099 = vpop.f32.mrf.mxu0
    %v3100 = vadd.f32 %v3011, %v3099
    %v3101 = vpop.f32.mrf.mxu0
    %v3102 = vadd.f32 %v3013, %v3101
    %3103 = vmatmul.bf16.gmra.mxu0 %v2909
    %v3104 = vpop.f32.mrf.mxu0
    %v3105 = vadd.f32 %v3016, %v3104
    %v3106 = vpop.f32.mrf.mxu0
    %v3107 = vadd.f32 %v3018, %v3106
    %3108 = vmatmul.bf16.gmra.mxu0 %v2912
    %v3109 = vpop.f32.mrf.mxu0
    %v3110 = vadd.f32 %v3021, %v3109
    %v3111 = vpop.f32.mrf.mxu0
    %v3112 = vadd.f32 %v3023, %v3111
    %3113 = vmatmul.bf16.gmra.mxu0 %v2915
    %v3114 = vpop.f32.mrf.mxu0
    %v3115 = vadd.f32 %v3026, %v3114
    %v3116 = vpop.f32.mrf.mxu0
    %v3117 = vadd.f32 %v3028, %v3116
    %3118 = vmatmul.bf16.gmra.mxu0 %v2918
    %v3119 = vpop.f32.mrf.mxu0
    %v3120 = vadd.f32 %v3031, %v3119
    %v3121 = vpop.f32.mrf.mxu0
    %v3122 = vadd.f32 %v3033, %v3121
    %3123 = vmatmul.bf16.gmra.mxu0 %v2921
    %v3124 = vpop.f32.mrf.mxu0
    %v3125 = vadd.f32 %v3036, %v3124
    %v3126 = vpop.f32.mrf.mxu0
    %v3127 = vadd.f32 %v3038, %v3126
    %3128 = vmatmul.bf16.gmra.mxu0 %v2924
    %v3129 = vpop.f32.mrf.mxu0
    %v3130 = vadd.f32 %v3041, %v3129
    %v3131 = vpop.f32.mrf.mxu0
    %v3132 = vadd.f32 %v3043, %v3131
    %3133 = vmatmul.bf16.gmra.mxu0 %v2927
    %v3134 = vpop.f32.mrf.mxu0
    %v3135 = vadd.f32 %v3046, %v3134
    %v3136 = vpop.f32.mrf.mxu0
    %v3137 = vadd.f32 %v3048, %v3136
    %3138 = vmatmul.bf16.gmra.mxu0 %v2930
    %v3139 = vpop.f32.mrf.mxu0
    %v3140 = vadd.f32 %v3051, %v3139
    %v3141 = vpop.f32.mrf.mxu0
    %v3142 = vadd.f32 %v3053, %v3141
    %3143 = vmatmul.bf16.gmra.mxu0 %v2933
    %v3144 = vpop.f32.mrf.mxu0
    %v3145 = vadd.f32 %v3056, %v3144
    %v3146 = vpop.f32.mrf.mxu0
    %v3147 = vadd.f32 %v3058, %v3146
    %3148 = vmatmul.bf16.gmra.mxu0 %v2936
    %v3149 = vpop.f32.mrf.mxu0
    %v3150 = vadd.f32 %v3061, %v3149
    %v3151 = vpop.f32.mrf.mxu0
    %v3152 = vadd.f32 %v3063, %v3151
    %3153 = vmatmul.bf16.gmra.mxu0 %v2939
    %v3154 = vpop.f32.mrf.mxu0
    %v3155 = vadd.f32 %v3066, %v3154
    %v3156 = vpop.f32.mrf.mxu0
    %v3157 = vadd.f32 %v3068, %v3156
    %3158 = vmatmul.bf16.gmra.mxu0 %v2942
    %v3159 = vpop.f32.mrf.mxu0
    %v3160 = vadd.f32 %v3071, %v3159
    %v3161 = vpop.f32.mrf.mxu0
    %v3162 = vadd.f32 %v3073, %v3161
    %3163 = vmatmul.bf16.gmra.mxu0 %v2945
    %v3164 = vpop.f32.mrf.mxu0
    %v3165 = vadd.f32 %v3076, %v3164
    %v3166 = vpop.f32.mrf.mxu0
    %v3167 = vadd.f32 %v3078, %v3166
    %3168 = vmatmul.bf16.gmra.mxu0 %v2948
    %v3169 = vpop.f32.mrf.mxu0
    %v3170 = vadd.f32 %v3081, %v3169
    %v3171 = vpop.f32.mrf.mxu0
    %v3172 = vadd.f32 %v3083, %v3171
    %3173 = vmatmul.bf16.gmra.mxu0 %v2951
    %v3174 = vpop.f32.mrf.mxu0
    %v3175 = vadd.f32 %v3086, %v3174
    %v3176 = vpop.f32.mrf.mxu0
    %v3177 = vadd.f32 %v3088, %v3176
    %3178 = vdwg.mxu0
    %3179 = vmatpush.bf16.msra.mxu0 %v1869
    %3180 = vmatpush.bf16.msra.mxu0 %v1866
    %3181 = vmatpush.bf16.msra.mxu0 %v1863
    %3182 = vmatpush.bf16.msra.mxu0 %v1860
    %3183 = vmatpush.bf16.msra.mxu0 %v1857
    %3184 = vmatpush.bf16.msra.mxu0 %v1854
    %3185 = vmatpush.bf16.msra.mxu0 %v1851
    %3186 = vmatpush.bf16.msra.mxu0 %v1848
    %3187 = vmatmul.bf16.gmra.mxu0 %v2907
    %v3188 = vpop.f32.mrf.mxu0
    %v3189 = vadd.f32 %v3100, %v3188
    %v3190 = vpop.f32.mrf.mxu0
    %v3191 = vadd.f32 %v3102, %v3190
    %3192 = vmatmul.bf16.gmra.mxu0 %v2910
    %v3193 = vpop.f32.mrf.mxu0
    %v3194 = vadd.f32 %v3105, %v3193
    %v3195 = vpop.f32.mrf.mxu0
    %v3196 = vadd.f32 %v3107, %v3195
    %3197 = vmatmul.bf16.gmra.mxu0 %v2913
    %v3198 = vpop.f32.mrf.mxu0
    %v3199 = vadd.f32 %v3110, %v3198
    %v3200 = vpop.f32.mrf.mxu0
    %v3201 = vadd.f32 %v3112, %v3200
    %3202 = vmatmul.bf16.gmra.mxu0 %v2916
    %v3203 = vpop.f32.mrf.mxu0
    %v3204 = vadd.f32 %v3115, %v3203
    %v3205 = vpop.f32.mrf.mxu0
    %v3206 = vadd.f32 %v3117, %v3205
    %3207 = vmatmul.bf16.gmra.mxu0 %v2919
    %v3208 = vpop.f32.mrf.mxu0
    %v3209 = vadd.f32 %v3120, %v3208
    %v3210 = vpop.f32.mrf.mxu0
    %v3211 = vadd.f32 %v3122, %v3210
    %3212 = vmatmul.bf16.gmra.mxu0 %v2922
    %v3213 = vpop.f32.mrf.mxu0
    %v3214 = vadd.f32 %v3125, %v3213
    %v3215 = vpop.f32.mrf.mxu0
    %v3216 = vadd.f32 %v3127, %v3215
    %3217 = vmatmul.bf16.gmra.mxu0 %v2925
    %v3218 = vpop.f32.mrf.mxu0
    %v3219 = vadd.f32 %v3130, %v3218
    %v3220 = vpop.f32.mrf.mxu0
    %v3221 = vadd.f32 %v3132, %v3220
    %3222 = vmatmul.bf16.gmra.mxu0 %v2928
    %v3223 = vpop.f32.mrf.mxu0
    %v3224 = vadd.f32 %v3135, %v3223
    %v3225 = vpop.f32.mrf.mxu0
    %v3226 = vadd.f32 %v3137, %v3225
    %3227 = vmatmul.bf16.gmra.mxu0 %v2931
    %v3228 = vpop.f32.mrf.mxu0
    %v3229 = vadd.f32 %v3140, %v3228
    %v3230 = vpop.f32.mrf.mxu0
    %v3231 = vadd.f32 %v3142, %v3230
    %3232 = vmatmul.bf16.gmra.mxu0 %v2934
    %v3233 = vpop.f32.mrf.mxu0
    %v3234 = vadd.f32 %v3145, %v3233
    %v3235 = vpop.f32.mrf.mxu0
    %v3236 = vadd.f32 %v3147, %v3235
    %3237 = vmatmul.bf16.gmra.mxu0 %v2937
    %v3238 = vpop.f32.mrf.mxu0
    %v3239 = vadd.f32 %v3150, %v3238
    %v3240 = vpop.f32.mrf.mxu0
    %v3241 = vadd.f32 %v3152, %v3240
    %3242 = vmatmul.bf16.gmra.mxu0 %v2940
    %v3243 = vpop.f32.mrf.mxu0
    %v3244 = vadd.f32 %v3155, %v3243
    %v3245 = vpop.f32.mrf.mxu0
    %v3246 = vadd.f32 %v3157, %v3245
    %3247 = vmatmul.bf16.gmra.mxu0 %v2943
    %v3248 = vpop.f32.mrf.mxu0
    %v3249 = vadd.f32 %v3160, %v3248
    %v3250 = vpop.f32.mrf.mxu0
    %v3251 = vadd.f32 %v3162, %v3250
    %3252 = vmatmul.bf16.gmra.mxu0 %v2946
    %v3253 = vpop.f32.mrf.mxu0
    %v3254 = vadd.f32 %v3165, %v3253
    %v3255 = vpop.f32.mrf.mxu0
    %v3256 = vadd.f32 %v3167, %v3255
    %3257 = vmatmul.bf16.gmra.mxu0 %v2949
    %v3258 = vpop.f32.mrf.mxu0
    %v3259 = vadd.f32 %v3170, %v3258
    %v3260 = vpop.f32.mrf.mxu0
    %v3261 = vadd.f32 %v3172, %v3260
    %3262 = vmatmul.bf16.gmra.mxu0 %v2952
    %v3263 = vpop.f32.mrf.mxu0
    %v3264 = vadd.f32 %v3175, %v3263
    %v3265 = vpop.f32.mrf.mxu0
    %v3266 = vadd.f32 %v3177, %v3265
    %3267 = vdwg.mxu0
    %3268 = vmatpush.bf16.msra.mxu0 %v1822
    %3269 = vmatpush.bf16.msra.mxu0 %v1819
    %3270 = vmatpush.bf16.msra.mxu0 %v1816
    %3271 = vmatpush.bf16.msra.mxu0 %v1813
    %3272 = vmatpush.bf16.msra.mxu0 %v1810
    %3273 = vmatpush.bf16.msra.mxu0 %v1807
    %3274 = vmatpush.bf16.msra.mxu0 %v1804
    %3275 = vmatpush.bf16.msra.mxu0 %v1801
    %3276 = vmatmul.bf16.gmra.mxu0 %v2905
    %v3277 = vpop.f32.mrf.mxu0
    %v3278 = vadd.f32 %v2399, %v3277
    %v3279 = vpop.f32.mrf.mxu0
    %v3280 = vadd.f32 %v2401, %v3279
    %3281 = vmatmul.bf16.gmra.mxu0 %v2908
    %v3282 = vpop.f32.mrf.mxu0
    %v3283 = vadd.f32 %v2404, %v3282
    %v3284 = vpop.f32.mrf.mxu0
    %v3285 = vadd.f32 %v2406, %v3284
    %3286 = vmatmul.bf16.gmra.mxu0 %v2911
    %v3287 = vpop.f32.mrf.mxu0
    %v3288 = vadd.f32 %v2409, %v3287
    %v3289 = vpop.f32.mrf.mxu0
    %v3290 = vadd.f32 %v2411, %v3289
    %3291 = vmatmul.bf16.gmra.mxu0 %v2914
    %v3292 = vpop.f32.mrf.mxu0
    %v3293 = vadd.f32 %v2414, %v3292
    %v3294 = vpop.f32.mrf.mxu0
    %v3295 = vadd.f32 %v2416, %v3294
    %3296 = vmatmul.bf16.gmra.mxu0 %v2917
    %v3297 = vpop.f32.mrf.mxu0
    %v3298 = vadd.f32 %v2419, %v3297
    %v3299 = vpop.f32.mrf.mxu0
    %v3300 = vadd.f32 %v2421, %v3299
    %3301 = vmatmul.bf16.gmra.mxu0 %v2920
    %v3302 = vpop.f32.mrf.mxu0
    %v3303 = vadd.f32 %v2424, %v3302
    %v3304 = vpop.f32.mrf.mxu0
    %v3305 = vadd.f32 %v2426, %v3304
    %3306 = vmatmul.bf16.gmra.mxu0 %v2923
    %v3307 = vpop.f32.mrf.mxu0
    %v3308 = vadd.f32 %v2429, %v3307
    %v3309 = vpop.f32.mrf.mxu0
    %v3310 = vadd.f32 %v2431, %v3309
    %3311 = vmatmul.bf16.gmra.mxu0 %v2926
    %v3312 = vpop.f32.mrf.mxu0
    %v3313 = vadd.f32 %v2434, %v3312
    %v3314 = vpop.f32.mrf.mxu0
    %v3315 = vadd.f32 %v2436, %v3314
    %3316 = vmatmul.bf16.gmra.mxu0 %v2929
    %v3317 = vpop.f32.mrf.mxu0
    %v3318 = vadd.f32 %v2439, %v3317
    %v3319 = vpop.f32.mrf.mxu0
    %v3320 = vadd.f32 %v2441, %v3319
    %3321 = vmatmul.bf16.gmra.mxu0 %v2932
    %v3322 = vpop.f32.mrf.mxu0
    %v3323 = vadd.f32 %v2444, %v3322
    %v3324 = vpop.f32.mrf.mxu0
    %v3325 = vadd.f32 %v2446, %v3324
    %3326 = vmatmul.bf16.gmra.mxu0 %v2935
    %v3327 = vpop.f32.mrf.mxu0
    %v3328 = vadd.f32 %v2449, %v3327
    %v3329 = vpop.f32.mrf.mxu0
    %v3330 = vadd.f32 %v2451, %v3329
    %3331 = vmatmul.bf16.gmra.mxu0 %v2938
    %v3332 = vpop.f32.mrf.mxu0
    %v3333 = vadd.f32 %v2454, %v3332
    %v3334 = vpop.f32.mrf.mxu0
    %v3335 = vadd.f32 %v2456, %v3334
    %3336 = vmatmul.bf16.gmra.mxu0 %v2941
    %v3337 = vpop.f32.mrf.mxu0
    %v3338 = vadd.f32 %v2459, %v3337
    %v3339 = vpop.f32.mrf.mxu0
    %v3340 = vadd.f32 %v2461, %v3339
    %3341 = vmatmul.bf16.gmra.mxu0 %v2944
    %v3342 = vpop.f32.mrf.mxu0
    %v3343 = vadd.f32 %v2464, %v3342
    %v3344 = vpop.f32.mrf.mxu0
    %v3345 = vadd.f32 %v2466, %v3344
    %3346 = vmatmul.bf16.gmra.mxu0 %v2947
    %v3347 = vpop.f32.mrf.mxu0
    %v3348 = vadd.f32 %v2469, %v3347
    %v3349 = vpop.f32.mrf.mxu0
    %v3350 = vadd.f32 %v2471, %v3349
    %3351 = vmatmul.bf16.gmra.mxu0 %v2950
    %v3352 = vpop.f32.mrf.mxu0
    %v3353 = vadd.f32 %v2474, %v3352
    %v3354 = vpop.f32.mrf.mxu0
    %v3355 = vadd.f32 %v2476, %v3354
    %3356 = vdwg.mxu0
    %3357 = vmatpush.bf16.msra.mxu0 %v1846
    %3358 = vmatpush.bf16.msra.mxu0 %v1843
    %3359 = vmatpush.bf16.msra.mxu0 %v1840
    %3360 = vmatpush.bf16.msra.mxu0 %v1837
    %3361 = vmatpush.bf16.msra.mxu0 %v1834
    %3362 = vmatpush.bf16.msra.mxu0 %v1831
    %3363 = vmatpush.bf16.msra.mxu0 %v1828
    %3364 = vmatpush.bf16.msra.mxu0 %v1825
    %3365 = vmatmul.bf16.gmra.mxu0 %v2906
    %v3366 = vpop.f32.mrf.mxu0
    %v3367 = vadd.f32 %v3278, %v3366
    %v3368 = vpop.f32.mrf.mxu0
    %v3369 = vadd.f32 %v3280, %v3368
    %3370 = vmatmul.bf16.gmra.mxu0 %v2909
    %v3371 = vpop.f32.mrf.mxu0
    %v3372 = vadd.f32 %v3283, %v3371
    %v3373 = vpop.f32.mrf.mxu0
    %v3374 = vadd.f32 %v3285, %v3373
    %3375 = vmatmul.bf16.gmra.mxu0 %v2912
    %v3376 = vpop.f32.mrf.mxu0
    %v3377 = vadd.f32 %v3288, %v3376
    %v3378 = vpop.f32.mrf.mxu0
    %v3379 = vadd.f32 %v3290, %v3378
    %3380 = vmatmul.bf16.gmra.mxu0 %v2915
    %v3381 = vpop.f32.mrf.mxu0
    %v3382 = vadd.f32 %v3293, %v3381
    %v3383 = vpop.f32.mrf.mxu0
    %v3384 = vadd.f32 %v3295, %v3383
    %3385 = vmatmul.bf16.gmra.mxu0 %v2918
    %v3386 = vpop.f32.mrf.mxu0
    %v3387 = vadd.f32 %v3298, %v3386
    %v3388 = vpop.f32.mrf.mxu0
    %v3389 = vadd.f32 %v3300, %v3388
    %3390 = vmatmul.bf16.gmra.mxu0 %v2921
    %v3391 = vpop.f32.mrf.mxu0
    %v3392 = vadd.f32 %v3303, %v3391
    %v3393 = vpop.f32.mrf.mxu0
    %v3394 = vadd.f32 %v3305, %v3393
    %3395 = vmatmul.bf16.gmra.mxu0 %v2924
    %v3396 = vpop.f32.mrf.mxu0
    %v3397 = vadd.f32 %v3308, %v3396
    %v3398 = vpop.f32.mrf.mxu0
    %v3399 = vadd.f32 %v3310, %v3398
    %3400 = vmatmul.bf16.gmra.mxu0 %v2927
    %v3401 = vpop.f32.mrf.mxu0
    %v3402 = vadd.f32 %v3313, %v3401
    %v3403 = vpop.f32.mrf.mxu0
    %v3404 = vadd.f32 %v3315, %v3403
    %3405 = vmatmul.bf16.gmra.mxu0 %v2930
    %v3406 = vpop.f32.mrf.mxu0
    %v3407 = vadd.f32 %v3318, %v3406
    %v3408 = vpop.f32.mrf.mxu0
    %v3409 = vadd.f32 %v3320, %v3408
    %3410 = vmatmul.bf16.gmra.mxu0 %v2933
    %v3411 = vpop.f32.mrf.mxu0
    %v3412 = vadd.f32 %v3323, %v3411
    %v3413 = vpop.f32.mrf.mxu0
    %v3414 = vadd.f32 %v3325, %v3413
    %3415 = vmatmul.bf16.gmra.mxu0 %v2936
    %v3416 = vpop.f32.mrf.mxu0
    %v3417 = vadd.f32 %v3328, %v3416
    %v3418 = vpop.f32.mrf.mxu0
    %v3419 = vadd.f32 %v3330, %v3418
    %3420 = vmatmul.bf16.gmra.mxu0 %v2939
    %v3421 = vpop.f32.mrf.mxu0
    %v3422 = vadd.f32 %v3333, %v3421
    %v3423 = vpop.f32.mrf.mxu0
    %v3424 = vadd.f32 %v3335, %v3423
    %3425 = vmatmul.bf16.gmra.mxu0 %v2942
    %v3426 = vpop.f32.mrf.mxu0
    %v3427 = vadd.f32 %v3338, %v3426
    %v3428 = vpop.f32.mrf.mxu0
    %v3429 = vadd.f32 %v3340, %v3428
    %3430 = vmatmul.bf16.gmra.mxu0 %v2945
    %v3431 = vpop.f32.mrf.mxu0
    %v3432 = vadd.f32 %v3343, %v3431
    %v3433 = vpop.f32.mrf.mxu0
    %v3434 = vadd.f32 %v3345, %v3433
    %3435 = vmatmul.bf16.gmra.mxu0 %v2948
    %v3436 = vpop.f32.mrf.mxu0
    %v3437 = vadd.f32 %v3348, %v3436
    %v3438 = vpop.f32.mrf.mxu0
    %v3439 = vadd.f32 %v3350, %v3438
    %3440 = vmatmul.bf16.gmra.mxu0 %v2951
    %v3441 = vpop.f32.mrf.mxu0
    %v3442 = vadd.f32 %v3353, %v3441
    %v3443 = vpop.f32.mrf.mxu0
    %v3444 = vadd.f32 %v3355, %v3443
    %3445 = vdwg.mxu0
    %3446 = vmatpush.bf16.msra.mxu0 %v1870
    %3447 = vmatpush.bf16.msra.mxu0 %v1867
    %3448 = vmatpush.bf16.msra.mxu0 %v1864
    %3449 = vmatpush.bf16.msra.mxu0 %v1861
    %3450 = vmatpush.bf16.msra.mxu0 %v1858
    %3451 = vmatpush.bf16.msra.mxu0 %v1855
    %3452 = vmatpush.bf16.msra.mxu0 %v1852
    %3453 = vmatpush.bf16.msra.mxu0 %v1849
    %3454 = vmatmul.bf16.gmra.mxu0 %v2907
    %v3455 = vpop.f32.mrf.mxu0
    %v3456 = vadd.f32 %v3367, %v3455
    %v3457 = vpop.f32.mrf.mxu0
    %v3458 = vadd.f32 %v3369, %v3457
    %3459 = vmatmul.bf16.gmra.mxu0 %v2910
    %v3460 = vpop.f32.mrf.mxu0
    %v3461 = vadd.f32 %v3372, %v3460
    %v3462 = vpop.f32.mrf.mxu0
    %v3463 = vadd.f32 %v3374, %v3462
    %3464 = vmatmul.bf16.gmra.mxu0 %v2913
    %v3465 = vpop.f32.mrf.mxu0
    %v3466 = vadd.f32 %v3377, %v3465
    %v3467 = vpop.f32.mrf.mxu0
    %v3468 = vadd.f32 %v3379, %v3467
    %3469 = vmatmul.bf16.gmra.mxu0 %v2916
    %v3470 = vpop.f32.mrf.mxu0
    %v3471 = vadd.f32 %v3382, %v3470
    %v3472 = vpop.f32.mrf.mxu0
    %v3473 = vadd.f32 %v3384, %v3472
    %3474 = vmatmul.bf16.gmra.mxu0 %v2919
    %v3475 = vpop.f32.mrf.mxu0
    %v3476 = vadd.f32 %v3387, %v3475
    %v3477 = vpop.f32.mrf.mxu0
    %v3478 = vadd.f32 %v3389, %v3477
    %3479 = vmatmul.bf16.gmra.mxu0 %v2922
    %v3480 = vpop.f32.mrf.mxu0
    %v3481 = vadd.f32 %v3392, %v3480
    %v3482 = vpop.f32.mrf.mxu0
    %v3483 = vadd.f32 %v3394, %v3482
    %3484 = vmatmul.bf16.gmra.mxu0 %v2925
    %v3485 = vpop.f32.mrf.mxu0
    %v3486 = vadd.f32 %v3397, %v3485
    %v3487 = vpop.f32.mrf.mxu0
    %v3488 = vadd.f32 %v3399, %v3487
    %3489 = vmatmul.bf16.gmra.mxu0 %v2928
    %v3490 = vpop.f32.mrf.mxu0
    %v3491 = vadd.f32 %v3402, %v3490
    %v3492 = vpop.f32.mrf.mxu0
    %v3493 = vadd.f32 %v3404, %v3492
    %3494 = vmatmul.bf16.gmra.mxu0 %v2931
    %v3495 = vpop.f32.mrf.mxu0
    %v3496 = vadd.f32 %v3407, %v3495
    %v3497 = vpop.f32.mrf.mxu0
    %v3498 = vadd.f32 %v3409, %v3497
    %3499 = vmatmul.bf16.gmra.mxu0 %v2934
    %v3500 = vpop.f32.mrf.mxu0
    %v3501 = vadd.f32 %v3412, %v3500
    %v3502 = vpop.f32.mrf.mxu0
    %v3503 = vadd.f32 %v3414, %v3502
    %3504 = vmatmul.bf16.gmra.mxu0 %v2937
    %v3505 = vpop.f32.mrf.mxu0
    %v3506 = vadd.f32 %v3417, %v3505
    %v3507 = vpop.f32.mrf.mxu0
    %v3508 = vadd.f32 %v3419, %v3507
    %3509 = vmatmul.bf16.gmra.mxu0 %v2940
    %v3510 = vpop.f32.mrf.mxu0
    %v3511 = vadd.f32 %v3422, %v3510
    %v3512 = vpop.f32.mrf.mxu0
    %v3513 = vadd.f32 %v3424, %v3512
    %3514 = vmatmul.bf16.gmra.mxu0 %v2943
    %v3515 = vpop.f32.mrf.mxu0
    %v3516 = vadd.f32 %v3427, %v3515
    %v3517 = vpop.f32.mrf.mxu0
    %v3518 = vadd.f32 %v3429, %v3517
    %3519 = vmatmul.bf16.gmra.mxu0 %v2946
    %v3520 = vpop.f32.mrf.mxu0
    %v3521 = vadd.f32 %v3432, %v3520
    %v3522 = vpop.f32.mrf.mxu0
    %v3523 = vadd.f32 %v3434, %v3522
    %3524 = vmatmul.bf16.gmra.mxu0 %v2949
    %v3525 = vpop.f32.mrf.mxu0
    %v3526 = vadd.f32 %v3437, %v3525
    %v3527 = vpop.f32.mrf.mxu0
    %v3528 = vadd.f32 %v3439, %v3527
    %3529 = vmatmul.bf16.gmra.mxu0 %v2952
    %v3530 = vpop.f32.mrf.mxu0
    %v3531 = vadd.f32 %v3442, %v3530
    %v3532 = vpop.f32.mrf.mxu0
    %v3533 = vadd.f32 %v3444, %v3532
    %3534 = vdwg.mxu0
    %3535 = vmatpush.bf16.msra.mxu0 %v1823
    %3536 = vmatpush.bf16.msra.mxu0 %v1820
    %3537 = vmatpush.bf16.msra.mxu0 %v1817
    %3538 = vmatpush.bf16.msra.mxu0 %v1814
    %3539 = vmatpush.bf16.msra.mxu0 %v1811
    %3540 = vmatpush.bf16.msra.mxu0 %v1808
    %3541 = vmatpush.bf16.msra.mxu0 %v1805
    %3542 = vmatpush.bf16.msra.mxu0 %v1802
    %3543 = vmatmul.bf16.gmra.mxu0 %v2905
    %v3544 = vpop.f32.mrf.mxu0
    %v3545 = vadd.f32 %v2666, %v3544
    %v3546 = vpop.f32.mrf.mxu0
    %v3547 = vadd.f32 %v2668, %v3546
    %3548 = vmatmul.bf16.gmra.mxu0 %v2908
    %v3549 = vpop.f32.mrf.mxu0
    %v3550 = vadd.f32 %v2671, %v3549
    %v3551 = vpop.f32.mrf.mxu0
    %v3552 = vadd.f32 %v2673, %v3551
    %3553 = vmatmul.bf16.gmra.mxu0 %v2911
    %v3554 = vpop.f32.mrf.mxu0
    %v3555 = vadd.f32 %v2676, %v3554
    %v3556 = vpop.f32.mrf.mxu0
    %v3557 = vadd.f32 %v2678, %v3556
    %3558 = vmatmul.bf16.gmra.mxu0 %v2914
    %v3559 = vpop.f32.mrf.mxu0
    %v3560 = vadd.f32 %v2681, %v3559
    %v3561 = vpop.f32.mrf.mxu0
    %v3562 = vadd.f32 %v2683, %v3561
    %3563 = vmatmul.bf16.gmra.mxu0 %v2917
    %v3564 = vpop.f32.mrf.mxu0
    %v3565 = vadd.f32 %v2686, %v3564
    %v3566 = vpop.f32.mrf.mxu0
    %v3567 = vadd.f32 %v2688, %v3566
    %3568 = vmatmul.bf16.gmra.mxu0 %v2920
    %v3569 = vpop.f32.mrf.mxu0
    %v3570 = vadd.f32 %v2691, %v3569
    %v3571 = vpop.f32.mrf.mxu0
    %v3572 = vadd.f32 %v2693, %v3571
    %3573 = vmatmul.bf16.gmra.mxu0 %v2923
    %v3574 = vpop.f32.mrf.mxu0
    %v3575 = vadd.f32 %v2696, %v3574
    %v3576 = vpop.f32.mrf.mxu0
    %v3577 = vadd.f32 %v2698, %v3576
    %3578 = vmatmul.bf16.gmra.mxu0 %v2926
    %v3579 = vpop.f32.mrf.mxu0
    %v3580 = vadd.f32 %v2701, %v3579
    %v3581 = vpop.f32.mrf.mxu0
    %v3582 = vadd.f32 %v2703, %v3581
    %3583 = vmatmul.bf16.gmra.mxu0 %v2929
    %v3584 = vpop.f32.mrf.mxu0
    %v3585 = vadd.f32 %v2706, %v3584
    %v3586 = vpop.f32.mrf.mxu0
    %v3587 = vadd.f32 %v2708, %v3586
    %3588 = vmatmul.bf16.gmra.mxu0 %v2932
    %v3589 = vpop.f32.mrf.mxu0
    %v3590 = vadd.f32 %v2711, %v3589
    %v3591 = vpop.f32.mrf.mxu0
    %v3592 = vadd.f32 %v2713, %v3591
    %3593 = vmatmul.bf16.gmra.mxu0 %v2935
    %v3594 = vpop.f32.mrf.mxu0
    %v3595 = vadd.f32 %v2716, %v3594
    %v3596 = vpop.f32.mrf.mxu0
    %v3597 = vadd.f32 %v2718, %v3596
    %3598 = vmatmul.bf16.gmra.mxu0 %v2938
    %v3599 = vpop.f32.mrf.mxu0
    %v3600 = vadd.f32 %v2721, %v3599
    %v3601 = vpop.f32.mrf.mxu0
    %v3602 = vadd.f32 %v2723, %v3601
    %3603 = vmatmul.bf16.gmra.mxu0 %v2941
    %v3604 = vpop.f32.mrf.mxu0
    %v3605 = vadd.f32 %v2726, %v3604
    %v3606 = vpop.f32.mrf.mxu0
    %v3607 = vadd.f32 %v2728, %v3606
    %3608 = vmatmul.bf16.gmra.mxu0 %v2944
    %v3609 = vpop.f32.mrf.mxu0
    %v3610 = vadd.f32 %v2731, %v3609
    %v3611 = vpop.f32.mrf.mxu0
    %v3612 = vadd.f32 %v2733, %v3611
    %3613 = vmatmul.bf16.gmra.mxu0 %v2947
    %v3614 = vpop.f32.mrf.mxu0
    %v3615 = vadd.f32 %v2736, %v3614
    %v3616 = vpop.f32.mrf.mxu0
    %v3617 = vadd.f32 %v2738, %v3616
    %3618 = vmatmul.bf16.gmra.mxu0 %v2950
    %v3619 = vpop.f32.mrf.mxu0
    %v3620 = vadd.f32 %v2741, %v3619
    %v3621 = vpop.f32.mrf.mxu0
    %v3622 = vadd.f32 %v2743, %v3621
    %3623 = vdwg.mxu0
    %3624 = vmatpush.bf16.msra.mxu0 %v1847
    %3625 = vmatpush.bf16.msra.mxu0 %v1844
    %3626 = vmatpush.bf16.msra.mxu0 %v1841
    %3627 = vmatpush.bf16.msra.mxu0 %v1838
    %3628 = vmatpush.bf16.msra.mxu0 %v1835
    %3629 = vmatpush.bf16.msra.mxu0 %v1832
    %3630 = vmatpush.bf16.msra.mxu0 %v1829
    %3631 = vmatpush.bf16.msra.mxu0 %v1826
    %3632 = vmatmul.bf16.gmra.mxu0 %v2906
    %v3633 = vpop.f32.mrf.mxu0
    %v3634 = vadd.f32 %v3545, %v3633
    %v3635 = vpop.f32.mrf.mxu0
    %v3636 = vadd.f32 %v3547, %v3635
    %3637 = vmatmul.bf16.gmra.mxu0 %v2909
    %v3638 = vpop.f32.mrf.mxu0
    %v3639 = vadd.f32 %v3550, %v3638
    %v3640 = vpop.f32.mrf.mxu0
    %v3641 = vadd.f32 %v3552, %v3640
    %3642 = vmatmul.bf16.gmra.mxu0 %v2912
    %v3643 = vpop.f32.mrf.mxu0
    %v3644 = vadd.f32 %v3555, %v3643
    %v3645 = vpop.f32.mrf.mxu0
    %v3646 = vadd.f32 %v3557, %v3645
    %3647 = vmatmul.bf16.gmra.mxu0 %v2915
    %v3648 = vpop.f32.mrf.mxu0
    %v3649 = vadd.f32 %v3560, %v3648
    %v3650 = vpop.f32.mrf.mxu0
    %v3651 = vadd.f32 %v3562, %v3650
    %3652 = vmatmul.bf16.gmra.mxu0 %v2918
    %v3653 = vpop.f32.mrf.mxu0
    %v3654 = vadd.f32 %v3565, %v3653
    %v3655 = vpop.f32.mrf.mxu0
    %v3656 = vadd.f32 %v3567, %v3655
    %3657 = vmatmul.bf16.gmra.mxu0 %v2921
    %v3658 = vpop.f32.mrf.mxu0
    %v3659 = vadd.f32 %v3570, %v3658
    %v3660 = vpop.f32.mrf.mxu0
    %v3661 = vadd.f32 %v3572, %v3660
    %3662 = vmatmul.bf16.gmra.mxu0 %v2924
    %v3663 = vpop.f32.mrf.mxu0
    %v3664 = vadd.f32 %v3575, %v3663
    %v3665 = vpop.f32.mrf.mxu0
    %v3666 = vadd.f32 %v3577, %v3665
    %3667 = vmatmul.bf16.gmra.mxu0 %v2927
    %v3668 = vpop.f32.mrf.mxu0
    %v3669 = vadd.f32 %v3580, %v3668
    %v3670 = vpop.f32.mrf.mxu0
    %v3671 = vadd.f32 %v3582, %v3670
    %3672 = vmatmul.bf16.gmra.mxu0 %v2930
    %v3673 = vpop.f32.mrf.mxu0
    %v3674 = vadd.f32 %v3585, %v3673
    %v3675 = vpop.f32.mrf.mxu0
    %v3676 = vadd.f32 %v3587, %v3675
    %3677 = vmatmul.bf16.gmra.mxu0 %v2933
    %v3678 = vpop.f32.mrf.mxu0
    %v3679 = vadd.f32 %v3590, %v3678
    %v3680 = vpop.f32.mrf.mxu0
    %v3681 = vadd.f32 %v3592, %v3680
    %3682 = vmatmul.bf16.gmra.mxu0 %v2936
    %v3683 = vpop.f32.mrf.mxu0
    %v3684 = vadd.f32 %v3595, %v3683
    %v3685 = vpop.f32.mrf.mxu0
    %v3686 = vadd.f32 %v3597, %v3685
    %3687 = vmatmul.bf16.gmra.mxu0 %v2939
    %v3688 = vpop.f32.mrf.mxu0
    %v3689 = vadd.f32 %v3600, %v3688
    %v3690 = vpop.f32.mrf.mxu0
    %v3691 = vadd.f32 %v3602, %v3690
    %3692 = vmatmul.bf16.gmra.mxu0 %v2942
    %v3693 = vpop.f32.mrf.mxu0
    %v3694 = vadd.f32 %v3605, %v3693
    %v3695 = vpop.f32.mrf.mxu0
    %v3696 = vadd.f32 %v3607, %v3695
    %3697 = vmatmul.bf16.gmra.mxu0 %v2945
    %v3698 = vpop.f32.mrf.mxu0
    %v3699 = vadd.f32 %v3610, %v3698
    %v3700 = vpop.f32.mrf.mxu0
    %v3701 = vadd.f32 %v3612, %v3700
    %3702 = vmatmul.bf16.gmra.mxu0 %v2948
    %v3703 = vpop.f32.mrf.mxu0
    %v3704 = vadd.f32 %v3615, %v3703
    %v3705 = vpop.f32.mrf.mxu0
    %v3706 = vadd.f32 %v3617, %v3705
    %3707 = vmatmul.bf16.gmra.mxu0 %v2951
    %v3708 = vpop.f32.mrf.mxu0
    %v3709 = vadd.f32 %v3620, %v3708
    %v3710 = vpop.f32.mrf.mxu0
    %v3711 = vadd.f32 %v3622, %v3710
    %3712 = vdwg.mxu0
    %3713 = vmatpush.bf16.msra.mxu0 %v1871
    %3714 = vmatpush.bf16.msra.mxu0 %v1868
    %3715 = vmatpush.bf16.msra.mxu0 %v1865
    %3716 = vmatpush.bf16.msra.mxu0 %v1862
    %3717 = vmatpush.bf16.msra.mxu0 %v1859
    %3718 = vmatpush.bf16.msra.mxu0 %v1856
    %3719 = vmatpush.bf16.msra.mxu0 %v1853
    %3720 = vmatpush.bf16.msra.mxu0 %v1850
    %3721 = vmatmul.bf16.gmra.mxu0 %v2907
    %v3722 = vpop.f32.mrf.mxu0
    %v3723 = vadd.f32 %v3634, %v3722
    %v3724 = vpop.f32.mrf.mxu0
    %v3725 = vadd.f32 %v3636, %v3724
    %3726 = vmatmul.bf16.gmra.mxu0 %v2910
    %v3727 = vpop.f32.mrf.mxu0
    %v3728 = vadd.f32 %v3639, %v3727
    %v3729 = vpop.f32.mrf.mxu0
    %v3730 = vadd.f32 %v3641, %v3729
    %3731 = vmatmul.bf16.gmra.mxu0 %v2913
    %v3732 = vpop.f32.mrf.mxu0
    %v3733 = vadd.f32 %v3644, %v3732
    %v3734 = vpop.f32.mrf.mxu0
    %v3735 = vadd.f32 %v3646, %v3734
    %3736 = vmatmul.bf16.gmra.mxu0 %v2916
    %v3737 = vpop.f32.mrf.mxu0
    %v3738 = vadd.f32 %v3649, %v3737
    %v3739 = vpop.f32.mrf.mxu0
    %v3740 = vadd.f32 %v3651, %v3739
    %3741 = vmatmul.bf16.gmra.mxu0 %v2919
    %v3742 = vpop.f32.mrf.mxu0
    %v3743 = vadd.f32 %v3654, %v3742
    %v3744 = vpop.f32.mrf.mxu0
    %v3745 = vadd.f32 %v3656, %v3744
    %3746 = vmatmul.bf16.gmra.mxu0 %v2922
    %v3747 = vpop.f32.mrf.mxu0
    %v3748 = vadd.f32 %v3659, %v3747
    %v3749 = vpop.f32.mrf.mxu0
    %v3750 = vadd.f32 %v3661, %v3749
    %3751 = vmatmul.bf16.gmra.mxu0 %v2925
    %v3752 = vpop.f32.mrf.mxu0
    %v3753 = vadd.f32 %v3664, %v3752
    %v3754 = vpop.f32.mrf.mxu0
    %v3755 = vadd.f32 %v3666, %v3754
    %3756 = vmatmul.bf16.gmra.mxu0 %v2928
    %v3757 = vpop.f32.mrf.mxu0
    %v3758 = vadd.f32 %v3669, %v3757
    %v3759 = vpop.f32.mrf.mxu0
    %v3760 = vadd.f32 %v3671, %v3759
    %3761 = vmatmul.bf16.gmra.mxu0 %v2931
    %v3762 = vpop.f32.mrf.mxu0
    %v3763 = vadd.f32 %v3674, %v3762
    %v3764 = vpop.f32.mrf.mxu0
    %v3765 = vadd.f32 %v3676, %v3764
    %3766 = vmatmul.bf16.gmra.mxu0 %v2934
    %v3767 = vpop.f32.mrf.mxu0
    %v3768 = vadd.f32 %v3679, %v3767
    %v3769 = vpop.f32.mrf.mxu0
    %v3770 = vadd.f32 %v3681, %v3769
    %3771 = vmatmul.bf16.gmra.mxu0 %v2937
    %v3772 = vpop.f32.mrf.mxu0
    %v3773 = vadd.f32 %v3684, %v3772
    %v3774 = vpop.f32.mrf.mxu0
    %v3775 = vadd.f32 %v3686, %v3774
    %3776 = vmatmul.bf16.gmra.mxu0 %v2940
    %v3777 = vpop.f32.mrf.mxu0
    %v3778 = vadd.f32 %v3689, %v3777
    %v3779 = vpop.f32.mrf.mxu0
    %v3780 = vadd.f32 %v3691, %v3779
    %3781 = vmatmul.bf16.gmra.mxu0 %v2943
    %v3782 = vpop.f32.mrf.mxu0
    %v3783 = vadd.f32 %v3694, %v3782
    %v3784 = vpop.f32.mrf.mxu0
    %v3785 = vadd.f32 %v3696, %v3784
    %3786 = vmatmul.bf16.gmra.mxu0 %v2946
    %v3787 = vpop.f32.mrf.mxu0
    %v3788 = vadd.f32 %v3699, %v3787
    %v3789 = vpop.f32.mrf.mxu0
    %v3790 = vadd.f32 %v3701, %v3789
    %3791 = vmatmul.bf16.gmra.mxu0 %v2949
    %v3792 = vpop.f32.mrf.mxu0
    %v3793 = vadd.f32 %v3704, %v3792
    %v3794 = vpop.f32.mrf.mxu0
    %v3795 = vadd.f32 %v3706, %v3794
    %3796 = vmatmul.bf16.gmra.mxu0 %v2952
    %v3797 = vpop.f32.mrf.mxu0
    %v3798 = vadd.f32 %v3709, %v3797
    %v3799 = vpop.f32.mrf.mxu0
    %v3800 = vadd.f32 %v3711, %v3799
    %3801 = vdwg.mxu0
    %3802 = vmatpush.bf16.msra.mxu0 %v1509
    %3803 = vmatpush.bf16.msra.mxu0 %v1506
    %3804 = vmatpush.bf16.msra.mxu0 %v1503
    %3805 = vmatpush.bf16.msra.mxu0 %v1500
    %3806 = vmatpush.bf16.msra.mxu0 %v1497
    %3807 = vmatpush.bf16.msra.mxu0 %v1494
    %3808 = vmatpush.bf16.msra.mxu0 %v1491
    %3809 = vmatpush.bf16.msra.mxu0 %v1488
    %3810 = vmatmul.bf16.gmra.mxu0 %v2905
    %v3811 = vpop.f32.mrf.mxu0
    %v3812 = vadd.f32 0.0, %v3811
    %v3813 = vpop.f32.mrf.mxu0
    %v3814 = vadd.f32 0.0, %v3813
    %3815 = vmatmul.bf16.gmra.mxu0 %v2908
    %v3816 = vpop.f32.mrf.mxu0
    %v3817 = vadd.f32 0.0, %v3816
    %v3818 = vpop.f32.mrf.mxu0
    %v3819 = vadd.f32 0.0, %v3818
    %3820 = vmatmul.bf16.gmra.mxu0 %v2911
    %v3821 = vpop.f32.mrf.mxu0
    %v3822 = vadd.f32 0.0, %v3821
    %v3823 = vpop.f32.mrf.mxu0
    %v3824 = vadd.f32 0.0, %v3823
    %3825 = vmatmul.bf16.gmra.mxu0 %v2914
    %v3826 = vpop.f32.mrf.mxu0
    %v3827 = vadd.f32 0.0, %v3826
    %v3828 = vpop.f32.mrf.mxu0
    %v3829 = vadd.f32 0.0, %v3828
    %3830 = vmatmul.bf16.gmra.mxu0 %v2917
    %v3831 = vpop.f32.mrf.mxu0
    %v3832 = vadd.f32 0.0, %v3831
    %v3833 = vpop.f32.mrf.mxu0
    %v3834 = vadd.f32 0.0, %v3833
    %3835 = vmatmul.bf16.gmra.mxu0 %v2920
    %v3836 = vpop.f32.mrf.mxu0
    %v3837 = vadd.f32 0.0, %v3836
    %v3838 = vpop.f32.mrf.mxu0
    %v3839 = vadd.f32 0.0, %v3838
    %3840 = vmatmul.bf16.gmra.mxu0 %v2923
    %v3841 = vpop.f32.mrf.mxu0
    %v3842 = vadd.f32 0.0, %v3841
    %v3843 = vpop.f32.mrf.mxu0
    %v3844 = vadd.f32 0.0, %v3843
    %3845 = vmatmul.bf16.gmra.mxu0 %v2926
    %v3846 = vpop.f32.mrf.mxu0
    %v3847 = vadd.f32 0.0, %v3846
    %v3848 = vpop.f32.mrf.mxu0
    %v3849 = vadd.f32 0.0, %v3848
    %3850 = vmatmul.bf16.gmra.mxu0 %v2929
    %v3851 = vpop.f32.mrf.mxu0
    %v3852 = vadd.f32 0.0, %v3851
    %v3853 = vpop.f32.mrf.mxu0
    %v3854 = vadd.f32 0.0, %v3853
    %3855 = vmatmul.bf16.gmra.mxu0 %v2932
    %v3856 = vpop.f32.mrf.mxu0
    %v3857 = vadd.f32 0.0, %v3856
    %v3858 = vpop.f32.mrf.mxu0
    %v3859 = vadd.f32 0.0, %v3858
    %3860 = vmatmul.bf16.gmra.mxu0 %v2935
    %v3861 = vpop.f32.mrf.mxu0
    %v3862 = vadd.f32 0.0, %v3861
    %v3863 = vpop.f32.mrf.mxu0
    %v3864 = vadd.f32 0.0, %v3863
    %3865 = vmatmul.bf16.gmra.mxu0 %v2938
    %v3866 = vpop.f32.mrf.mxu0
    %v3867 = vadd.f32 0.0, %v3866
    %v3868 = vpop.f32.mrf.mxu0
    %v3869 = vadd.f32 0.0, %v3868
    %3870 = vmatmul.bf16.gmra.mxu0 %v2941
    %v3871 = vpop.f32.mrf.mxu0
    %v3872 = vadd.f32 0.0, %v3871
    %v3873 = vpop.f32.mrf.mxu0
    %v3874 = vadd.f32 0.0, %v3873
    %3875 = vmatmul.bf16.gmra.mxu0 %v2944
    %v3876 = vpop.f32.mrf.mxu0
    %v3877 = vadd.f32 0.0, %v3876
    %v3878 = vpop.f32.mrf.mxu0
    %v3879 = vadd.f32 0.0, %v3878
    %3880 = vmatmul.bf16.gmra.mxu0 %v2947
    %v3881 = vpop.f32.mrf.mxu0
    %v3882 = vadd.f32 0.0, %v3881
    %v3883 = vpop.f32.mrf.mxu0
    %v3884 = vadd.f32 0.0, %v3883
    %3885 = vmatmul.bf16.gmra.mxu0 %v2950
    %v3886 = vpop.f32.mrf.mxu0
    %v3887 = vadd.f32 0.0, %v3886
    %v3888 = vpop.f32.mrf.mxu0
    %v3889 = vadd.f32 0.0, %v3888
    %3890 = vdwg.mxu0
    %3891 = vmatpush.bf16.msra.mxu0 %v1533
    %3892 = vmatpush.bf16.msra.mxu0 %v1530
    %3893 = vmatpush.bf16.msra.mxu0 %v1527
    %3894 = vmatpush.bf16.msra.mxu0 %v1524
    %3895 = vmatpush.bf16.msra.mxu0 %v1521
    %3896 = vmatpush.bf16.msra.mxu0 %v1518
    %3897 = vmatpush.bf16.msra.mxu0 %v1515
    %3898 = vmatpush.bf16.msra.mxu0 %v1512
    %3899 = vmatmul.bf16.gmra.mxu0 %v2906
    %v3900 = vpop.f32.mrf.mxu0
    %v3901 = vadd.f32 %v3812, %v3900
    %v3902 = vpop.f32.mrf.mxu0
    %v3903 = vadd.f32 %v3814, %v3902
    %3904 = vmatmul.bf16.gmra.mxu0 %v2909
    %v3905 = vpop.f32.mrf.mxu0
    %v3906 = vadd.f32 %v3817, %v3905
    %v3907 = vpop.f32.mrf.mxu0
    %v3908 = vadd.f32 %v3819, %v3907
    %3909 = vmatmul.bf16.gmra.mxu0 %v2912
    %v3910 = vpop.f32.mrf.mxu0
    %v3911 = vadd.f32 %v3822, %v3910
    %v3912 = vpop.f32.mrf.mxu0
    %v3913 = vadd.f32 %v3824, %v3912
    %3914 = vmatmul.bf16.gmra.mxu0 %v2915
    %v3915 = vpop.f32.mrf.mxu0
    %v3916 = vadd.f32 %v3827, %v3915
    %v3917 = vpop.f32.mrf.mxu0
    %v3918 = vadd.f32 %v3829, %v3917
    %3919 = vmatmul.bf16.gmra.mxu0 %v2918
    %v3920 = vpop.f32.mrf.mxu0
    %v3921 = vadd.f32 %v3832, %v3920
    %v3922 = vpop.f32.mrf.mxu0
    %v3923 = vadd.f32 %v3834, %v3922
    %3924 = vmatmul.bf16.gmra.mxu0 %v2921
    %v3925 = vpop.f32.mrf.mxu0
    %v3926 = vadd.f32 %v3837, %v3925
    %v3927 = vpop.f32.mrf.mxu0
    %v3928 = vadd.f32 %v3839, %v3927
    %3929 = vmatmul.bf16.gmra.mxu0 %v2924
    %v3930 = vpop.f32.mrf.mxu0
    %v3931 = vadd.f32 %v3842, %v3930
    %v3932 = vpop.f32.mrf.mxu0
    %v3933 = vadd.f32 %v3844, %v3932
    %3934 = vmatmul.bf16.gmra.mxu0 %v2927
    %v3935 = vpop.f32.mrf.mxu0
    %v3936 = vadd.f32 %v3847, %v3935
    %v3937 = vpop.f32.mrf.mxu0
    %v3938 = vadd.f32 %v3849, %v3937
    %3939 = vmatmul.bf16.gmra.mxu0 %v2930
    %v3940 = vpop.f32.mrf.mxu0
    %v3941 = vadd.f32 %v3852, %v3940
    %v3942 = vpop.f32.mrf.mxu0
    %v3943 = vadd.f32 %v3854, %v3942
    %3944 = vmatmul.bf16.gmra.mxu0 %v2933
    %v3945 = vpop.f32.mrf.mxu0
    %v3946 = vadd.f32 %v3857, %v3945
    %v3947 = vpop.f32.mrf.mxu0
    %v3948 = vadd.f32 %v3859, %v3947
    %3949 = vmatmul.bf16.gmra.mxu0 %v2936
    %v3950 = vpop.f32.mrf.mxu0
    %v3951 = vadd.f32 %v3862, %v3950
    %v3952 = vpop.f32.mrf.mxu0
    %v3953 = vadd.f32 %v3864, %v3952
    %3954 = vmatmul.bf16.gmra.mxu0 %v2939
    %v3955 = vpop.f32.mrf.mxu0
    %v3956 = vadd.f32 %v3867, %v3955
    %v3957 = vpop.f32.mrf.mxu0
    %v3958 = vadd.f32 %v3869, %v3957
    %3959 = vmatmul.bf16.gmra.mxu0 %v2942
    %v3960 = vpop.f32.mrf.mxu0
    %v3961 = vadd.f32 %v3872, %v3960
    %v3962 = vpop.f32.mrf.mxu0
    %v3963 = vadd.f32 %v3874, %v3962
    %3964 = vmatmul.bf16.gmra.mxu0 %v2945
    %v3965 = vpop.f32.mrf.mxu0
    %v3966 = vadd.f32 %v3877, %v3965
    %v3967 = vpop.f32.mrf.mxu0
    %v3968 = vadd.f32 %v3879, %v3967
    %3969 = vmatmul.bf16.gmra.mxu0 %v2948
    %v3970 = vpop.f32.mrf.mxu0
    %v3971 = vadd.f32 %v3882, %v3970
    %v3972 = vpop.f32.mrf.mxu0
    %v3973 = vadd.f32 %v3884, %v3972
    %3974 = vmatmul.bf16.gmra.mxu0 %v2951
    %v3975 = vpop.f32.mrf.mxu0
    %v3976 = vadd.f32 %v3887, %v3975
    %v3977 = vpop.f32.mrf.mxu0
    %v3978 = vadd.f32 %v3889, %v3977
    %3979 = vdwg.mxu0
    %3980 = vmatpush.bf16.msra.mxu0 %v1557
    %3981 = vmatpush.bf16.msra.mxu0 %v1554
    %3982 = vmatpush.bf16.msra.mxu0 %v1551
    %3983 = vmatpush.bf16.msra.mxu0 %v1548
    %3984 = vmatpush.bf16.msra.mxu0 %v1545
    %3985 = vmatpush.bf16.msra.mxu0 %v1542
    %3986 = vmatpush.bf16.msra.mxu0 %v1539
    %3987 = vmatpush.bf16.msra.mxu0 %v1536
    %3988 = vmatmul.bf16.gmra.mxu0 %v2907
    %v3989 = vpop.f32.mrf.mxu0
    %v3990 = vadd.f32 %v3901, %v3989
    %v3991 = vpop.f32.mrf.mxu0
    %v3992 = vadd.f32 %v3903, %v3991
    %3993 = vmatmul.bf16.gmra.mxu0 %v2910
    %v3994 = vpop.f32.mrf.mxu0
    %v3995 = vadd.f32 %v3906, %v3994
    %v3996 = vpop.f32.mrf.mxu0
    %v3997 = vadd.f32 %v3908, %v3996
    %3998 = vmatmul.bf16.gmra.mxu0 %v2913
    %v3999 = vpop.f32.mrf.mxu0
    %v4000 = vadd.f32 %v3911, %v3999
    %v4001 = vpop.f32.mrf.mxu0
    %v4002 = vadd.f32 %v3913, %v4001
    %4003 = vmatmul.bf16.gmra.mxu0 %v2916
    %v4004 = vpop.f32.mrf.mxu0
    %v4005 = vadd.f32 %v3916, %v4004
    %v4006 = vpop.f32.mrf.mxu0
    %v4007 = vadd.f32 %v3918, %v4006
    %4008 = vmatmul.bf16.gmra.mxu0 %v2919
    %v4009 = vpop.f32.mrf.mxu0
    %v4010 = vadd.f32 %v3921, %v4009
    %v4011 = vpop.f32.mrf.mxu0
    %v4012 = vadd.f32 %v3923, %v4011
    %4013 = vmatmul.bf16.gmra.mxu0 %v2922
    %v4014 = vpop.f32.mrf.mxu0
    %v4015 = vadd.f32 %v3926, %v4014
    %v4016 = vpop.f32.mrf.mxu0
    %v4017 = vadd.f32 %v3928, %v4016
    %4018 = vmatmul.bf16.gmra.mxu0 %v2925
    %v4019 = vpop.f32.mrf.mxu0
    %v4020 = vadd.f32 %v3931, %v4019
    %v4021 = vpop.f32.mrf.mxu0
    %v4022 = vadd.f32 %v3933, %v4021
    %4023 = vmatmul.bf16.gmra.mxu0 %v2928
    %v4024 = vpop.f32.mrf.mxu0
    %v4025 = vadd.f32 %v3936, %v4024
    %v4026 = vpop.f32.mrf.mxu0
    %v4027 = vadd.f32 %v3938, %v4026
    %4028 = vmatmul.bf16.gmra.mxu0 %v2931
    %v4029 = vpop.f32.mrf.mxu0
    %v4030 = vadd.f32 %v3941, %v4029
    %v4031 = vpop.f32.mrf.mxu0
    %v4032 = vadd.f32 %v3943, %v4031
    %4033 = vmatmul.bf16.gmra.mxu0 %v2934
    %v4034 = vpop.f32.mrf.mxu0
    %v4035 = vadd.f32 %v3946, %v4034
    %v4036 = vpop.f32.mrf.mxu0
    %v4037 = vadd.f32 %v3948, %v4036
    %4038 = vmatmul.bf16.gmra.mxu0 %v2937
    %v4039 = vpop.f32.mrf.mxu0
    %v4040 = vadd.f32 %v3951, %v4039
    %v4041 = vpop.f32.mrf.mxu0
    %v4042 = vadd.f32 %v3953, %v4041
    %4043 = vmatmul.bf16.gmra.mxu0 %v2940
    %v4044 = vpop.f32.mrf.mxu0
    %v4045 = vadd.f32 %v3956, %v4044
    %v4046 = vpop.f32.mrf.mxu0
    %v4047 = vadd.f32 %v3958, %v4046
    %4048 = vmatmul.bf16.gmra.mxu0 %v2943
    %v4049 = vpop.f32.mrf.mxu0
    %v4050 = vadd.f32 %v3961, %v4049
    %v4051 = vpop.f32.mrf.mxu0
    %v4052 = vadd.f32 %v3963, %v4051
    %4053 = vmatmul.bf16.gmra.mxu0 %v2946
    %v4054 = vpop.f32.mrf.mxu0
    %v4055 = vadd.f32 %v3966, %v4054
    %v4056 = vpop.f32.mrf.mxu0
    %v4057 = vadd.f32 %v3968, %v4056
    %4058 = vmatmul.bf16.gmra.mxu0 %v2949
    %v4059 = vpop.f32.mrf.mxu0
    %v4060 = vadd.f32 %v3971, %v4059
    %v4061 = vpop.f32.mrf.mxu0
    %v4062 = vadd.f32 %v3973, %v4061
    %4063 = vmatmul.bf16.gmra.mxu0 %v2952
    %v4064 = vpop.f32.mrf.mxu0
    %v4065 = vadd.f32 %v3976, %v4064
    %v4066 = vpop.f32.mrf.mxu0
    %v4067 = vadd.f32 %v3978, %v4066
    %4068 = vdwg.mxu0
    %4069 = vmatpush.bf16.msra.mxu0 %v1510
    %4070 = vmatpush.bf16.msra.mxu0 %v1507
    %4071 = vmatpush.bf16.msra.mxu0 %v1504
    %4072 = vmatpush.bf16.msra.mxu0 %v1501
    %4073 = vmatpush.bf16.msra.mxu0 %v1498
    %4074 = vmatpush.bf16.msra.mxu0 %v1495
    %4075 = vmatpush.bf16.msra.mxu0 %v1492
    %4076 = vmatpush.bf16.msra.mxu0 %v1489
    %4077 = vmatmul.bf16.gmra.mxu0 %v2905
    %v4078 = vpop.f32.mrf.mxu0
    %v4079 = vadd.f32 0.0, %v4078
    %v4080 = vpop.f32.mrf.mxu0
    %v4081 = vadd.f32 0.0, %v4080
    %4082 = vmatmul.bf16.gmra.mxu0 %v2908
    %v4083 = vpop.f32.mrf.mxu0
    %v4084 = vadd.f32 0.0, %v4083
    %v4085 = vpop.f32.mrf.mxu0
    %v4086 = vadd.f32 0.0, %v4085
    %4087 = vmatmul.bf16.gmra.mxu0 %v2911
    %v4088 = vpop.f32.mrf.mxu0
    %v4089 = vadd.f32 0.0, %v4088
    %v4090 = vpop.f32.mrf.mxu0
    %v4091 = vadd.f32 0.0, %v4090
    %4092 = vmatmul.bf16.gmra.mxu0 %v2914
    %v4093 = vpop.f32.mrf.mxu0
    %v4094 = vadd.f32 0.0, %v4093
    %v4095 = vpop.f32.mrf.mxu0
    %v4096 = vadd.f32 0.0, %v4095
    %4097 = vmatmul.bf16.gmra.mxu0 %v2917
    %v4098 = vpop.f32.mrf.mxu0
    %v4099 = vadd.f32 0.0, %v4098
    %v4100 = vpop.f32.mrf.mxu0
    %v4101 = vadd.f32 0.0, %v4100
    %4102 = vmatmul.bf16.gmra.mxu0 %v2920
    %v4103 = vpop.f32.mrf.mxu0
    %v4104 = vadd.f32 0.0, %v4103
    %v4105 = vpop.f32.mrf.mxu0
    %v4106 = vadd.f32 0.0, %v4105
    %4107 = vmatmul.bf16.gmra.mxu0 %v2923
    %v4108 = vpop.f32.mrf.mxu0
    %v4109 = vadd.f32 0.0, %v4108
    %v4110 = vpop.f32.mrf.mxu0
    %v4111 = vadd.f32 0.0, %v4110
    %4112 = vmatmul.bf16.gmra.mxu0 %v2926
    %v4113 = vpop.f32.mrf.mxu0
    %v4114 = vadd.f32 0.0, %v4113
    %v4115 = vpop.f32.mrf.mxu0
    %v4116 = vadd.f32 0.0, %v4115
    %4117 = vmatmul.bf16.gmra.mxu0 %v2929
    %v4118 = vpop.f32.mrf.mxu0
    %v4119 = vadd.f32 0.0, %v4118
    %v4120 = vpop.f32.mrf.mxu0
    %v4121 = vadd.f32 0.0, %v4120
    %4122 = vmatmul.bf16.gmra.mxu0 %v2932
    %v4123 = vpop.f32.mrf.mxu0
    %v4124 = vadd.f32 0.0, %v4123
    %v4125 = vpop.f32.mrf.mxu0
    %v4126 = vadd.f32 0.0, %v4125
    %4127 = vmatmul.bf16.gmra.mxu0 %v2935
    %v4128 = vpop.f32.mrf.mxu0
    %v4129 = vadd.f32 0.0, %v4128
    %v4130 = vpop.f32.mrf.mxu0
    %v4131 = vadd.f32 0.0, %v4130
    %4132 = vmatmul.bf16.gmra.mxu0 %v2938
    %v4133 = vpop.f32.mrf.mxu0
    %v4134 = vadd.f32 0.0, %v4133
    %v4135 = vpop.f32.mrf.mxu0
    %v4136 = vadd.f32 0.0, %v4135
    %4137 = vmatmul.bf16.gmra.mxu0 %v2941
    %v4138 = vpop.f32.mrf.mxu0
    %v4139 = vadd.f32 0.0, %v4138
    %v4140 = vpop.f32.mrf.mxu0
    %v4141 = vadd.f32 0.0, %v4140
    %4142 = vmatmul.bf16.gmra.mxu0 %v2944
    %v4143 = vpop.f32.mrf.mxu0
    %v4144 = vadd.f32 0.0, %v4143
    %v4145 = vpop.f32.mrf.mxu0
    %v4146 = vadd.f32 0.0, %v4145
    %4147 = vmatmul.bf16.gmra.mxu0 %v2947
    %v4148 = vpop.f32.mrf.mxu0
    %v4149 = vadd.f32 0.0, %v4148
    %v4150 = vpop.f32.mrf.mxu0
    %v4151 = vadd.f32 0.0, %v4150
    %4152 = vmatmul.bf16.gmra.mxu0 %v2950
    %v4153 = vpop.f32.mrf.mxu0
    %v4154 = vadd.f32 0.0, %v4153
    %v4155 = vpop.f32.mrf.mxu0
    %v4156 = vadd.f32 0.0, %v4155
    %4157 = vdwg.mxu0
    %4158 = vmatpush.bf16.msra.mxu0 %v1534
    %4159 = vmatpush.bf16.msra.mxu0 %v1531
    %4160 = vmatpush.bf16.msra.mxu0 %v1528
    %4161 = vmatpush.bf16.msra.mxu0 %v1525
    %4162 = vmatpush.bf16.msra.mxu0 %v1522
    %4163 = vmatpush.bf16.msra.mxu0 %v1519
    %4164 = vmatpush.bf16.msra.mxu0 %v1516
    %4165 = vmatpush.bf16.msra.mxu0 %v1513
    %4166 = vmatmul.bf16.gmra.mxu0 %v2906
    %v4167 = vpop.f32.mrf.mxu0
    %v4168 = vadd.f32 %v4079, %v4167
    %v4169 = vpop.f32.mrf.mxu0
    %v4170 = vadd.f32 %v4081, %v4169
    %4171 = vmatmul.bf16.gmra.mxu0 %v2909
    %v4172 = vpop.f32.mrf.mxu0
    %v4173 = vadd.f32 %v4084, %v4172
    %v4174 = vpop.f32.mrf.mxu0
    %v4175 = vadd.f32 %v4086, %v4174
    %4176 = vmatmul.bf16.gmra.mxu0 %v2912
    %v4177 = vpop.f32.mrf.mxu0
    %v4178 = vadd.f32 %v4089, %v4177
    %v4179 = vpop.f32.mrf.mxu0
    %v4180 = vadd.f32 %v4091, %v4179
    %4181 = vmatmul.bf16.gmra.mxu0 %v2915
    %v4182 = vpop.f32.mrf.mxu0
    %v4183 = vadd.f32 %v4094, %v4182
    %v4184 = vpop.f32.mrf.mxu0
    %v4185 = vadd.f32 %v4096, %v4184
    %4186 = vmatmul.bf16.gmra.mxu0 %v2918
    %v4187 = vpop.f32.mrf.mxu0
    %v4188 = vadd.f32 %v4099, %v4187
    %v4189 = vpop.f32.mrf.mxu0
    %v4190 = vadd.f32 %v4101, %v4189
    %4191 = vmatmul.bf16.gmra.mxu0 %v2921
    %v4192 = vpop.f32.mrf.mxu0
    %v4193 = vadd.f32 %v4104, %v4192
    %v4194 = vpop.f32.mrf.mxu0
    %v4195 = vadd.f32 %v4106, %v4194
    %4196 = vmatmul.bf16.gmra.mxu0 %v2924
    %v4197 = vpop.f32.mrf.mxu0
    %v4198 = vadd.f32 %v4109, %v4197
    %v4199 = vpop.f32.mrf.mxu0
    %v4200 = vadd.f32 %v4111, %v4199
    %4201 = vmatmul.bf16.gmra.mxu0 %v2927
    %v4202 = vpop.f32.mrf.mxu0
    %v4203 = vadd.f32 %v4114, %v4202
    %v4204 = vpop.f32.mrf.mxu0
    %v4205 = vadd.f32 %v4116, %v4204
    %4206 = vmatmul.bf16.gmra.mxu0 %v2930
    %v4207 = vpop.f32.mrf.mxu0
    %v4208 = vadd.f32 %v4119, %v4207
    %v4209 = vpop.f32.mrf.mxu0
    %v4210 = vadd.f32 %v4121, %v4209
    %4211 = vmatmul.bf16.gmra.mxu0 %v2933
    %v4212 = vpop.f32.mrf.mxu0
    %v4213 = vadd.f32 %v4124, %v4212
    %v4214 = vpop.f32.mrf.mxu0
    %v4215 = vadd.f32 %v4126, %v4214
    %4216 = vmatmul.bf16.gmra.mxu0 %v2936
    %v4217 = vpop.f32.mrf.mxu0
    %v4218 = vadd.f32 %v4129, %v4217
    %v4219 = vpop.f32.mrf.mxu0
    %v4220 = vadd.f32 %v4131, %v4219
    %4221 = vmatmul.bf16.gmra.mxu0 %v2939
    %v4222 = vpop.f32.mrf.mxu0
    %v4223 = vadd.f32 %v4134, %v4222
    %v4224 = vpop.f32.mrf.mxu0
    %v4225 = vadd.f32 %v4136, %v4224
    %4226 = vmatmul.bf16.gmra.mxu0 %v2942
    %v4227 = vpop.f32.mrf.mxu0
    %v4228 = vadd.f32 %v4139, %v4227
    %v4229 = vpop.f32.mrf.mxu0
    %v4230 = vadd.f32 %v4141, %v4229
    %4231 = vmatmul.bf16.gmra.mxu0 %v2945
    %v4232 = vpop.f32.mrf.mxu0
    %v4233 = vadd.f32 %v4144, %v4232
    %v4234 = vpop.f32.mrf.mxu0
    %v4235 = vadd.f32 %v4146, %v4234
    %4236 = vmatmul.bf16.gmra.mxu0 %v2948
    %v4237 = vpop.f32.mrf.mxu0
    %v4238 = vadd.f32 %v4149, %v4237
    %v4239 = vpop.f32.mrf.mxu0
    %v4240 = vadd.f32 %v4151, %v4239
    %4241 = vmatmul.bf16.gmra.mxu0 %v2951
    %v4242 = vpop.f32.mrf.mxu0
    %v4243 = vadd.f32 %v4154, %v4242
    %v4244 = vpop.f32.mrf.mxu0
    %v4245 = vadd.f32 %v4156, %v4244
    %4246 = vdwg.mxu0
    %4247 = vmatpush.bf16.msra.mxu0 %v1558
    %4248 = vmatpush.bf16.msra.mxu0 %v1555
    %4249 = vmatpush.bf16.msra.mxu0 %v1552
    %4250 = vmatpush.bf16.msra.mxu0 %v1549
    %4251 = vmatpush.bf16.msra.mxu0 %v1546
    %4252 = vmatpush.bf16.msra.mxu0 %v1543
    %4253 = vmatpush.bf16.msra.mxu0 %v1540
    %4254 = vmatpush.bf16.msra.mxu0 %v1537
    %4255 = vmatmul.bf16.gmra.mxu0 %v2907
    %v4256 = vpop.f32.mrf.mxu0
    %v4257 = vadd.f32 %v4168, %v4256
    %v4258 = vpop.f32.mrf.mxu0
    %v4259 = vadd.f32 %v4170, %v4258
    %4260 = vmatmul.bf16.gmra.mxu0 %v2910
    %v4261 = vpop.f32.mrf.mxu0
    %v4262 = vadd.f32 %v4173, %v4261
    %v4263 = vpop.f32.mrf.mxu0
    %v4264 = vadd.f32 %v4175, %v4263
    %4265 = vmatmul.bf16.gmra.mxu0 %v2913
    %v4266 = vpop.f32.mrf.mxu0
    %v4267 = vadd.f32 %v4178, %v4266
    %v4268 = vpop.f32.mrf.mxu0
    %v4269 = vadd.f32 %v4180, %v4268
    %4270 = vmatmul.bf16.gmra.mxu0 %v2916
    %v4271 = vpop.f32.mrf.mxu0
    %v4272 = vadd.f32 %v4183, %v4271
    %v4273 = vpop.f32.mrf.mxu0
    %v4274 = vadd.f32 %v4185, %v4273
    %4275 = vmatmul.bf16.gmra.mxu0 %v2919
    %v4276 = vpop.f32.mrf.mxu0
    %v4277 = vadd.f32 %v4188, %v4276
    %v4278 = vpop.f32.mrf.mxu0
    %v4279 = vadd.f32 %v4190, %v4278
    %4280 = vmatmul.bf16.gmra.mxu0 %v2922
    %v4281 = vpop.f32.mrf.mxu0
    %v4282 = vadd.f32 %v4193, %v4281
    %v4283 = vpop.f32.mrf.mxu0
    %v4284 = vadd.f32 %v4195, %v4283
    %4285 = vmatmul.bf16.gmra.mxu0 %v2925
    %v4286 = vpop.f32.mrf.mxu0
    %v4287 = vadd.f32 %v4198, %v4286
    %v4288 = vpop.f32.mrf.mxu0
    %v4289 = vadd.f32 %v4200, %v4288
    %4290 = vmatmul.bf16.gmra.mxu0 %v2928
    %v4291 = vpop.f32.mrf.mxu0
    %v4292 = vadd.f32 %v4203, %v4291
    %v4293 = vpop.f32.mrf.mxu0
    %v4294 = vadd.f32 %v4205, %v4293
    %4295 = vmatmul.bf16.gmra.mxu0 %v2931
    %v4296 = vpop.f32.mrf.mxu0
    %v4297 = vadd.f32 %v4208, %v4296
    %v4298 = vpop.f32.mrf.mxu0
    %v4299 = vadd.f32 %v4210, %v4298
    %4300 = vmatmul.bf16.gmra.mxu0 %v2934
    %v4301 = vpop.f32.mrf.mxu0
    %v4302 = vadd.f32 %v4213, %v4301
    %v4303 = vpop.f32.mrf.mxu0
    %v4304 = vadd.f32 %v4215, %v4303
    %4305 = vmatmul.bf16.gmra.mxu0 %v2937
    %v4306 = vpop.f32.mrf.mxu0
    %v4307 = vadd.f32 %v4218, %v4306
    %v4308 = vpop.f32.mrf.mxu0
    %v4309 = vadd.f32 %v4220, %v4308
    %4310 = vmatmul.bf16.gmra.mxu0 %v2940
    %v4311 = vpop.f32.mrf.mxu0
    %v4312 = vadd.f32 %v4223, %v4311
    %v4313 = vpop.f32.mrf.mxu0
    %v4314 = vadd.f32 %v4225, %v4313
    %4315 = vmatmul.bf16.gmra.mxu0 %v2943
    %v4316 = vpop.f32.mrf.mxu0
    %v4317 = vadd.f32 %v4228, %v4316
    %v4318 = vpop.f32.mrf.mxu0
    %v4319 = vadd.f32 %v4230, %v4318
    %4320 = vmatmul.bf16.gmra.mxu0 %v2946
    %v4321 = vpop.f32.mrf.mxu0
    %v4322 = vadd.f32 %v4233, %v4321
    %v4323 = vpop.f32.mrf.mxu0
    %v4324 = vadd.f32 %v4235, %v4323
    %4325 = vmatmul.bf16.gmra.mxu0 %v2949
    %v4326 = vpop.f32.mrf.mxu0
    %v4327 = vadd.f32 %v4238, %v4326
    %v4328 = vpop.f32.mrf.mxu0
    %v4329 = vadd.f32 %v4240, %v4328
    %4330 = vmatmul.bf16.gmra.mxu0 %v2952
    %v4331 = vpop.f32.mrf.mxu0
    %v4332 = vadd.f32 %v4243, %v4331
    %v4333 = vpop.f32.mrf.mxu0
    %v4334 = vadd.f32 %v4245, %v4333
    %4335 = vdwg.mxu0
    %4336 = vmatpush.bf16.msra.mxu0 %v1511
    %4337 = vmatpush.bf16.msra.mxu0 %v1508
    %4338 = vmatpush.bf16.msra.mxu0 %v1505
    %4339 = vmatpush.bf16.msra.mxu0 %v1502
    %4340 = vmatpush.bf16.msra.mxu0 %v1499
    %4341 = vmatpush.bf16.msra.mxu0 %v1496
    %4342 = vmatpush.bf16.msra.mxu0 %v1493
    %4343 = vmatpush.bf16.msra.mxu0 %v1490
    %4344 = vmatmul.bf16.gmra.mxu0 %v2905
    %v4345 = vpop.f32.mrf.mxu0
    %v4346 = vadd.f32 0.0, %v4345
    %v4347 = vpop.f32.mrf.mxu0
    %v4348 = vadd.f32 0.0, %v4347
    %4349 = vmatmul.bf16.gmra.mxu0 %v2908
    %v4350 = vpop.f32.mrf.mxu0
    %v4351 = vadd.f32 0.0, %v4350
    %v4352 = vpop.f32.mrf.mxu0
    %v4353 = vadd.f32 0.0, %v4352
    %4354 = vmatmul.bf16.gmra.mxu0 %v2911
    %v4355 = vpop.f32.mrf.mxu0
    %v4356 = vadd.f32 0.0, %v4355
    %v4357 = vpop.f32.mrf.mxu0
    %v4358 = vadd.f32 0.0, %v4357
    %4359 = vmatmul.bf16.gmra.mxu0 %v2914
    %v4360 = vpop.f32.mrf.mxu0
    %v4361 = vadd.f32 0.0, %v4360
    %v4362 = vpop.f32.mrf.mxu0
    %v4363 = vadd.f32 0.0, %v4362
    %4364 = vmatmul.bf16.gmra.mxu0 %v2917
    %v4365 = vpop.f32.mrf.mxu0
    %v4366 = vadd.f32 0.0, %v4365
    %v4367 = vpop.f32.mrf.mxu0
    %v4368 = vadd.f32 0.0, %v4367
    %4369 = vmatmul.bf16.gmra.mxu0 %v2920
    %v4370 = vpop.f32.mrf.mxu0
    %v4371 = vadd.f32 0.0, %v4370
    %v4372 = vpop.f32.mrf.mxu0
    %v4373 = vadd.f32 0.0, %v4372
    %4374 = vmatmul.bf16.gmra.mxu0 %v2923
    %v4375 = vpop.f32.mrf.mxu0
    %v4376 = vadd.f32 0.0, %v4375
    %v4377 = vpop.f32.mrf.mxu0
    %v4378 = vadd.f32 0.0, %v4377
    %4379 = vmatmul.bf16.gmra.mxu0 %v2926
    %v4380 = vpop.f32.mrf.mxu0
    %v4381 = vadd.f32 0.0, %v4380
    %v4382 = vpop.f32.mrf.mxu0
    %v4383 = vadd.f32 0.0, %v4382
    %4384 = vmatmul.bf16.gmra.mxu0 %v2929
    %v4385 = vpop.f32.mrf.mxu0
    %v4386 = vadd.f32 0.0, %v4385
    %v4387 = vpop.f32.mrf.mxu0
    %v4388 = vadd.f32 0.0, %v4387
    %4389 = vmatmul.bf16.gmra.mxu0 %v2932
    %v4390 = vpop.f32.mrf.mxu0
    %v4391 = vadd.f32 0.0, %v4390
    %v4392 = vpop.f32.mrf.mxu0
    %v4393 = vadd.f32 0.0, %v4392
    %4394 = vmatmul.bf16.gmra.mxu0 %v2935
    %v4395 = vpop.f32.mrf.mxu0
    %v4396 = vadd.f32 0.0, %v4395
    %v4397 = vpop.f32.mrf.mxu0
    %v4398 = vadd.f32 0.0, %v4397
    %4399 = vmatmul.bf16.gmra.mxu0 %v2938
    %v4400 = vpop.f32.mrf.mxu0
    %v4401 = vadd.f32 0.0, %v4400
    %v4402 = vpop.f32.mrf.mxu0
    %v4403 = vadd.f32 0.0, %v4402
    %4404 = vmatmul.bf16.gmra.mxu0 %v2941
    %v4405 = vpop.f32.mrf.mxu0
    %v4406 = vadd.f32 0.0, %v4405
    %v4407 = vpop.f32.mrf.mxu0
    %v4408 = vadd.f32 0.0, %v4407
    %4409 = vmatmul.bf16.gmra.mxu0 %v2944
    %v4410 = vpop.f32.mrf.mxu0
    %v4411 = vadd.f32 0.0, %v4410
    %v4412 = vpop.f32.mrf.mxu0
    %v4413 = vadd.f32 0.0, %v4412
    %4414 = vmatmul.bf16.gmra.mxu0 %v2947
    %v4415 = vpop.f32.mrf.mxu0
    %v4416 = vadd.f32 0.0, %v4415
    %v4417 = vpop.f32.mrf.mxu0
    %v4418 = vadd.f32 0.0, %v4417
    %4419 = vmatmul.bf16.gmra.mxu0 %v2950
    %v4420 = vpop.f32.mrf.mxu0
    %v4421 = vadd.f32 0.0, %v4420
    %v4422 = vpop.f32.mrf.mxu0
    %v4423 = vadd.f32 0.0, %v4422
    %4424 = vdwg.mxu0
    %4425 = vmatpush.bf16.msra.mxu0 %v1535
    %4426 = vmatpush.bf16.msra.mxu0 %v1532
    %4427 = vmatpush.bf16.msra.mxu0 %v1529
    %4428 = vmatpush.bf16.msra.mxu0 %v1526
    %4429 = vmatpush.bf16.msra.mxu0 %v1523
    %4430 = vmatpush.bf16.msra.mxu0 %v1520
    %4431 = vmatpush.bf16.msra.mxu0 %v1517
    %4432 = vmatpush.bf16.msra.mxu0 %v1514
    %4433 = vmatmul.bf16.gmra.mxu0 %v2906
    %v4434 = vpop.f32.mrf.mxu0
    %v4435 = vadd.f32 %v4346, %v4434
    %v4436 = vpop.f32.mrf.mxu0
    %v4437 = vadd.f32 %v4348, %v4436
    %4438 = vmatmul.bf16.gmra.mxu0 %v2909
    %v4439 = vpop.f32.mrf.mxu0
    %v4440 = vadd.f32 %v4351, %v4439
    %v4441 = vpop.f32.mrf.mxu0
    %v4442 = vadd.f32 %v4353, %v4441
    %4443 = vmatmul.bf16.gmra.mxu0 %v2912
    %v4444 = vpop.f32.mrf.mxu0
    %v4445 = vadd.f32 %v4356, %v4444
    %v4446 = vpop.f32.mrf.mxu0
    %v4447 = vadd.f32 %v4358, %v4446
    %4448 = vmatmul.bf16.gmra.mxu0 %v2915
    %v4449 = vpop.f32.mrf.mxu0
    %v4450 = vadd.f32 %v4361, %v4449
    %v4451 = vpop.f32.mrf.mxu0
    %v4452 = vadd.f32 %v4363, %v4451
    %4453 = vmatmul.bf16.gmra.mxu0 %v2918
    %v4454 = vpop.f32.mrf.mxu0
    %v4455 = vadd.f32 %v4366, %v4454
    %v4456 = vpop.f32.mrf.mxu0
    %v4457 = vadd.f32 %v4368, %v4456
    %4458 = vmatmul.bf16.gmra.mxu0 %v2921
    %v4459 = vpop.f32.mrf.mxu0
    %v4460 = vadd.f32 %v4371, %v4459
    %v4461 = vpop.f32.mrf.mxu0
    %v4462 = vadd.f32 %v4373, %v4461
    %4463 = vmatmul.bf16.gmra.mxu0 %v2924
    %v4464 = vpop.f32.mrf.mxu0
    %v4465 = vadd.f32 %v4376, %v4464
    %v4466 = vpop.f32.mrf.mxu0
    %v4467 = vadd.f32 %v4378, %v4466
    %4468 = vmatmul.bf16.gmra.mxu0 %v2927
    %v4469 = vpop.f32.mrf.mxu0
    %v4470 = vadd.f32 %v4381, %v4469
    %v4471 = vpop.f32.mrf.mxu0
    %v4472 = vadd.f32 %v4383, %v4471
    %4473 = vmatmul.bf16.gmra.mxu0 %v2930
    %v4474 = vpop.f32.mrf.mxu0
    %v4475 = vadd.f32 %v4386, %v4474
    %v4476 = vpop.f32.mrf.mxu0
    %v4477 = vadd.f32 %v4388, %v4476
    %4478 = vmatmul.bf16.gmra.mxu0 %v2933
    %v4479 = vpop.f32.mrf.mxu0
    %v4480 = vadd.f32 %v4391, %v4479
    %v4481 = vpop.f32.mrf.mxu0
    %v4482 = vadd.f32 %v4393, %v4481
    %4483 = vmatmul.bf16.gmra.mxu0 %v2936
    %v4484 = vpop.f32.mrf.mxu0
    %v4485 = vadd.f32 %v4396, %v4484
    %v4486 = vpop.f32.mrf.mxu0
    %v4487 = vadd.f32 %v4398, %v4486
    %4488 = vmatmul.bf16.gmra.mxu0 %v2939
    %v4489 = vpop.f32.mrf.mxu0
    %v4490 = vadd.f32 %v4401, %v4489
    %v4491 = vpop.f32.mrf.mxu0
    %v4492 = vadd.f32 %v4403, %v4491
    %4493 = vmatmul.bf16.gmra.mxu0 %v2942
    %v4494 = vpop.f32.mrf.mxu0
    %v4495 = vadd.f32 %v4406, %v4494
    %v4496 = vpop.f32.mrf.mxu0
    %v4497 = vadd.f32 %v4408, %v4496
    %4498 = vmatmul.bf16.gmra.mxu0 %v2945
    %v4499 = vpop.f32.mrf.mxu0
    %v4500 = vadd.f32 %v4411, %v4499
    %v4501 = vpop.f32.mrf.mxu0
    %v4502 = vadd.f32 %v4413, %v4501
    %4503 = vmatmul.bf16.gmra.mxu0 %v2948
    %v4504 = vpop.f32.mrf.mxu0
    %v4505 = vadd.f32 %v4416, %v4504
    %v4506 = vpop.f32.mrf.mxu0
    %v4507 = vadd.f32 %v4418, %v4506
    %4508 = vmatmul.bf16.gmra.mxu0 %v2951
    %v4509 = vpop.f32.mrf.mxu0
    %v4510 = vadd.f32 %v4421, %v4509
    %v4511 = vpop.f32.mrf.mxu0
    %v4512 = vadd.f32 %v4423, %v4511
    %4513 = vdwg.mxu0
    %4514 = vmatpush.bf16.msra.mxu0 %v1559
    %4515 = vmatpush.bf16.msra.mxu0 %v1556
    %4516 = vmatpush.bf16.msra.mxu0 %v1553
    %4517 = vmatpush.bf16.msra.mxu0 %v1550
    %4518 = vmatpush.bf16.msra.mxu0 %v1547
    %4519 = vmatpush.bf16.msra.mxu0 %v1544
    %4520 = vmatpush.bf16.msra.mxu0 %v1541
    %4521 = vmatpush.bf16.msra.mxu0 %v1538
    %4522 = vmatmul.bf16.gmra.mxu0 %v2907
    %v4523 = vpop.f32.mrf.mxu0
    %v4524 = vadd.f32 %v4435, %v4523
    %v4525 = vpop.f32.mrf.mxu0
    %v4526 = vadd.f32 %v4437, %v4525
    %4527 = vmatmul.bf16.gmra.mxu0 %v2910
    %v4528 = vpop.f32.mrf.mxu0
    %v4529 = vadd.f32 %v4440, %v4528
    %v4530 = vpop.f32.mrf.mxu0
    %v4531 = vadd.f32 %v4442, %v4530
    %4532 = vmatmul.bf16.gmra.mxu0 %v2913
    %v4533 = vpop.f32.mrf.mxu0
    %v4534 = vadd.f32 %v4445, %v4533
    %v4535 = vpop.f32.mrf.mxu0
    %v4536 = vadd.f32 %v4447, %v4535
    %4537 = vmatmul.bf16.gmra.mxu0 %v2916
    %v4538 = vpop.f32.mrf.mxu0
    %v4539 = vadd.f32 %v4450, %v4538
    %v4540 = vpop.f32.mrf.mxu0
    %v4541 = vadd.f32 %v4452, %v4540
    %4542 = vmatmul.bf16.gmra.mxu0 %v2919
    %v4543 = vpop.f32.mrf.mxu0
    %v4544 = vadd.f32 %v4455, %v4543
    %v4545 = vpop.f32.mrf.mxu0
    %v4546 = vadd.f32 %v4457, %v4545
    %4547 = vmatmul.bf16.gmra.mxu0 %v2922
    %v4548 = vpop.f32.mrf.mxu0
    %v4549 = vadd.f32 %v4460, %v4548
    %v4550 = vpop.f32.mrf.mxu0
    %v4551 = vadd.f32 %v4462, %v4550
    %4552 = vmatmul.bf16.gmra.mxu0 %v2925
    %v4553 = vpop.f32.mrf.mxu0
    %v4554 = vadd.f32 %v4465, %v4553
    %v4555 = vpop.f32.mrf.mxu0
    %v4556 = vadd.f32 %v4467, %v4555
    %4557 = vmatmul.bf16.gmra.mxu0 %v2928
    %v4558 = vpop.f32.mrf.mxu0
    %v4559 = vadd.f32 %v4470, %v4558
    %v4560 = vpop.f32.mrf.mxu0
    %v4561 = vadd.f32 %v4472, %v4560
    %4562 = vmatmul.bf16.gmra.mxu0 %v2931
    %v4563 = vpop.f32.mrf.mxu0
    %v4564 = vadd.f32 %v4475, %v4563
    %v4565 = vpop.f32.mrf.mxu0
    %v4566 = vadd.f32 %v4477, %v4565
    %4567 = vmatmul.bf16.gmra.mxu0 %v2934
    %v4568 = vpop.f32.mrf.mxu0
    %v4569 = vadd.f32 %v4480, %v4568
    %v4570 = vpop.f32.mrf.mxu0
    %v4571 = vadd.f32 %v4482, %v4570
    %4572 = vmatmul.bf16.gmra.mxu0 %v2937
    %v4573 = vpop.f32.mrf.mxu0
    %v4574 = vadd.f32 %v4485, %v4573
    %v4575 = vpop.f32.mrf.mxu0
    %v4576 = vadd.f32 %v4487, %v4575
    %4577 = vmatmul.bf16.gmra.mxu0 %v2940
    %v4578 = vpop.f32.mrf.mxu0
    %v4579 = vadd.f32 %v4490, %v4578
    %v4580 = vpop.f32.mrf.mxu0
    %v4581 = vadd.f32 %v4492, %v4580
    %4582 = vmatmul.bf16.gmra.mxu0 %v2943
    %v4583 = vpop.f32.mrf.mxu0
    %v4584 = vadd.f32 %v4495, %v4583
    %v4585 = vpop.f32.mrf.mxu0
    %v4586 = vadd.f32 %v4497, %v4585
    %4587 = vmatmul.bf16.gmra.mxu0 %v2946
    %v4588 = vpop.f32.mrf.mxu0
    %v4589 = vadd.f32 %v4500, %v4588
    %v4590 = vpop.f32.mrf.mxu0
    %v4591 = vadd.f32 %v4502, %v4590
    %4592 = vmatmul.bf16.gmra.mxu0 %v2949
    %v4593 = vpop.f32.mrf.mxu0
    %v4594 = vadd.f32 %v4505, %v4593
    %v4595 = vpop.f32.mrf.mxu0
    %v4596 = vadd.f32 %v4507, %v4595
    %4597 = vmatmul.bf16.gmra.mxu0 %v2952
    %v4598 = vpop.f32.mrf.mxu0
    %v4599 = vadd.f32 %v4510, %v4598
    %v4600 = vpop.f32.mrf.mxu0
    %v4601 = vadd.f32 %v4512, %v4600
    %4602 = vdwg.mxu0
    %v4603 = vadd.f32 %v3189, %v3990
    %v4604 = vadd.f32 %v3456, %v4257
    %v4605 = vadd.f32 %v3723, %v4524
    %v4606 = vadd.f32 %v3191, %v3992
    %v4607 = vadd.f32 %v3458, %v4259
    %v4608 = vadd.f32 %v3725, %v4526
    %v4609 = vadd.f32 %v3194, %v3995
    %v4610 = vadd.f32 %v3461, %v4262
    %v4611 = vadd.f32 %v3728, %v4529
    %v4612 = vadd.f32 %v3196, %v3997
    %v4613 = vadd.f32 %v3463, %v4264
    %v4614 = vadd.f32 %v3730, %v4531
    %v4615 = vadd.f32 %v3199, %v4000
    %v4616 = vadd.f32 %v3466, %v4267
    %v4617 = vadd.f32 %v3733, %v4534
    %v4618 = vadd.f32 %v3201, %v4002
    %v4619 = vadd.f32 %v3468, %v4269
    %v4620 = vadd.f32 %v3735, %v4536
    %v4621 = vadd.f32 %v3204, %v4005
    %v4622 = vadd.f32 %v3471, %v4272
    %v4623 = vadd.f32 %v3738, %v4539
    %v4624 = vadd.f32 %v3206, %v4007
    %v4625 = vadd.f32 %v3473, %v4274
    %v4626 = vadd.f32 %v3740, %v4541
    %v4627 = vadd.f32 %v3209, %v4010
    %v4628 = vadd.f32 %v3476, %v4277
    %v4629 = vadd.f32 %v3743, %v4544
    %v4630 = vadd.f32 %v3211, %v4012
    %v4631 = vadd.f32 %v3478, %v4279
    %v4632 = vadd.f32 %v3745, %v4546
    %v4633 = vadd.f32 %v3214, %v4015
    %v4634 = vadd.f32 %v3481, %v4282
    %v4635 = vadd.f32 %v3748, %v4549
    %v4636 = vadd.f32 %v3216, %v4017
    %v4637 = vadd.f32 %v3483, %v4284
    %v4638 = vadd.f32 %v3750, %v4551
    %v4639 = vadd.f32 %v3219, %v4020
    %v4640 = vadd.f32 %v3486, %v4287
    %v4641 = vadd.f32 %v3753, %v4554
    %v4642 = vadd.f32 %v3221, %v4022
    %v4643 = vadd.f32 %v3488, %v4289
    %v4644 = vadd.f32 %v3755, %v4556
    %v4645 = vadd.f32 %v3224, %v4025
    %v4646 = vadd.f32 %v3491, %v4292
    %v4647 = vadd.f32 %v3758, %v4559
    %v4648 = vadd.f32 %v3226, %v4027
    %v4649 = vadd.f32 %v3493, %v4294
    %v4650 = vadd.f32 %v3760, %v4561
    %v4651 = vadd.f32 %v3229, %v4030
    %v4652 = vadd.f32 %v3496, %v4297
    %v4653 = vadd.f32 %v3763, %v4564
    %v4654 = vadd.f32 %v3231, %v4032
    %v4655 = vadd.f32 %v3498, %v4299
    %v4656 = vadd.f32 %v3765, %v4566
    %v4657 = vadd.f32 %v3234, %v4035
    %v4658 = vadd.f32 %v3501, %v4302
    %v4659 = vadd.f32 %v3768, %v4569
    %v4660 = vadd.f32 %v3236, %v4037
    %v4661 = vadd.f32 %v3503, %v4304
    %v4662 = vadd.f32 %v3770, %v4571
    %v4663 = vadd.f32 %v3239, %v4040
    %v4664 = vadd.f32 %v3506, %v4307
    %v4665 = vadd.f32 %v3773, %v4574
    %v4666 = vadd.f32 %v3241, %v4042
    %v4667 = vadd.f32 %v3508, %v4309
    %v4668 = vadd.f32 %v3775, %v4576
    %v4669 = vadd.f32 %v3244, %v4045
    %v4670 = vadd.f32 %v3511, %v4312
    %v4671 = vadd.f32 %v3778, %v4579
    %v4672 = vadd.f32 %v3246, %v4047
    %v4673 = vadd.f32 %v3513, %v4314
    %v4674 = vadd.f32 %v3780, %v4581
    %v4675 = vadd.f32 %v3249, %v4050
    %v4676 = vadd.f32 %v3516, %v4317
    %v4677 = vadd.f32 %v3783, %v4584
    %v4678 = vadd.f32 %v3251, %v4052
    %v4679 = vadd.f32 %v3518, %v4319
    %v4680 = vadd.f32 %v3785, %v4586
    %v4681 = vadd.f32 %v3254, %v4055
    %v4682 = vadd.f32 %v3521, %v4322
    %v4683 = vadd.f32 %v3788, %v4589
    %v4684 = vadd.f32 %v3256, %v4057
    %v4685 = vadd.f32 %v3523, %v4324
    %v4686 = vadd.f32 %v3790, %v4591
    %v4687 = vadd.f32 %v3259, %v4060
    %v4688 = vadd.f32 %v3526, %v4327
    %v4689 = vadd.f32 %v3793, %v4594
    %v4690 = vadd.f32 %v3261, %v4062
    %v4691 = vadd.f32 %v3528, %v4329
    %v4692 = vadd.f32 %v3795, %v4596
    %v4693 = vadd.f32 %v3264, %v4065
    %v4694 = vadd.f32 %v3531, %v4332
    %v4695 = vadd.f32 %v3798, %v4599
    %v4696 = vadd.f32 %v3266, %v4067
    %v4697 = vadd.f32 %v3533, %v4334
    %v4698 = vadd.f32 %v3800, %v4601
    %v4699 = vld [vmem:[#allocation2] sm:$0xff]
    %v4700 = vld [vmem:[#allocation2 + $0x8] sm:$0xff]
    %v4701 = vld [vmem:[#allocation2 + $0x10] sm:$0xff]
    %v4702 = vld [vmem:[#allocation2 + $0x18] sm:$0xff]
    %v4703 = vld [vmem:[#allocation2 + $0x20] sm:$0xff]
    %v4704 = vld [vmem:[#allocation2 + $0x28] sm:$0xff]
    %v4705 = vld [vmem:[#allocation2 + $0x30] sm:$0xff]
    %v4706 = vld [vmem:[#allocation2 + $0x38] sm:$0xff]
    %v4707 = vld [vmem:[#allocation2 + $0x40] sm:$0xff]
    %v4708 = vld [vmem:[#allocation2 + $0x48] sm:$0xff]
    %v4709 = vld [vmem:[#allocation2 + $0x50] sm:$0xff]
    %v4710 = vld [vmem:[#allocation2 + $0x58] sm:$0xff]
    %v4711 = vld [vmem:[#allocation2 + $0x60] sm:$0xff]
    %v4712 = vld [vmem:[#allocation2 + $0x68] sm:$0xff]
    %v4713 = vld [vmem:[#allocation2 + $0x70] sm:$0xff]
    %v4714 = vld [vmem:[#allocation2 + $0x78] sm:$0xff]
    %v4715 = vld [vmem:[#allocation2 + $0x80] sm:$0xff]
    %v4716 = vld [vmem:[#allocation2 + $0x88] sm:$0xff]
    %v4717 = vld [vmem:[#allocation2 + $0x90] sm:$0xff]
    %v4718 = vld [vmem:[#allocation2 + $0x98] sm:$0xff]
    %v4719 = vld [vmem:[#allocation2 + $0xa0] sm:$0xff]
    %v4720 = vld [vmem:[#allocation2 + $0xa8] sm:$0xff]
    %v4721 = vld [vmem:[#allocation2 + $0xb0] sm:$0xff]
    %v4722 = vld [vmem:[#allocation2 + $0xb8] sm:$0xff]
    %v4723 = vld [vmem:[#allocation2 + $0xc0] sm:$0xff]
    %v4724 = vld [vmem:[#allocation2 + $0xc8] sm:$0xff]
    %v4725 = vld [vmem:[#allocation2 + $0xd0] sm:$0xff]
    %v4726 = vld [vmem:[#allocation2 + $0xd8] sm:$0xff]
    %v4727 = vld [vmem:[#allocation2 + $0xe0] sm:$0xff]
    %v4728 = vld [vmem:[#allocation2 + $0xe8] sm:$0xff]
    %v4729 = vld [vmem:[#allocation2 + $0xf0] sm:$0xff]
    %v4730 = vld [vmem:[#allocation2 + $0xf8] sm:$0xff]
    %v4731 = vld [vmem:[#allocation2 + $0x100] sm:$0xff]
    %v4732 = vld [vmem:[#allocation2 + $0x108] sm:$0xff]
    %v4733 = vld [vmem:[#allocation2 + $0x110] sm:$0xff]
    %v4734 = vld [vmem:[#allocation2 + $0x118] sm:$0xff]
    %v4735 = vld [vmem:[#allocation2 + $0x120] sm:$0xff]
    %v4736 = vld [vmem:[#allocation2 + $0x128] sm:$0xff]
    %v4737 = vld [vmem:[#allocation2 + $0x130] sm:$0xff]
    %v4738 = vld [vmem:[#allocation2 + $0x138] sm:$0xff]
    %v4739 = vld [vmem:[#allocation2 + $0x140] sm:$0xff]
    %v4740 = vld [vmem:[#allocation2 + $0x148] sm:$0xff]
    %v4741 = vld [vmem:[#allocation2 + $0x150] sm:$0xff]
    %v4742 = vld [vmem:[#allocation2 + $0x158] sm:$0xff]
    %v4743 = vld [vmem:[#allocation2 + $0x160] sm:$0xff]
    %v4744 = vld [vmem:[#allocation2 + $0x168] sm:$0xff]
    %v4745 = vld [vmem:[#allocation2 + $0x170] sm:$0xff]
    %v4746 = vld [vmem:[#allocation2 + $0x178] sm:$0xff]
    %v4747 = vld [vmem:[#allocation2 + $0x180] sm:$0xff]
    %v4748 = vld [vmem:[#allocation2 + $0x188] sm:$0xff]
    %v4749 = vld [vmem:[#allocation2 + $0x190] sm:$0xff]
    %v4750 = vld [vmem:[#allocation2 + $0x198] sm:$0xff]
    %v4751 = vld [vmem:[#allocation2 + $0x1a0] sm:$0xff]
    %v4752 = vld [vmem:[#allocation2 + $0x1a8] sm:$0xff]
    %v4753 = vld [vmem:[#allocation2 + $0x1b0] sm:$0xff]
    %v4754 = vld [vmem:[#allocation2 + $0x1b8] sm:$0xff]
    %v4755 = vld [vmem:[#allocation2 + $0x1c0] sm:$0xff]
    %v4756 = vld [vmem:[#allocation2 + $0x1c8] sm:$0xff]
    %v4757 = vld [vmem:[#allocation2 + $0x1d0] sm:$0xff]
    %v4758 = vld [vmem:[#allocation2 + $0x1d8] sm:$0xff]
    %v4759 = vld [vmem:[#allocation2 + $0x1e0] sm:$0xff]
    %v4760 = vld [vmem:[#allocation2 + $0x1e8] sm:$0xff]
    %v4761 = vld [vmem:[#allocation2 + $0x1f0] sm:$0xff]
    %v4762 = vld [vmem:[#allocation2 + $0x1f8] sm:$0xff]
    %v4763 = vld [vmem:[#allocation2 + $0x200] sm:$0xff]
    %v4764 = vld [vmem:[#allocation2 + $0x208] sm:$0xff]
    %v4765 = vld [vmem:[#allocation2 + $0x210] sm:$0xff]
    %v4766 = vld [vmem:[#allocation2 + $0x218] sm:$0xff]
    %v4767 = vld [vmem:[#allocation2 + $0x220] sm:$0xff]
    %v4768 = vld [vmem:[#allocation2 + $0x228] sm:$0xff]
    %v4769 = vld [vmem:[#allocation2 + $0x230] sm:$0xff]
    %v4770 = vld [vmem:[#allocation2 + $0x238] sm:$0xff]
    %v4771 = vld [vmem:[#allocation2 + $0x240] sm:$0xff]
    %v4772 = vld [vmem:[#allocation2 + $0x248] sm:$0xff]
    %v4773 = vld [vmem:[#allocation2 + $0x250] sm:$0xff]
    %v4774 = vld [vmem:[#allocation2 + $0x258] sm:$0xff]
    %v4775 = vld [vmem:[#allocation2 + $0x260] sm:$0xff]
    %v4776 = vld [vmem:[#allocation2 + $0x268] sm:$0xff]
    %v4777 = vld [vmem:[#allocation2 + $0x270] sm:$0xff]
    %v4778 = vld [vmem:[#allocation2 + $0x278] sm:$0xff]
    %v4779 = vld [vmem:[#allocation2 + $0x280] sm:$0xff]
    %v4780 = vld [vmem:[#allocation2 + $0x288] sm:$0xff]
    %v4781 = vld [vmem:[#allocation2 + $0x290] sm:$0xff]
    %v4782 = vld [vmem:[#allocation2 + $0x298] sm:$0xff]
    %v4783 = vld [vmem:[#allocation2 + $0x2a0] sm:$0xff]
    %v4784 = vld [vmem:[#allocation2 + $0x2a8] sm:$0xff]
    %v4785 = vld [vmem:[#allocation2 + $0x2b0] sm:$0xff]
    %v4786 = vld [vmem:[#allocation2 + $0x2b8] sm:$0xff]
    %v4787 = vld [vmem:[#allocation2 + $0x2c0] sm:$0xff]
    %v4788 = vld [vmem:[#allocation2 + $0x2c8] sm:$0xff]
    %v4789 = vld [vmem:[#allocation2 + $0x2d0] sm:$0xff]
    %v4790 = vld [vmem:[#allocation2 + $0x2d8] sm:$0xff]
    %v4791 = vld [vmem:[#allocation2 + $0x2e0] sm:$0xff]
    %v4792 = vld [vmem:[#allocation2 + $0x2e8] sm:$0xff]
    %v4793 = vld [vmem:[#allocation2 + $0x2f0] sm:$0xff]
    %v4794 = vld [vmem:[#allocation2 + $0x2f8] sm:$0xff]
    %v4795 = vadd.f32 %v4699, %v4603
    %v4796 = vadd.f32 %v4700, %v4604
    %v4797 = vadd.f32 %v4701, %v4605
    %v4798 = vadd.f32 %v4702, %v4606
    %v4799 = vadd.f32 %v4703, %v4607
    %v4800 = vadd.f32 %v4704, %v4608
    %v4801 = vadd.f32 %v4705, %v4609
    %v4802 = vadd.f32 %v4706, %v4610
    %v4803 = vadd.f32 %v4707, %v4611
    %v4804 = vadd.f32 %v4708, %v4612
    %v4805 = vadd.f32 %v4709, %v4613
    %v4806 = vadd.f32 %v4710, %v4614
    %v4807 = vadd.f32 %v4711, %v4615
    %v4808 = vadd.f32 %v4712, %v4616
    %v4809 = vadd.f32 %v4713, %v4617
    %v4810 = vadd.f32 %v4714, %v4618
    %v4811 = vadd.f32 %v4715, %v4619
    %v4812 = vadd.f32 %v4716, %v4620
    %v4813 = vadd.f32 %v4717, %v4621
    %v4814 = vadd.f32 %v4718, %v4622
    %v4815 = vadd.f32 %v4719, %v4623
    %v4816 = vadd.f32 %v4720, %v4624
    %v4817 = vadd.f32 %v4721, %v4625
    %v4818 = vadd.f32 %v4722, %v4626
    %v4819 = vadd.f32 %v4723, %v4627
    %v4820 = vadd.f32 %v4724, %v4628
    %v4821 = vadd.f32 %v4725, %v4629
    %v4822 = vadd.f32 %v4726, %v4630
    %v4823 = vadd.f32 %v4727, %v4631
    %v4824 = vadd.f32 %v4728, %v4632
    %v4825 = vadd.f32 %v4729, %v4633
    %v4826 = vadd.f32 %v4730, %v4634
    %v4827 = vadd.f32 %v4731, %v4635
    %v4828 = vadd.f32 %v4732, %v4636
    %v4829 = vadd.f32 %v4733, %v4637
    %v4830 = vadd.f32 %v4734, %v4638
    %v4831 = vadd.f32 %v4735, %v4639
    %v4832 = vadd.f32 %v4736, %v4640
    %v4833 = vadd.f32 %v4737, %v4641
    %v4834 = vadd.f32 %v4738, %v4642
    %v4835 = vadd.f32 %v4739, %v4643
    %v4836 = vadd.f32 %v4740, %v4644
    %v4837 = vadd.f32 %v4741, %v4645
    %v4838 = vadd.f32 %v4742, %v4646
    %v4839 = vadd.f32 %v4743, %v4647
    %v4840 = vadd.f32 %v4744, %v4648
    %v4841 = vadd.f32 %v4745, %v4649
    %v4842 = vadd.f32 %v4746, %v4650
    %v4843 = vadd.f32 %v4747, %v4651
    %v4844 = vadd.f32 %v4748, %v4652
    %v4845 = vadd.f32 %v4749, %v4653
    %v4846 = vadd.f32 %v4750, %v4654
    %v4847 = vadd.f32 %v4751, %v4655
    %v4848 = vadd.f32 %v4752, %v4656
    %v4849 = vadd.f32 %v4753, %v4657
    %v4850 = vadd.f32 %v4754, %v4658
    %v4851 = vadd.f32 %v4755, %v4659
    %v4852 = vadd.f32 %v4756, %v4660
    %v4853 = vadd.f32 %v4757, %v4661
    %v4854 = vadd.f32 %v4758, %v4662
    %v4855 = vadd.f32 %v4759, %v4663
    %v4856 = vadd.f32 %v4760, %v4664
    %v4857 = vadd.f32 %v4761, %v4665
    %v4858 = vadd.f32 %v4762, %v4666
    %v4859 = vadd.f32 %v4763, %v4667
    %v4860 = vadd.f32 %v4764, %v4668
    %v4861 = vadd.f32 %v4765, %v4669
    %v4862 = vadd.f32 %v4766, %v4670
    %v4863 = vadd.f32 %v4767, %v4671
    %v4864 = vadd.f32 %v4768, %v4672
    %v4865 = vadd.f32 %v4769, %v4673
    %v4866 = vadd.f32 %v4770, %v4674
    %v4867 = vadd.f32 %v4771, %v4675
    %v4868 = vadd.f32 %v4772, %v4676
    %v4869 = vadd.f32 %v4773, %v4677
    %v4870 = vadd.f32 %v4774, %v4678
    %v4871 = vadd.f32 %v4775, %v4679
    %v4872 = vadd.f32 %v4776, %v4680
    %v4873 = vadd.f32 %v4777, %v4681
    %v4874 = vadd.f32 %v4778, %v4682
    %v4875 = vadd.f32 %v4779, %v4683
    %v4876 = vadd.f32 %v4780, %v4684
    %v4877 = vadd.f32 %v4781, %v4685
    %v4878 = vadd.f32 %v4782, %v4686
    %v4879 = vadd.f32 %v4783, %v4687
    %v4880 = vadd.f32 %v4784, %v4688
    %v4881 = vadd.f32 %v4785, %v4689
    %v4882 = vadd.f32 %v4786, %v4690
    %v4883 = vadd.f32 %v4787, %v4691
    %v4884 = vadd.f32 %v4788, %v4692
    %v4885 = vadd.f32 %v4789, %v4693
    %v4886 = vadd.f32 %v4790, %v4694
    %v4887 = vadd.f32 %v4791, %v4695
    %v4888 = vadd.f32 %v4792, %v4696
    %v4889 = vadd.f32 %v4793, %v4697
    %v4890 = vadd.f32 %v4794, %v4698
    %4891 = vst [vmem:[#allocation2] sm:$0xff] %v4795
    %4892 = vst [vmem:[#allocation2 + $0x8] sm:$0xff] %v4796
    %4893 = vst [vmem:[#allocation2 + $0x10] sm:$0xff] %v4797
    %4894 = vst [vmem:[#allocation2 + $0x18] sm:$0xff] %v4798
    %4895 = vst [vmem:[#allocation2 + $0x20] sm:$0xff] %v4799
    %4896 = vst [vmem:[#allocation2 + $0x28] sm:$0xff] %v4800
    %4897 = vst [vmem:[#allocation2 + $0x30] sm:$0xff] %v4801
    %4898 = vst [vmem:[#allocation2 + $0x38] sm:$0xff] %v4802
    %4899 = vst [vmem:[#allocation2 + $0x40] sm:$0xff] %v4803
    %4900 = vst [vmem:[#allocation2 + $0x48] sm:$0xff] %v4804
    %4901 = vst [vmem:[#allocation2 + $0x50] sm:$0xff] %v4805
    %4902 = vst [vmem:[#allocation2 + $0x58] sm:$0xff] %v4806
    %4903 = vst [vmem:[#allocation2 + $0x60] sm:$0xff] %v4807
    %4904 = vst [vmem:[#allocation2 + $0x68] sm:$0xff] %v4808
    %4905 = vst [vmem:[#allocation2 + $0x70] sm:$0xff] %v4809
    %4906 = vst [vmem:[#allocation2 + $0x78] sm:$0xff] %v4810
    %4907 = vst [vmem:[#allocation2 + $0x80] sm:$0xff] %v4811
    %4908 = vst [vmem:[#allocation2 + $0x88] sm:$0xff] %v4812
    %4909 = vst [vmem:[#allocation2 + $0x90] sm:$0xff] %v4813
    %4910 = vst [vmem:[#allocation2 + $0x98] sm:$0xff] %v4814
    %4911 = vst [vmem:[#allocation2 + $0xa0] sm:$0xff] %v4815
    %4912 = vst [vmem:[#allocation2 + $0xa8] sm:$0xff] %v4816
    %4913 = vst [vmem:[#allocation2 + $0xb0] sm:$0xff] %v4817
    %4914 = vst [vmem:[#allocation2 + $0xb8] sm:$0xff] %v4818
    %4915 = vst [vmem:[#allocation2 + $0xc0] sm:$0xff] %v4819
    %4916 = vst [vmem:[#allocation2 + $0xc8] sm:$0xff] %v4820
    %4917 = vst [vmem:[#allocation2 + $0xd0] sm:$0xff] %v4821
    %4918 = vst [vmem:[#allocation2 + $0xd8] sm:$0xff] %v4822
    %4919 = vst [vmem:[#allocation2 + $0xe0] sm:$0xff] %v4823
    %4920 = vst [vmem:[#allocation2 + $0xe8] sm:$0xff] %v4824
    %4921 = vst [vmem:[#allocation2 + $0xf0] sm:$0xff] %v4825
    %4922 = vst [vmem:[#allocation2 + $0xf8] sm:$0xff] %v4826
    %4923 = vst [vmem:[#allocation2 + $0x100] sm:$0xff] %v4827
    %4924 = vst [vmem:[#allocation2 + $0x108] sm:$0xff] %v4828
    %4925 = vst [vmem:[#allocation2 + $0x110] sm:$0xff] %v4829
    %4926 = vst [vmem:[#allocation2 + $0x118] sm:$0xff] %v4830
    %4927 = vst [vmem:[#allocation2 + $0x120] sm:$0xff] %v4831
    %4928 = vst [vmem:[#allocation2 + $0x128] sm:$0xff] %v4832
    %4929 = vst [vmem:[#allocation2 + $0x130] sm:$0xff] %v4833
    %4930 = vst [vmem:[#allocation2 + $0x138] sm:$0xff] %v4834
    %4931 = vst [vmem:[#allocation2 + $0x140] sm:$0xff] %v4835
    %4932 = vst [vmem:[#allocation2 + $0x148] sm:$0xff] %v4836
    %4933 = vst [vmem:[#allocation2 + $0x150] sm:$0xff] %v4837
    %4934 = vst [vmem:[#allocation2 + $0x158] sm:$0xff] %v4838
    %4935 = vst [vmem:[#allocation2 + $0x160] sm:$0xff] %v4839
    %4936 = vst [vmem:[#allocation2 + $0x168] sm:$0xff] %v4840
    %4937 = vst [vmem:[#allocation2 + $0x170] sm:$0xff] %v4841
    %4938 = vst [vmem:[#allocation2 + $0x178] sm:$0xff] %v4842
    %4939 = vst [vmem:[#allocation2 + $0x180] sm:$0xff] %v4843
    %4940 = vst [vmem:[#allocation2 + $0x188] sm:$0xff] %v4844
    %4941 = vst [vmem:[#allocation2 + $0x190] sm:$0xff] %v4845
    %4942 = vst [vmem:[#allocation2 + $0x198] sm:$0xff] %v4846
    %4943 = vst [vmem:[#allocation2 + $0x1a0] sm:$0xff] %v4847
    %4944 = vst [vmem:[#allocation2 + $0x1a8] sm:$0xff] %v4848
    %4945 = vst [vmem:[#allocation2 + $0x1b0] sm:$0xff] %v4849
    %4946 = vst [vmem:[#allocation2 + $0x1b8] sm:$0xff] %v4850
    %4947 = vst [vmem:[#allocation2 + $0x1c0] sm:$0xff] %v4851
    %4948 = vst [vmem:[#allocation2 + $0x1c8] sm:$0xff] %v4852
    %4949 = vst [vmem:[#allocation2 + $0x1d0] sm:$0xff] %v4853
    %4950 = vst [vmem:[#allocation2 + $0x1d8] sm:$0xff] %v4854
    %4951 = vst [vmem:[#allocation2 + $0x1e0] sm:$0xff] %v4855
    %4952 = vst [vmem:[#allocation2 + $0x1e8] sm:$0xff] %v4856
    %4953 = vst [vmem:[#allocation2 + $0x1f0] sm:$0xff] %v4857
    %4954 = vst [vmem:[#allocation2 + $0x1f8] sm:$0xff] %v4858
    %4955 = vst [vmem:[#allocation2 + $0x200] sm:$0xff] %v4859
    %4956 = vst [vmem:[#allocation2 + $0x208] sm:$0xff] %v4860
    %4957 = vst [vmem:[#allocation2 + $0x210] sm:$0xff] %v4861
    %4958 = vst [vmem:[#allocation2 + $0x218] sm:$0xff] %v4862
    %4959 = vst [vmem:[#allocation2 + $0x220] sm:$0xff] %v4863
    %4960 = vst [vmem:[#allocation2 + $0x228] sm:$0xff] %v4864
    %4961 = vst [vmem:[#allocation2 + $0x230] sm:$0xff] %v4865
    %4962 = vst [vmem:[#allocation2 + $0x238] sm:$0xff] %v4866
    %4963 = vst [vmem:[#allocation2 + $0x240] sm:$0xff] %v4867
    %4964 = vst [vmem:[#allocation2 + $0x248] sm:$0xff] %v4868
    %4965 = vst [vmem:[#allocation2 + $0x250] sm:$0xff] %v4869
    %4966 = vst [vmem:[#allocation2 + $0x258] sm:$0xff] %v4870
    %4967 = vst [vmem:[#allocation2 + $0x260] sm:$0xff] %v4871
    %4968 = vst [vmem:[#allocation2 + $0x268] sm:$0xff] %v4872
    %4969 = vst [vmem:[#allocation2 + $0x270] sm:$0xff] %v4873
    %4970 = vst [vmem:[#allocation2 + $0x278] sm:$0xff] %v4874
    %4971 = vst [vmem:[#allocation2 + $0x280] sm:$0xff] %v4875
    %4972 = vst [vmem:[#allocation2 + $0x288] sm:$0xff] %v4876
    %4973 = vst [vmem:[#allocation2 + $0x290] sm:$0xff] %v4877
    %4974 = vst [vmem:[#allocation2 + $0x298] sm:$0xff] %v4878
    %4975 = vst [vmem:[#allocation2 + $0x2a0] sm:$0xff] %v4879
    %4976 = vst [vmem:[#allocation2 + $0x2a8] sm:$0xff] %v4880
    %4977 = vst [vmem:[#allocation2 + $0x2b0] sm:$0xff] %v4881
    %4978 = vst [vmem:[#allocation2 + $0x2b8] sm:$0xff] %v4882
    %4979 = vst [vmem:[#allocation2 + $0x2c0] sm:$0xff] %v4883
    %4980 = vst [vmem:[#allocation2 + $0x2c8] sm:$0xff] %v4884
    %4981 = vst [vmem:[#allocation2 + $0x2d0] sm:$0xff] %v4885
    %4982 = vst [vmem:[#allocation2 + $0x2d8] sm:$0xff] %v4886
    %4983 = vst [vmem:[#allocation2 + $0x2e0] sm:$0xff] %v4887
    %4984 = vst [vmem:[#allocation2 + $0x2e8] sm:$0xff] %v4888
    %4985 = vst [vmem:[#allocation2 + $0x2f0] sm:$0xff] %v4889
    %4986 = vst [vmem:[#allocation2 + $0x2f8] sm:$0xff] %v4890
    // Predicated region
    $region14: #{tpu_custom_call.1} parent=1 // pred_check
      _
    $region15: #{tpu_custom_call.1} parent=1 // pred_check_branch
      %4988 = sbr.rel (0) target = $region17
    $region16: #{tpu_custom_call.1} parent=1 // pred_region
      %4990 = vsyncadd [#allocation3], 2688
      %s4991 = sshll.u32 [#allocation2], 4
      %s4992 = int_to_ptr.vmem [resolvable:$true] %s4991
      %s4993 = sshll.u32 %s2, 4
      %s4994 = int_to_ptr.hbm [resolvable:$true] %s4993
      %4999 = dma.vmem_to_hbm [thread:$0]  %s4992, 9600, %s4994, [#allocation3], 384, 384, 24
    $region17: #{tpu_custom_call.1} parent=1 // pred_fallthru
      _
    // Predicated region
    $region18: #{tpu_custom_call.1} parent=1 // pred_check
      _
    $region19: #{tpu_custom_call.1} parent=1 // pred_check_branch
      %5001 = sbr.rel (0) target = $region21
    $region20: #{tpu_custom_call.1} parent=1 // pred_region
      %5003 = dma.done [#allocation3], 12288
    $region21: #{tpu_custom_call.1} parent=1 // pred_fallthru
      _
    %5004 = vsyncpa [#allocation3], 1

</llo_original>
